<compile_context>
chip_gen: v6e
topology: v6e:2x2x1
jax: 0.10.0
libtpu: 0.0.40
codegen_flags: <defaults>
</compile_context>

<pallas_src>
import jax
import jax.numpy as jnp
from jax import lax
from jax.experimental import pallas as pl
from jax.experimental.pallas import tpu as pltpu

INPUT_SIZE = 36
HIDDEN = 32
GATES = 4 * HIDDEN          # 128 — exactly one lane tile
NUM_LAYERS = 2


def _lstm2_kernel(x_ref, h0_ref, c0_ref,
                  wih0_ref, whh0_ref, b0_ref,
                  w1_ref, b1_ref,
                  out_ref, hn_ref, cn_ref,
                  pre_ref):
    """2-layer LSTM over the full sequence; everything resident in VMEM.

    x_ref:    (T*BP, INPUT_SIZE)       flattened time-major input (batch padded to BP)
    h0/c0:    (NUM_LAYERS, BP, 128)    zero-padded beyond lane HIDDEN / sublane B
    wih0:     (INPUT_SIZE, 128)        pre-transposed, i/f/o columns pre-scaled by 0.5
    whh0:     (128, 128)               rows >= HIDDEN are zero, columns pre-scaled
    w1:       (256, 128)               stacked [wih1; whh1], zero-padded rows, pre-scaled
    b0/b1:    (1, 128)                 bias_ih + bias_hh, i/f/o lanes pre-scaled
    out_ref:  (T*BP, 128)              layer-1 hidden sequence (lanes >= HIDDEN are zero)
    hn/cn:    (NUM_LAYERS, BP, 128)
    pre_ref:  (T*BP, 128) scratch      hoisted layer-0 input projections
    """
    BP = h0_ref.shape[1]
    TB = x_ref.shape[0]
    T = TB // BP
    H = HIDDEN

    # Lane-index constants, hoisted out of the recurrence.
    lane = lax.broadcasted_iota(jnp.int32, (BP, GATES), 1)
    is_g_lane = (lane >= 2 * H) & (lane < 3 * H)      # g (cell) gate lanes
    is_h_lane = lane < H                              # lanes holding real h state
    # Sigmoid fold: weights were pre-scaled by 0.5 on i/f/o columns, so
    # sigmoid(z) = 0.5 * tanh(z/2) + 0.5 is one tanh + one FMA.
    act_scale = jnp.where(is_g_lane, 1.0, 0.5).astype(jnp.float32)
    act_off = jnp.where(is_g_lane, 0.0, 0.5).astype(jnp.float32)
    b1b = jnp.broadcast_to(b1_ref[...], (BP, GATES))  # hoisted broadcast

    # Hoisted layer-0 input projection: one big MXU pass for the whole sequence.
    pre_ref[...] = (jnp.dot(x_ref[...], wih0_ref[...],
                            preferred_element_type=jnp.float32) + b0_ref[...])

    def cell(gates, c):
        act = jnp.tanh(gates) * act_scale + act_off          # i/f/o=sigmoid, g=tanh
        f_al = pltpu.roll(act, shift=3 * H, axis=1)           # f -> lanes [0, H)
        g_al = pltpu.roll(act, shift=2 * H, axis=1)           # g -> lanes [0, H)
        o_al = pltpu.roll(act, shift=1 * H, axis=1)           # o -> lanes [0, H)
        c_new = f_al * c + act * g_al                         # lanes [0, H) valid
        h_new = jnp.where(is_h_lane, o_al * jnp.tanh(c_new), 0.0)
        return h_new, c_new

    def step(t, carry):
        h0, c0, h1, c1 = carry                                # (BP, 128) each
        row = t * BP
        if BP % 8 == 0:
            row = pl.multiple_of(row, 8)
        # ---- layer 0 at time t ----
        g0 = pre_ref[pl.ds(row, BP), :] + jnp.dot(
            h0, whh0_ref[...], preferred_element_type=jnp.float32)
        h0n, c0n = cell(g0, c0)
        # ---- layer 1 at time t (fused input+recurrent projection, K=256) ----
        # layer-0(t+1) does not depend on this, so under unrolling the scheduler
        # overlaps layer-1(t) with layer-0(t+1): a software wavefront.
        g1 = jnp.dot(jnp.concatenate([h0n, h1], axis=1), w1_ref[...],
                     preferred_element_type=jnp.float32) + b1b
        h1n, c1n = cell(g1, c1)
        out_ref[pl.ds(row, BP), :] = h1n                      # aligned lane-dense store
        return (h0n, c0n, h1n, c1n)

    # Unroll gated on T *and* batch (vreg-pressure guard at larger BP).
    if T <= 16 and BP <= 16:
        unroll = True
    else:
        unroll = max(1, min(8, 512 // BP))

    h0f, c0f, h1f, c1f = lax.fori_loop(
        0, T, step, (h0_ref[0], c0_ref[0], h0_ref[1], c0_ref[1]), unroll=unroll)

    hn_ref[0] = h0f
    hn_ref[1] = h1f
    cn_ref[0] = c0f      # lanes >= HIDDEN carry bounded garbage; sliced off in wrapper
    cn_ref[1] = c1f


def prepare_lstm_weights(params):
    """One-time prep: transpose to (in, 4H), zero-pad rows, fuse biases,
    stack layer-1 weights, and pre-scale i/f/o gate columns by 0.5 (sigmoid fold)."""
    H = HIDDEN
    col = jnp.arange(GATES)
    col_scale = jnp.where((col >= 2 * H) & (col < 3 * H), 1.0, 0.5).astype(jnp.float32)

    def scale_cols(w):
        return w * col_scale[None, :]

    def pad_rows(w_t, rows):
        return jnp.zeros((rows, GATES), jnp.float32).at[:w_t.shape[0], :].set(
            w_t.astype(jnp.float32))

    wih0 = scale_cols(params['weight_ih_l0'].T.astype(jnp.float32))        # (36, 128)
    whh0 = scale_cols(pad_rows(params['weight_hh_l0'].T, GATES))           # (128, 128)
    b0 = scale_cols((params['bias_ih_l0'] + params['bias_hh_l0']
                     ).astype(jnp.float32).reshape(1, GATES))

    # Fused layer-1 weight: rows [0,H)=wih1^T, [H,128)=0, [128,128+H)=whh1^T, rest 0.
    w1 = jnp.zeros((2 * GATES, GATES), jnp.float32)
    w1 = w1.at[:H, :].set(params['weight_ih_l1'].T.astype(jnp.float32))
    w1 = w1.at[GATES:GATES + H, :].set(params['weight_hh_l1'].T.astype(jnp.float32))
    w1 = scale_cols(w1)
    b1 = scale_cols((params['bias_ih_l1'] + params['bias_hh_l1']
                     ).astype(jnp.float32).reshape(1, GATES))

    return {'wih0': wih0, 'whh0': whh0, 'b0': b0, 'w1': w1, 'b1': b1}


def _vmem_limit_bytes(T, BP, F):
    """Size the scoped-VMEM limit from actual buffers (f32), with headroom."""
    n_in = (T * BP * F
            + 2 * NUM_LAYERS * BP * GATES          # h0, c0
            + F * GATES + GATES * GATES            # wih0, whh0
            + 2 * GATES * GATES                    # w1
            + 2 * GATES)                           # b0, b1
    n_out = T * BP * GATES + 2 * NUM_LAYERS * BP * GATES
    n_scratch = T * BP * GATES
    need = 4 * (2 * (n_in + n_out) + n_scratch)    # I/O double-buffered by BlockSpec
    # Cap below v7x's 64 MiB physical VMEM so the same code compiles everywhere.
    return int(min(max(need + (2 << 20), 8 << 20), 48 << 20))


def temp_lstm_forward(data, weights):
    """Equivalent of TempLSTM.forward: returns {'output', 'next_state'}."""
    x = data['f']                       # (T, B, 36)
    h0, c0 = data['prev_state']         # each (2, B, 32)
    T, B, F = x.shape

    BP = max(8, ((B + 7) // 8) * 8)     # pad batch to a full sublane tile
    lane_pad = GATES - HIDDEN

    # Sublane-dense layout: (T, B, F) -> pad batch -> (T*BP, F); row t*BP + b == (t, b).
    x_flat = jnp.pad(x.astype(jnp.float32),
                     ((0, 0), (0, BP - B), (0, 0))).reshape(T * BP, F)
    # TODO(synk): for larger B, build this padded (layers, BP, 128) carry inside the
    # kernel from the raw (layers, B, 32) refs instead of wrapper-side jnp.pad.
    h0p = jnp.pad(h0.astype(jnp.float32), ((0, 0), (0, BP - B), (0, lane_pad)))
    c0p = jnp.pad(c0.astype(jnp.float32), ((0, 0), (0, BP - B), (0, lane_pad)))

    def full(shape):
        n = len(shape)
        return pl.BlockSpec(shape, lambda i, n=n: (0,) * n)

    # TODO(synk): for long sequences, chunk T over a grid axis with carried (h, c)
    # scratch (whole-sequence VMEM residency caps out earlier on v7x's 64 MiB VMEM),
    # and add a leading "parallel" batch axis to use v7x's second TensorCore.
    out_flat, hn_p, cn_p = pl.pallas_call(
        _lstm2_kernel,
        grid=(1,),
        in_specs=[
            full((T * BP, F)),
            full((NUM_LAYERS, BP, GATES)),
            full((NUM_LAYERS, BP, GATES)),
            full((F, GATES)),
            full((GATES, GATES)),
            full((1, GATES)),
            full((2 * GATES, GATES)),
            full((1, GATES)),
        ],
        out_specs=(
            full((T * BP, GATES)),
            full((NUM_LAYERS, BP, GATES)),
            full((NUM_LAYERS, BP, GATES)),
        ),
        out_shape=(
            jax.ShapeDtypeStruct((T * BP, GATES), jnp.float32),
            jax.ShapeDtypeStruct((NUM_LAYERS, BP, GATES), jnp.float32),
            jax.ShapeDtypeStruct((NUM_LAYERS, BP, GATES), jnp.float32),
        ),
        scratch_shapes=[
            pltpu.VMEM((T * BP, GATES), jnp.float32),   # hoisted layer-0 pre-activations
        ],
        compiler_params=pltpu.CompilerParams(
            dimension_semantics=("arbitrary",),
            vmem_limit_bytes=_vmem_limit_bytes(T, BP, F)),
    )(x_flat, h0p, c0p,
      weights['wih0'], weights['whh0'], weights['b0'],
      weights['w1'], weights['b1'])

    out = out_flat.reshape(T, BP, GATES)[:, :B, :HIDDEN]
    hn = hn_p[:, :B, :HIDDEN]
    cn = cn_p[:, :B, :HIDDEN]
    # list_next_state=True semantics: per-sample (h, c), each (num_layers, 1, hidden).
    next_state = [(hn[:, i:i + 1, :], cn[:, i:i + 1, :]) for i in range(B)]
    return {'output': out, 'next_state': next_state}


# ----------------------- pure-JAX reference (for validation) -----------------------
def lstm_ref(x, h0, c0, params):
    def run_layer(x_seq, h, c, wih, whh, bih, bhh):
        def step(carry, x_t):
            h, c = carry
            gates = x_t @ wih.T + bih + h @ whh.T + bhh
            i, f, g, o = jnp.split(gates, 4, axis=-1)
            c = jax.nn.sigmoid(f) * c + jax.nn.sigmoid(i) * jnp.tanh(g)
            h = jax.nn.sigmoid(o) * jnp.tanh(c)
            return (h, c), h
        (h, c), ys = lax.scan(step, (h, c), x_seq)
        return ys, h, c

    y0, h_l0, c_l0 = run_layer(x, h0[0], c0[0],
                               params['weight_ih_l0'], params['weight_hh_l0'],
                               params['bias_ih_l0'], params['bias_hh_l0'])
    y1, h_l1, c_l1 = run_layer(y0, h0[1], c0[1],
                               params['weight_ih_l1'], params['weight_hh_l1'],
                               params['bias_ih_l1'], params['bias_hh_l1'])
    return y1, jnp.stack([h_l0, h_l1]), jnp.stack([c_l0, c_l1])


def init_params(key):
    """Deterministic init matching nn.LSTM parameter shapes."""
    bound = 1.0 / (HIDDEN ** 0.5)
    shapes = [
        ('weight_ih_l0', (4 * HIDDEN, INPUT_SIZE)),
        ('weight_hh_l0', (4 * HIDDEN, HIDDEN)),
        ('bias_ih_l0', (4 * HIDDEN,)),
        ('bias_hh_l0', (4 * HIDDEN,)),
        ('weight_ih_l1', (4 * HIDDEN, HIDDEN)),
        ('weight_hh_l1', (4 * HIDDEN, HIDDEN)),
        ('bias_ih_l1', (4 * HIDDEN,)),
        ('bias_hh_l1', (4 * HIDDEN,)),
    ]
    keys = jax.random.split(key, len(shapes))
    return {name: jax.random.uniform(k, shp, jnp.float32, -bound, bound)
            for k, (name, shp) in zip(keys, shapes)}


if __name__ == "__main__":
    key = jax.random.PRNGKey(0)
    k_param, k_x, k_h, k_c = jax.random.split(key, 4)

    T, B = 8, 2
    params = init_params(k_param)
    weights = prepare_lstm_weights(params)   # one-time prep, outside per-call path

    x = jax.random.normal(k_x, (T, B, INPUT_SIZE), jnp.float32)
    h0 = jax.random.normal(k_h, (NUM_LAYERS, B, HIDDEN), jnp.float32)
    c0 = jax.random.normal(k_c, (NUM_LAYERS, B, HIDDEN), jnp.float32)

    data = {'f': x, 'prev_state': (h0, c0)}
    result = temp_lstm_forward(data, weights)
    jax.block_until_ready(result)

    # Validate against the pure-JAX reference (also guards the sigmoid-fold,
    # roll alignment and zero-padding invariants).
    y_ref, hn_ref_arr, cn_ref_arr = lstm_ref(x, h0, c0, params)
    hn_kernel = jnp.concatenate([s[0] for s in result['next_state']], axis=1)
    cn_kernel = jnp.concatenate([s[1] for s in result['next_state']], axis=1)

    assert jnp.allclose(result['output'], y_ref, atol=1e-4, rtol=1e-4)
    assert jnp.allclose(hn_kernel, hn_ref_arr, atol=1e-4, rtol=1e-4)
    assert jnp.allclose(cn_kernel, cn_ref_arr, atol=1e-4, rtol=1e-4)

    print("KERNEL_OK")
</pallas_src>

<mosaic_0001>
module attributes {stable_mosaic.version = 11 : i64} {
  func.func @_lstm2_kernel(%arg0: i32, %arg1: memref<64x36xf32, #tpu.memory_space<vmem>>, %arg2: memref<2x8x128xf32, #tpu.memory_space<vmem>>, %arg3: memref<2x8x128xf32, #tpu.memory_space<vmem>>, %arg4: memref<36x128xf32, #tpu.memory_space<vmem>>, %arg5: memref<128x128xf32, #tpu.memory_space<vmem>>, %arg6: memref<1x128xf32, #tpu.memory_space<vmem>>, %arg7: memref<256x128xf32, #tpu.memory_space<vmem>>, %arg8: memref<1x128xf32, #tpu.memory_space<vmem>>, %arg9: memref<64x128xf32, #tpu.memory_space<vmem>>, %arg10: memref<2x8x128xf32, #tpu.memory_space<vmem>>, %arg11: memref<2x8x128xf32, #tpu.memory_space<vmem>>, %arg12: memref<64x128xf32, #tpu.memory_space<vmem>>) attributes {dimension_semantics = [#tpu.dimension_semantics<arbitrary>], iteration_bounds = array<i64: 1>, scalar_prefetch = 0 : i64, scratch_operands = 1 : i64, tpu.core_type = #tpu.core_type<tc>, window_params = [{pipeline_mode = #tpu.pipeline_mode<synchronous>, transform_indices = @transform_0, window_bounds = array<i64: 64, 36>}, {pipeline_mode = #tpu.pipeline_mode<synchronous>, transform_indices = @transform_1, window_bounds = array<i64: 2, 8, 128>}, {pipeline_mode = #tpu.pipeline_mode<synchronous>, transform_indices = @transform_2, window_bounds = array<i64: 2, 8, 128>}, {pipeline_mode = #tpu.pipeline_mode<synchronous>, transform_indices = @transform_3, window_bounds = array<i64: 36, 128>}, {pipeline_mode = #tpu.pipeline_mode<synchronous>, transform_indices = @transform_4, window_bounds = array<i64: 128, 128>}, {pipeline_mode = #tpu.pipeline_mode<synchronous>, transform_indices = @transform_5, window_bounds = array<i64: 1, 128>}, {pipeline_mode = #tpu.pipeline_mode<synchronous>, transform_indices = @transform_6, window_bounds = array<i64: 256, 128>}, {pipeline_mode = #tpu.pipeline_mode<synchronous>, transform_indices = @transform_7, window_bounds = array<i64: 1, 128>}, {pipeline_mode = #tpu.pipeline_mode<synchronous>, transform_indices = @transform_8, window_bounds = array<i64: 64, 128>}, {pipeline_mode = #tpu.pipeline_mode<synchronous>, transform_indices = @transform_9, window_bounds = array<i64: 2, 8, 128>}, {pipeline_mode = #tpu.pipeline_mode<synchronous>, transform_indices = @transform_10, window_bounds = array<i64: 2, 8, 128>}]} {
    %0 = tpu.iota {dimensions = array<i32: 1>} : vector<8x128xi32>
    %c64_i32 = arith.constant 64 : i32
    %1 = vector.broadcast %c64_i32 : i32 to vector<8x128xi32>
    %2 = arith.cmpi sge, %0, %1 : vector<8x128xi32>
    %c96_i32 = arith.constant 96 : i32
    %3 = vector.broadcast %c96_i32 : i32 to vector<8x128xi32>
    %4 = arith.cmpi slt, %0, %3 : vector<8x128xi32>
    %5 = arith.andi %2, %4 : vector<8x128xi1>
    %c32_i32 = arith.constant 32 : i32
    %6 = vector.broadcast %c32_i32 : i32 to vector<8x128xi32>
    %7 = arith.cmpi slt, %0, %6 : vector<8x128xi32>
    %cst = arith.constant 1.000000e+00 : f32
    %cst_0 = arith.constant 5.000000e-01 : f32
    %8 = vector.broadcast %cst : f32 to vector<8x128xf32>
    %9 = vector.broadcast %cst_0 : f32 to vector<8x128xf32>
    %10 = arith.select %5, %8, %9 : vector<8x128xi1>, vector<8x128xf32>
    %cst_1 = arith.constant 0.000000e+00 : f32
    %cst_2 = arith.constant 5.000000e-01 : f32
    %11 = vector.broadcast %cst_1 : f32 to vector<8x128xf32>
    %12 = vector.broadcast %cst_2 : f32 to vector<8x128xf32>
    %13 = arith.select %5, %11, %12 : vector<8x128xi1>, vector<8x128xf32>
    %c0 = arith.constant 0 : index
    %c0_3 = arith.constant 0 : index
    %14 = vector.load %arg8[%c0, %c0_3] : memref<1x128xf32, #tpu.memory_space<vmem>>, vector<1x128xf32>
    %15 = vector.shape_cast %14 : vector<1x128xf32> to vector<1x128xf32>
    %16 = vector.broadcast %15 : vector<1x128xf32> to vector<8x128xf32>
    %c0_4 = arith.constant 0 : index
    %c0_5 = arith.constant 0 : index
    %17 = vector.load %arg1[%c0_4, %c0_5] : memref<64x36xf32, #tpu.memory_space<vmem>>, vector<64x36xf32>
    %c0_6 = arith.constant 0 : index
    %c0_7 = arith.constant 0 : index
    %18 = vector.load %arg4[%c0_6, %c0_7] : memref<36x128xf32, #tpu.memory_space<vmem>>, vector<36x128xf32>
    %cst_8 = arith.constant dense<0.000000e+00> : vector<64x128xf32>
    %19 = tpu.matmul %17, %18, %cst_8 {dimension_numbers = #tpu.dot_dimension_numbers<[1], [0], [0], [1], [0, 0, 1, 1], [], []>} : vector<64x36xf32>, vector<36x128xf32>, vector<64x128xf32> -> vector<64x128xf32>
    %c0_9 = arith.constant 0 : index
    %c0_10 = arith.constant 0 : index
    %20 = vector.load %arg6[%c0_9, %c0_10] : memref<1x128xf32, #tpu.memory_space<vmem>>, vector<1x128xf32>
    %21 = vector.broadcast %20 : vector<1x128xf32> to vector<64x128xf32>
    %22 = arith.addf %19, %21 : vector<64x128xf32>
    %c0_11 = arith.constant 0 : index
    %c0_12 = arith.constant 0 : index
    %23 = vector.load %arg12[%c0_11, %c0_12] : memref<64x128xf32, #tpu.memory_space<vmem>>, vector<64x128xf32>
    tpu.vector_store %arg12[%c0_11, %c0_12], %22 {strides = array<i32>} : memref<64x128xf32, #tpu.memory_space<vmem>>, vector<64x128xf32>,
    %c0_13 = arith.constant 0 : index
    %c0_14 = arith.constant 0 : index
    %c0_15 = arith.constant 0 : index
    %24 = vector.load %arg2[%c0_13, %c0_14, %c0_15] : memref<2x8x128xf32, #tpu.memory_space<vmem>>, vector<1x8x128xf32>
    %25 = vector.shape_cast %24 : vector<1x8x128xf32> to vector<8x128xf32>
    %c0_16 = arith.constant 0 : index
    %c0_17 = arith.constant 0 : index
    %c0_18 = arith.constant 0 : index
    %26 = vector.load %arg3[%c0_16, %c0_17, %c0_18] : memref<2x8x128xf32, #tpu.memory_space<vmem>>, vector<1x8x128xf32>
    %27 = vector.shape_cast %26 : vector<1x8x128xf32> to vector<8x128xf32>
    %c1 = arith.constant 1 : index
    %c0_19 = arith.constant 0 : index
    %c0_20 = arith.constant 0 : index
    %28 = vector.load %arg2[%c1, %c0_19, %c0_20] : memref<2x8x128xf32, #tpu.memory_space<vmem>>, vector<1x8x128xf32>
    %29 = vector.shape_cast %28 : vector<1x8x128xf32> to vector<8x128xf32>
    %c1_21 = arith.constant 1 : index
    %c0_22 = arith.constant 0 : index
    %c0_23 = arith.constant 0 : index
    %30 = vector.load %arg3[%c1_21, %c0_22, %c0_23] : memref<2x8x128xf32, #tpu.memory_space<vmem>>, vector<1x8x128xf32>
    %31 = vector.shape_cast %30 : vector<1x8x128xf32> to vector<8x128xf32>
    %c0_i32 = arith.constant 0 : i32
    %c8_i32 = arith.constant 8 : i32
    %32 = arith.muli %c0_i32, %c8_i32 : i32
    %33 = tpu.assume_multiple %32, 8 : i32
    %34 = arith.index_cast %33 : i32 to index
    %c0_24 = arith.constant 0 : index
    %35 = vector.load %arg12[%34, %c0_24] : memref<64x128xf32, #tpu.memory_space<vmem>>, vector<8x128xf32>
    %c0_25 = arith.constant 0 : index
    %c0_26 = arith.constant 0 : index
    %36 = vector.load %arg5[%c0_25, %c0_26] : memref<128x128xf32, #tpu.memory_space<vmem>>, vector<128x128xf32>
    %cst_27 = arith.constant dense<0.000000e+00> : vector<8x128xf32>
    %37 = tpu.matmul %25, %36, %cst_27 {dimension_numbers = #tpu.dot_dimension_numbers<[1], [0], [0], [1], [0, 0, 1, 1], [], []>} : vector<8x128xf32>, vector<128x128xf32>, vector<8x128xf32> -> vector<8x128xf32>
    %38 = arith.addf %35, %37 : vector<8x128xf32>
    %39 = math.tanh %38 : vector<8x128xf32>
    %40 = arith.mulf %39, %10 : vector<8x128xf32>
    %41 = arith.addf %40, %13 : vector<8x128xf32>
    %c96_i32_28 = arith.constant 96 : i32
    %42 = tpu.dynamic_rotate %41 by %c96_i32_28 dim 1 : vector<8x128xf32>, i32 -> vector<8x128xf32>
    %c64_i32_29 = arith.constant 64 : i32
    %43 = tpu.dynamic_rotate %41 by %c64_i32_29 dim 1 : vector<8x128xf32>, i32 -> vector<8x128xf32>
    %c32_i32_30 = arith.constant 32 : i32
    %44 = tpu.dynamic_rotate %41 by %c32_i32_30 dim 1 : vector<8x128xf32>, i32 -> vector<8x128xf32>
    %45 = arith.mulf %42, %27 : vector<8x128xf32>
    %46 = arith.mulf %41, %43 : vector<8x128xf32>
    %47 = arith.addf %45, %46 : vector<8x128xf32>
    %48 = math.tanh %47 : vector<8x128xf32>
    %49 = arith.mulf %44, %48 : vector<8x128xf32>
    %cst_31 = arith.constant 0.000000e+00 : f32
    %50 = vector.broadcast %cst_31 : f32 to vector<8x128xf32>
    %51 = arith.select %7, %49, %50 : vector<8x128xi1>, vector<8x128xf32>
    %52 = tpu.concatenate %51, %29 in 1 : vector<8x128xf32>, vector<8x128xf32> -> vector<8x256xf32>
    %c0_32 = arith.constant 0 : index
    %c0_33 = arith.constant 0 : index
    %53 = vector.load %arg7[%c0_32, %c0_33] : memref<256x128xf32, #tpu.memory_space<vmem>>, vector<256x128xf32>
    %cst_34 = arith.constant dense<0.000000e+00> : vector<8x128xf32>
    %54 = tpu.matmul %52, %53, %cst_34 {dimension_numbers = #tpu.dot_dimension_numbers<[1], [0], [0], [1], [0, 0, 1, 1], [], []>} : vector<8x256xf32>, vector<256x128xf32>, vector<8x128xf32> -> vector<8x128xf32>
    %55 = arith.addf %54, %16 : vector<8x128xf32>
    %56 = math.tanh %55 : vector<8x128xf32>
    %57 = arith.mulf %56, %10 : vector<8x128xf32>
    %58 = arith.addf %57, %13 : vector<8x128xf32>
    %c96_i32_35 = arith.constant 96 : i32
    %59 = tpu.dynamic_rotate %58 by %c96_i32_35 dim 1 : vector<8x128xf32>, i32 -> vector<8x128xf32>
    %c64_i32_36 = arith.constant 64 : i32
    %60 = tpu.dynamic_rotate %58 by %c64_i32_36 dim 1 : vector<8x128xf32>, i32 -> vector<8x128xf32>
    %c32_i32_37 = arith.constant 32 : i32
    %61 = tpu.dynamic_rotate %58 by %c32_i32_37 dim 1 : vector<8x128xf32>, i32 -> vector<8x128xf32>
    %62 = arith.mulf %59, %31 : vector<8x128xf32>
    %63 = arith.mulf %58, %60 : vector<8x128xf32>
    %64 = arith.addf %62, %63 : vector<8x128xf32>
    %65 = math.tanh %64 : vector<8x128xf32>
    %66 = arith.mulf %61, %65 : vector<8x128xf32>
    %cst_38 = arith.constant 0.000000e+00 : f32
    %67 = vector.broadcast %cst_38 : f32 to vector<8x128xf32>
    %68 = arith.select %7, %66, %67 : vector<8x128xi1>, vector<8x128xf32>
    %69 = arith.index_cast %33 : i32 to index
    %c0_39 = arith.constant 0 : index
    %70 = vector.load %arg9[%69, %c0_39] : memref<64x128xf32, #tpu.memory_space<vmem>>, vector<8x128xf32>
    tpu.vector_store %arg9[%69, %c0_39], %68 {strides = array<i32>} : memref<64x128xf32, #tpu.memory_space<vmem>>, vector<8x128xf32>,
    %c1_i32 = arith.constant 1 : i32
    %c8_i32_40 = arith.constant 8 : i32
    %71 = arith.muli %c1_i32, %c8_i32_40 : i32
    %72 = tpu.assume_multiple %71, 8 : i32
    %73 = arith.index_cast %72 : i32 to index
    %c0_41 = arith.constant 0 : index
    %74 = vector.load %arg12[%73, %c0_41] : memref<64x128xf32, #tpu.memory_space<vmem>>, vector<8x128xf32>
    %c0_42 = arith.constant 0 : index
    %c0_43 = arith.constant 0 : index
    %75 = vector.load %arg5[%c0_42, %c0_43] : memref<128x128xf32, #tpu.memory_space<vmem>>, vector<128x128xf32>
    %cst_44 = arith.constant dense<0.000000e+00> : vector<8x128xf32>
    %76 = tpu.matmul %51, %75, %cst_44 {dimension_numbers = #tpu.dot_dimension_numbers<[1], [0], [0], [1], [0, 0, 1, 1], [], []>} : vector<8x128xf32>, vector<128x128xf32>, vector<8x128xf32> -> vector<8x128xf32>
    %77 = arith.addf %74, %76 : vector<8x128xf32>
    %78 = math.tanh %77 : vector<8x128xf32>
    %79 = arith.mulf %78, %10 : vector<8x128xf32>
    %80 = arith.addf %79, %13 : vector<8x128xf32>
    %c96_i32_45 = arith.constant 96 : i32
    %81 = tpu.dynamic_rotate %80 by %c96_i32_45 dim 1 : vector<8x128xf32>, i32 -> vector<8x128xf32>
    %c64_i32_46 = arith.constant 64 : i32
    %82 = tpu.dynamic_rotate %80 by %c64_i32_46 dim 1 : vector<8x128xf32>, i32 -> vector<8x128xf32>
    %c32_i32_47 = arith.constant 32 : i32
    %83 = tpu.dynamic_rotate %80 by %c32_i32_47 dim 1 : vector<8x128xf32>, i32 -> vector<8x128xf32>
    %84 = arith.mulf %81, %47 : vector<8x128xf32>
    %85 = arith.mulf %80, %82 : vector<8x128xf32>
    %86 = arith.addf %84, %85 : vector<8x128xf32>
    %87 = math.tanh %86 : vector<8x128xf32>
    %88 = arith.mulf %83, %87 : vector<8x128xf32>
    %cst_48 = arith.constant 0.000000e+00 : f32
    %89 = vector.broadcast %cst_48 : f32 to vector<8x128xf32>
    %90 = arith.select %7, %88, %89 : vector<8x128xi1>, vector<8x128xf32>
    %91 = tpu.concatenate %90, %68 in 1 : vector<8x128xf32>, vector<8x128xf32> -> vector<8x256xf32>
    %c0_49 = arith.constant 0 : index
    %c0_50 = arith.constant 0 : index
    %92 = vector.load %arg7[%c0_49, %c0_50] : memref<256x128xf32, #tpu.memory_space<vmem>>, vector<256x128xf32>
    %cst_51 = arith.constant dense<0.000000e+00> : vector<8x128xf32>
    %93 = tpu.matmul %91, %92, %cst_51 {dimension_numbers = #tpu.dot_dimension_numbers<[1], [0], [0], [1], [0, 0, 1, 1], [], []>} : vector<8x256xf32>, vector<256x128xf32>, vector<8x128xf32> -> vector<8x128xf32>
    %94 = arith.addf %93, %16 : vector<8x128xf32>
    %95 = math.tanh %94 : vector<8x128xf32>
    %96 = arith.mulf %95, %10 : vector<8x128xf32>
    %97 = arith.addf %96, %13 : vector<8x128xf32>
    %c96_i32_52 = arith.constant 96 : i32
    %98 = tpu.dynamic_rotate %97 by %c96_i32_52 dim 1 : vector<8x128xf32>, i32 -> vector<8x128xf32>
    %c64_i32_53 = arith.constant 64 : i32
    %99 = tpu.dynamic_rotate %97 by %c64_i32_53 dim 1 : vector<8x128xf32>, i32 -> vector<8x128xf32>
    %c32_i32_54 = arith.constant 32 : i32
    %100 = tpu.dynamic_rotate %97 by %c32_i32_54 dim 1 : vector<8x128xf32>, i32 -> vector<8x128xf32>
    %101 = arith.mulf %98, %64 : vector<8x128xf32>
    %102 = arith.mulf %97, %99 : vector<8x128xf32>
    %103 = arith.addf %101, %102 : vector<8x128xf32>
    %104 = math.tanh %103 : vector<8x128xf32>
    %105 = arith.mulf %100, %104 : vector<8x128xf32>
    %cst_55 = arith.constant 0.000000e+00 : f32
    %106 = vector.broadcast %cst_55 : f32 to vector<8x128xf32>
    %107 = arith.select %7, %105, %106 : vector<8x128xi1>, vector<8x128xf32>
    %108 = arith.index_cast %72 : i32 to index
    %c0_56 = arith.constant 0 : index
    %109 = vector.load %arg9[%108, %c0_56] : memref<64x128xf32, #tpu.memory_space<vmem>>, vector<8x128xf32>
    tpu.vector_store %arg9[%108, %c0_56], %107 {strides = array<i32>} : memref<64x128xf32, #tpu.memory_space<vmem>>, vector<8x128xf32>,
    %c2_i32 = arith.constant 2 : i32
    %c8_i32_57 = arith.constant 8 : i32
    %110 = arith.muli %c2_i32, %c8_i32_57 : i32
    %111 = tpu.assume_multiple %110, 8 : i32
    %112 = arith.index_cast %111 : i32 to index
    %c0_58 = arith.constant 0 : index
    %113 = vector.load %arg12[%112, %c0_58] : memref<64x128xf32, #tpu.memory_space<vmem>>, vector<8x128xf32>
    %c0_59 = arith.constant 0 : index
    %c0_60 = arith.constant 0 : index
    %114 = vector.load %arg5[%c0_59, %c0_60] : memref<128x128xf32, #tpu.memory_space<vmem>>, vector<128x128xf32>
    %cst_61 = arith.constant dense<0.000000e+00> : vector<8x128xf32>
    %115 = tpu.matmul %90, %114, %cst_61 {dimension_numbers = #tpu.dot_dimension_numbers<[1], [0], [0], [1], [0, 0, 1, 1], [], []>} : vector<8x128xf32>, vector<128x128xf32>, vector<8x128xf32> -> vector<8x128xf32>
    %116 = arith.addf %113, %115 : vector<8x128xf32>
    %117 = math.tanh %116 : vector<8x128xf32>
    %118 = arith.mulf %117, %10 : vector<8x128xf32>
    %119 = arith.addf %118, %13 : vector<8x128xf32>
    %c96_i32_62 = arith.constant 96 : i32
    %120 = tpu.dynamic_rotate %119 by %c96_i32_62 dim 1 : vector<8x128xf32>, i32 -> vector<8x128xf32>
    %c64_i32_63 = arith.constant 64 : i32
    %121 = tpu.dynamic_rotate %119 by %c64_i32_63 dim 1 : vector<8x128xf32>, i32 -> vector<8x128xf32>
    %c32_i32_64 = arith.constant 32 : i32
    %122 = tpu.dynamic_rotate %119 by %c32_i32_64 dim 1 : vector<8x128xf32>, i32 -> vector<8x128xf32>
    %123 = arith.mulf %120, %86 : vector<8x128xf32>
    %124 = arith.mulf %119, %121 : vector<8x128xf32>
    %125 = arith.addf %123, %124 : vector<8x128xf32>
    %126 = math.tanh %125 : vector<8x128xf32>
    %127 = arith.mulf %122, %126 : vector<8x128xf32>
    %cst_65 = arith.constant 0.000000e+00 : f32
    %128 = vector.broadcast %cst_65 : f32 to vector<8x128xf32>
    %129 = arith.select %7, %127, %128 : vector<8x128xi1>, vector<8x128xf32>
    %130 = tpu.concatenate %129, %107 in 1 : vector<8x128xf32>, vector<8x128xf32> -> vector<8x256xf32>
    %c0_66 = arith.constant 0 : index
    %c0_67 = arith.constant 0 : index
    %131 = vector.load %arg7[%c0_66, %c0_67] : memref<256x128xf32, #tpu.memory_space<vmem>>, vector<256x128xf32>
    %cst_68 = arith.constant dense<0.000000e+00> : vector<8x128xf32>
    %132 = tpu.matmul %130, %131, %cst_68 {dimension_numbers = #tpu.dot_dimension_numbers<[1], [0], [0], [1], [0, 0, 1, 1], [], []>} : vector<8x256xf32>, vector<256x128xf32>, vector<8x128xf32> -> vector<8x128xf32>
    %133 = arith.addf %132, %16 : vector<8x128xf32>
    %134 = math.tanh %133 : vector<8x128xf32>
    %135 = arith.mulf %134, %10 : vector<8x128xf32>
    %136 = arith.addf %135, %13 : vector<8x128xf32>
    %c96_i32_69 = arith.constant 96 : i32
    %137 = tpu.dynamic_rotate %136 by %c96_i32_69 dim 1 : vector<8x128xf32>, i32 -> vector<8x128xf32>
    %c64_i32_70 = arith.constant 64 : i32
    %138 = tpu.dynamic_rotate %136 by %c64_i32_70 dim 1 : vector<8x128xf32>, i32 -> vector<8x128xf32>
    %c32_i32_71 = arith.constant 32 : i32
    %139 = tpu.dynamic_rotate %136 by %c32_i32_71 dim 1 : vector<8x128xf32>, i32 -> vector<8x128xf32>
    %140 = arith.mulf %137, %103 : vector<8x128xf32>
    %141 = arith.mulf %136, %138 : vector<8x128xf32>
    %142 = arith.addf %140, %141 : vector<8x128xf32>
    %143 = math.tanh %142 : vector<8x128xf32>
    %144 = arith.mulf %139, %143 : vector<8x128xf32>
    %cst_72 = arith.constant 0.000000e+00 : f32
    %145 = vector.broadcast %cst_72 : f32 to vector<8x128xf32>
    %146 = arith.select %7, %144, %145 : vector<8x128xi1>, vector<8x128xf32>
    %147 = arith.index_cast %111 : i32 to index
    %c0_73 = arith.constant 0 : index
    %148 = vector.load %arg9[%147, %c0_73] : memref<64x128xf32, #tpu.memory_space<vmem>>, vector<8x128xf32>
    tpu.vector_store %arg9[%147, %c0_73], %146 {strides = array<i32>} : memref<64x128xf32, #tpu.memory_space<vmem>>, vector<8x128xf32>,
    %c3_i32 = arith.constant 3 : i32
    %c8_i32_74 = arith.constant 8 : i32
    %149 = arith.muli %c3_i32, %c8_i32_74 : i32
    %150 = tpu.assume_multiple %149, 8 : i32
    %151 = arith.index_cast %150 : i32 to index
    %c0_75 = arith.constant 0 : index
    %152 = vector.load %arg12[%151, %c0_75] : memref<64x128xf32, #tpu.memory_space<vmem>>, vector<8x128xf32>
    %c0_76 = arith.constant 0 : index
    %c0_77 = arith.constant 0 : index
    %153 = vector.load %arg5[%c0_76, %c0_77] : memref<128x128xf32, #tpu.memory_space<vmem>>, vector<128x128xf32>
    %cst_78 = arith.constant dense<0.000000e+00> : vector<8x128xf32>
    %154 = tpu.matmul %129, %153, %cst_78 {dimension_numbers = #tpu.dot_dimension_numbers<[1], [0], [0], [1], [0, 0, 1, 1], [], []>} : vector<8x128xf32>, vector<128x128xf32>, vector<8x128xf32> -> vector<8x128xf32>
    %155 = arith.addf %152, %154 : vector<8x128xf32>
    %156 = math.tanh %155 : vector<8x128xf32>
    %157 = arith.mulf %156, %10 : vector<8x128xf32>
    %158 = arith.addf %157, %13 : vector<8x128xf32>
    %c96_i32_79 = arith.constant 96 : i32
    %159 = tpu.dynamic_rotate %158 by %c96_i32_79 dim 1 : vector<8x128xf32>, i32 -> vector<8x128xf32>
    %c64_i32_80 = arith.constant 64 : i32
    %160 = tpu.dynamic_rotate %158 by %c64_i32_80 dim 1 : vector<8x128xf32>, i32 -> vector<8x128xf32>
    %c32_i32_81 = arith.constant 32 : i32
    %161 = tpu.dynamic_rotate %158 by %c32_i32_81 dim 1 : vector<8x128xf32>, i32 -> vector<8x128xf32>
    %162 = arith.mulf %159, %125 : vector<8x128xf32>
    %163 = arith.mulf %158, %160 : vector<8x128xf32>
    %164 = arith.addf %162, %163 : vector<8x128xf32>
    %165 = math.tanh %164 : vector<8x128xf32>
    %166 = arith.mulf %161, %165 : vector<8x128xf32>
    %cst_82 = arith.constant 0.000000e+00 : f32
    %167 = vector.broadcast %cst_82 : f32 to vector<8x128xf32>
    %168 = arith.select %7, %166, %167 : vector<8x128xi1>, vector<8x128xf32>
    %169 = tpu.concatenate %168, %146 in 1 : vector<8x128xf32>, vector<8x128xf32> -> vector<8x256xf32>
    %c0_83 = arith.constant 0 : index
    %c0_84 = arith.constant 0 : index
    %170 = vector.load %arg7[%c0_83, %c0_84] : memref<256x128xf32, #tpu.memory_space<vmem>>, vector<256x128xf32>
    %cst_85 = arith.constant dense<0.000000e+00> : vector<8x128xf32>
    %171 = tpu.matmul %169, %170, %cst_85 {dimension_numbers = #tpu.dot_dimension_numbers<[1], [0], [0], [1], [0, 0, 1, 1], [], []>} : vector<8x256xf32>, vector<256x128xf32>, vector<8x128xf32> -> vector<8x128xf32>
    %172 = arith.addf %171, %16 : vector<8x128xf32>
    %173 = math.tanh %172 : vector<8x128xf32>
    %174 = arith.mulf %173, %10 : vector<8x128xf32>
    %175 = arith.addf %174, %13 : vector<8x128xf32>
    %c96_i32_86 = arith.constant 96 : i32
    %176 = tpu.dynamic_rotate %175 by %c96_i32_86 dim 1 : vector<8x128xf32>, i32 -> vector<8x128xf32>
    %c64_i32_87 = arith.constant 64 : i32
    %177 = tpu.dynamic_rotate %175 by %c64_i32_87 dim 1 : vector<8x128xf32>, i32 -> vector<8x128xf32>
    %c32_i32_88 = arith.constant 32 : i32
    %178 = tpu.dynamic_rotate %175 by %c32_i32_88 dim 1 : vector<8x128xf32>, i32 -> vector<8x128xf32>
    %179 = arith.mulf %176, %142 : vector<8x128xf32>
    %180 = arith.mulf %175, %177 : vector<8x128xf32>
    %181 = arith.addf %179, %180 : vector<8x128xf32>
    %182 = math.tanh %181 : vector<8x128xf32>
    %183 = arith.mulf %178, %182 : vector<8x128xf32>
    %cst_89 = arith.constant 0.000000e+00 : f32
    %184 = vector.broadcast %cst_89 : f32 to vector<8x128xf32>
    %185 = arith.select %7, %183, %184 : vector<8x128xi1>, vector<8x128xf32>
    %186 = arith.index_cast %150 : i32 to index
    %c0_90 = arith.constant 0 : index
    %187 = vector.load %arg9[%186, %c0_90] : memref<64x128xf32, #tpu.memory_space<vmem>>, vector<8x128xf32>
    tpu.vector_store %arg9[%186, %c0_90], %185 {strides = array<i32>} : memref<64x128xf32, #tpu.memory_space<vmem>>, vector<8x128xf32>,
    %c4_i32 = arith.constant 4 : i32
    %c8_i32_91 = arith.constant 8 : i32
    %188 = arith.muli %c4_i32, %c8_i32_91 : i32
    %189 = tpu.assume_multiple %188, 8 : i32
    %190 = arith.index_cast %189 : i32 to index
    %c0_92 = arith.constant 0 : index
    %191 = vector.load %arg12[%190, %c0_92] : memref<64x128xf32, #tpu.memory_space<vmem>>, vector<8x128xf32>
    %c0_93 = arith.constant 0 : index
    %c0_94 = arith.constant 0 : index
    %192 = vector.load %arg5[%c0_93, %c0_94] : memref<128x128xf32, #tpu.memory_space<vmem>>, vector<128x128xf32>
    %cst_95 = arith.constant dense<0.000000e+00> : vector<8x128xf32>
    %193 = tpu.matmul %168, %192, %cst_95 {dimension_numbers = #tpu.dot_dimension_numbers<[1], [0], [0], [1], [0, 0, 1, 1], [], []>} : vector<8x128xf32>, vector<128x128xf32>, vector<8x128xf32> -> vector<8x128xf32>
    %194 = arith.addf %191, %193 : vector<8x128xf32>
    %195 = math.tanh %194 : vector<8x128xf32>
    %196 = arith.mulf %195, %10 : vector<8x128xf32>
    %197 = arith.addf %196, %13 : vector<8x128xf32>
    %c96_i32_96 = arith.constant 96 : i32
    %198 = tpu.dynamic_rotate %197 by %c96_i32_96 dim 1 : vector<8x128xf32>, i32 -> vector<8x128xf32>
    %c64_i32_97 = arith.constant 64 : i32
    %199 = tpu.dynamic_rotate %197 by %c64_i32_97 dim 1 : vector<8x128xf32>, i32 -> vector<8x128xf32>
    %c32_i32_98 = arith.constant 32 : i32
    %200 = tpu.dynamic_rotate %197 by %c32_i32_98 dim 1 : vector<8x128xf32>, i32 -> vector<8x128xf32>
    %201 = arith.mulf %198, %164 : vector<8x128xf32>
    %202 = arith.mulf %197, %199 : vector<8x128xf32>
    %203 = arith.addf %201, %202 : vector<8x128xf32>
    %204 = math.tanh %203 : vector<8x128xf32>
    %205 = arith.mulf %200, %204 : vector<8x128xf32>
    %cst_99 = arith.constant 0.000000e+00 : f32
    %206 = vector.broadcast %cst_99 : f32 to vector<8x128xf32>
    %207 = arith.select %7, %205, %206 : vector<8x128xi1>, vector<8x128xf32>
    %208 = tpu.concatenate %207, %185 in 1 : vector<8x128xf32>, vector<8x128xf32> -> vector<8x256xf32>
    %c0_100 = arith.constant 0 : index
    %c0_101 = arith.constant 0 : index
    %209 = vector.load %arg7[%c0_100, %c0_101] : memref<256x128xf32, #tpu.memory_space<vmem>>, vector<256x128xf32>
    %cst_102 = arith.constant dense<0.000000e+00> : vector<8x128xf32>
    %210 = tpu.matmul %208, %209, %cst_102 {dimension_numbers = #tpu.dot_dimension_numbers<[1], [0], [0], [1], [0, 0, 1, 1], [], []>} : vector<8x256xf32>, vector<256x128xf32>, vector<8x128xf32> -> vector<8x128xf32>
    %211 = arith.addf %210, %16 : vector<8x128xf32>
    %212 = math.tanh %211 : vector<8x128xf32>
    %213 = arith.mulf %212, %10 : vector<8x128xf32>
    %214 = arith.addf %213, %13 : vector<8x128xf32>
    %c96_i32_103 = arith.constant 96 : i32
    %215 = tpu.dynamic_rotate %214 by %c96_i32_103 dim 1 : vector<8x128xf32>, i32 -> vector<8x128xf32>
    %c64_i32_104 = arith.constant 64 : i32
    %216 = tpu.dynamic_rotate %214 by %c64_i32_104 dim 1 : vector<8x128xf32>, i32 -> vector<8x128xf32>
    %c32_i32_105 = arith.constant 32 : i32
    %217 = tpu.dynamic_rotate %214 by %c32_i32_105 dim 1 : vector<8x128xf32>, i32 -> vector<8x128xf32>
    %218 = arith.mulf %215, %181 : vector<8x128xf32>
    %219 = arith.mulf %214, %216 : vector<8x128xf32>
    %220 = arith.addf %218, %219 : vector<8x128xf32>
    %221 = math.tanh %220 : vector<8x128xf32>
    %222 = arith.mulf %217, %221 : vector<8x128xf32>
    %cst_106 = arith.constant 0.000000e+00 : f32
    %223 = vector.broadcast %cst_106 : f32 to vector<8x128xf32>
    %224 = arith.select %7, %222, %223 : vector<8x128xi1>, vector<8x128xf32>
    %225 = arith.index_cast %189 : i32 to index
    %c0_107 = arith.constant 0 : index
    %226 = vector.load %arg9[%225, %c0_107] : memref<64x128xf32, #tpu.memory_space<vmem>>, vector<8x128xf32>
    tpu.vector_store %arg9[%225, %c0_107], %224 {strides = array<i32>} : memref<64x128xf32, #tpu.memory_space<vmem>>, vector<8x128xf32>,
    %c5_i32 = arith.constant 5 : i32
    %c8_i32_108 = arith.constant 8 : i32
    %227 = arith.muli %c5_i32, %c8_i32_108 : i32
    %228 = tpu.assume_multiple %227, 8 : i32
    %229 = arith.index_cast %228 : i32 to index
    %c0_109 = arith.constant 0 : index
    %230 = vector.load %arg12[%229, %c0_109] : memref<64x128xf32, #tpu.memory_space<vmem>>, vector<8x128xf32>
    %c0_110 = arith.constant 0 : index
    %c0_111 = arith.constant 0 : index
    %231 = vector.load %arg5[%c0_110, %c0_111] : memref<128x128xf32, #tpu.memory_space<vmem>>, vector<128x128xf32>
    %cst_112 = arith.constant dense<0.000000e+00> : vector<8x128xf32>
    %232 = tpu.matmul %207, %231, %cst_112 {dimension_numbers = #tpu.dot_dimension_numbers<[1], [0], [0], [1], [0, 0, 1, 1], [], []>} : vector<8x128xf32>, vector<128x128xf32>, vector<8x128xf32> -> vector<8x128xf32>
    %233 = arith.addf %230, %232 : vector<8x128xf32>
    %234 = math.tanh %233 : vector<8x128xf32>
    %235 = arith.mulf %234, %10 : vector<8x128xf32>
    %236 = arith.addf %235, %13 : vector<8x128xf32>
    %c96_i32_113 = arith.constant 96 : i32
    %237 = tpu.dynamic_rotate %236 by %c96_i32_113 dim 1 : vector<8x128xf32>, i32 -> vector<8x128xf32>
    %c64_i32_114 = arith.constant 64 : i32
    %238 = tpu.dynamic_rotate %236 by %c64_i32_114 dim 1 : vector<8x128xf32>, i32 -> vector<8x128xf32>
    %c32_i32_115 = arith.constant 32 : i32
    %239 = tpu.dynamic_rotate %236 by %c32_i32_115 dim 1 : vector<8x128xf32>, i32 -> vector<8x128xf32>
    %240 = arith.mulf %237, %203 : vector<8x128xf32>
    %241 = arith.mulf %236, %238 : vector<8x128xf32>
    %242 = arith.addf %240, %241 : vector<8x128xf32>
    %243 = math.tanh %242 : vector<8x128xf32>
    %244 = arith.mulf %239, %243 : vector<8x128xf32>
    %cst_116 = arith.constant 0.000000e+00 : f32
    %245 = vector.broadcast %cst_116 : f32 to vector<8x128xf32>
    %246 = arith.select %7, %244, %245 : vector<8x128xi1>, vector<8x128xf32>
    %247 = tpu.concatenate %246, %224 in 1 : vector<8x128xf32>, vector<8x128xf32> -> vector<8x256xf32>
    %c0_117 = arith.constant 0 : index
    %c0_118 = arith.constant 0 : index
    %248 = vector.load %arg7[%c0_117, %c0_118] : memref<256x128xf32, #tpu.memory_space<vmem>>, vector<256x128xf32>
    %cst_119 = arith.constant dense<0.000000e+00> : vector<8x128xf32>
    %249 = tpu.matmul %247, %248, %cst_119 {dimension_numbers = #tpu.dot_dimension_numbers<[1], [0], [0], [1], [0, 0, 1, 1], [], []>} : vector<8x256xf32>, vector<256x128xf32>, vector<8x128xf32> -> vector<8x128xf32>
    %250 = arith.addf %249, %16 : vector<8x128xf32>
    %251 = math.tanh %250 : vector<8x128xf32>
    %252 = arith.mulf %251, %10 : vector<8x128xf32>
    %253 = arith.addf %252, %13 : vector<8x128xf32>
    %c96_i32_120 = arith.constant 96 : i32
    %254 = tpu.dynamic_rotate %253 by %c96_i32_120 dim 1 : vector<8x128xf32>, i32 -> vector<8x128xf32>
    %c64_i32_121 = arith.constant 64 : i32
    %255 = tpu.dynamic_rotate %253 by %c64_i32_121 dim 1 : vector<8x128xf32>, i32 -> vector<8x128xf32>
    %c32_i32_122 = arith.constant 32 : i32
    %256 = tpu.dynamic_rotate %253 by %c32_i32_122 dim 1 : vector<8x128xf32>, i32 -> vector<8x128xf32>
    %257 = arith.mulf %254, %220 : vector<8x128xf32>
    %258 = arith.mulf %253, %255 : vector<8x128xf32>
    %259 = arith.addf %257, %258 : vector<8x128xf32>
    %260 = math.tanh %259 : vector<8x128xf32>
    %261 = arith.mulf %256, %260 : vector<8x128xf32>
    %cst_123 = arith.constant 0.000000e+00 : f32
    %262 = vector.broadcast %cst_123 : f32 to vector<8x128xf32>
    %263 = arith.select %7, %261, %262 : vector<8x128xi1>, vector<8x128xf32>
    %264 = arith.index_cast %228 : i32 to index
    %c0_124 = arith.constant 0 : index
    %265 = vector.load %arg9[%264, %c0_124] : memref<64x128xf32, #tpu.memory_space<vmem>>, vector<8x128xf32>
    tpu.vector_store %arg9[%264, %c0_124], %263 {strides = array<i32>} : memref<64x128xf32, #tpu.memory_space<vmem>>, vector<8x128xf32>,
    %c6_i32 = arith.constant 6 : i32
    %c8_i32_125 = arith.constant 8 : i32
    %266 = arith.muli %c6_i32, %c8_i32_125 : i32
    %267 = tpu.assume_multiple %266, 8 : i32
    %268 = arith.index_cast %267 : i32 to index
    %c0_126 = arith.constant 0 : index
    %269 = vector.load %arg12[%268, %c0_126] : memref<64x128xf32, #tpu.memory_space<vmem>>, vector<8x128xf32>
    %c0_127 = arith.constant 0 : index
    %c0_128 = arith.constant 0 : index
    %270 = vector.load %arg5[%c0_127, %c0_128] : memref<128x128xf32, #tpu.memory_space<vmem>>, vector<128x128xf32>
    %cst_129 = arith.constant dense<0.000000e+00> : vector<8x128xf32>
    %271 = tpu.matmul %246, %270, %cst_129 {dimension_numbers = #tpu.dot_dimension_numbers<[1], [0], [0], [1], [0, 0, 1, 1], [], []>} : vector<8x128xf32>, vector<128x128xf32>, vector<8x128xf32> -> vector<8x128xf32>
    %272 = arith.addf %269, %271 : vector<8x128xf32>
    %273 = math.tanh %272 : vector<8x128xf32>
    %274 = arith.mulf %273, %10 : vector<8x128xf32>
    %275 = arith.addf %274, %13 : vector<8x128xf32>
    %c96_i32_130 = arith.constant 96 : i32
    %276 = tpu.dynamic_rotate %275 by %c96_i32_130 dim 1 : vector<8x128xf32>, i32 -> vector<8x128xf32>
    %c64_i32_131 = arith.constant 64 : i32
    %277 = tpu.dynamic_rotate %275 by %c64_i32_131 dim 1 : vector<8x128xf32>, i32 -> vector<8x128xf32>
    %c32_i32_132 = arith.constant 32 : i32
    %278 = tpu.dynamic_rotate %275 by %c32_i32_132 dim 1 : vector<8x128xf32>, i32 -> vector<8x128xf32>
    %279 = arith.mulf %276, %242 : vector<8x128xf32>
    %280 = arith.mulf %275, %277 : vector<8x128xf32>
    %281 = arith.addf %279, %280 : vector<8x128xf32>
    %282 = math.tanh %281 : vector<8x128xf32>
    %283 = arith.mulf %278, %282 : vector<8x128xf32>
    %cst_133 = arith.constant 0.000000e+00 : f32
    %284 = vector.broadcast %cst_133 : f32 to vector<8x128xf32>
    %285 = arith.select %7, %283, %284 : vector<8x128xi1>, vector<8x128xf32>
    %286 = tpu.concatenate %285, %263 in 1 : vector<8x128xf32>, vector<8x128xf32> -> vector<8x256xf32>
    %c0_134 = arith.constant 0 : index
    %c0_135 = arith.constant 0 : index
    %287 = vector.load %arg7[%c0_134, %c0_135] : memref<256x128xf32, #tpu.memory_space<vmem>>, vector<256x128xf32>
    %cst_136 = arith.constant dense<0.000000e+00> : vector<8x128xf32>
    %288 = tpu.matmul %286, %287, %cst_136 {dimension_numbers = #tpu.dot_dimension_numbers<[1], [0], [0], [1], [0, 0, 1, 1], [], []>} : vector<8x256xf32>, vector<256x128xf32>, vector<8x128xf32> -> vector<8x128xf32>
    %289 = arith.addf %288, %16 : vector<8x128xf32>
    %290 = math.tanh %289 : vector<8x128xf32>
    %291 = arith.mulf %290, %10 : vector<8x128xf32>
    %292 = arith.addf %291, %13 : vector<8x128xf32>
    %c96_i32_137 = arith.constant 96 : i32
    %293 = tpu.dynamic_rotate %292 by %c96_i32_137 dim 1 : vector<8x128xf32>, i32 -> vector<8x128xf32>
    %c64_i32_138 = arith.constant 64 : i32
    %294 = tpu.dynamic_rotate %292 by %c64_i32_138 dim 1 : vector<8x128xf32>, i32 -> vector<8x128xf32>
    %c32_i32_139 = arith.constant 32 : i32
    %295 = tpu.dynamic_rotate %292 by %c32_i32_139 dim 1 : vector<8x128xf32>, i32 -> vector<8x128xf32>
    %296 = arith.mulf %293, %259 : vector<8x128xf32>
    %297 = arith.mulf %292, %294 : vector<8x128xf32>
    %298 = arith.addf %296, %297 : vector<8x128xf32>
    %299 = math.tanh %298 : vector<8x128xf32>
    %300 = arith.mulf %295, %299 : vector<8x128xf32>
    %cst_140 = arith.constant 0.000000e+00 : f32
    %301 = vector.broadcast %cst_140 : f32 to vector<8x128xf32>
    %302 = arith.select %7, %300, %301 : vector<8x128xi1>, vector<8x128xf32>
    %303 = arith.index_cast %267 : i32 to index
    %c0_141 = arith.constant 0 : index
    %304 = vector.load %arg9[%303, %c0_141] : memref<64x128xf32, #tpu.memory_space<vmem>>, vector<8x128xf32>
    tpu.vector_store %arg9[%303, %c0_141], %302 {strides = array<i32>} : memref<64x128xf32, #tpu.memory_space<vmem>>, vector<8x128xf32>,
    %c7_i32 = arith.constant 7 : i32
    %c8_i32_142 = arith.constant 8 : i32
    %305 = arith.muli %c7_i32, %c8_i32_142 : i32
    %306 = tpu.assume_multiple %305, 8 : i32
    %307 = arith.index_cast %306 : i32 to index
    %c0_143 = arith.constant 0 : index
    %308 = vector.load %arg12[%307, %c0_143] : memref<64x128xf32, #tpu.memory_space<vmem>>, vector<8x128xf32>
    %c0_144 = arith.constant 0 : index
    %c0_145 = arith.constant 0 : index
    %309 = vector.load %arg5[%c0_144, %c0_145] : memref<128x128xf32, #tpu.memory_space<vmem>>, vector<128x128xf32>
    %cst_146 = arith.constant dense<0.000000e+00> : vector<8x128xf32>
    %310 = tpu.matmul %285, %309, %cst_146 {dimension_numbers = #tpu.dot_dimension_numbers<[1], [0], [0], [1], [0, 0, 1, 1], [], []>} : vector<8x128xf32>, vector<128x128xf32>, vector<8x128xf32> -> vector<8x128xf32>
    %311 = arith.addf %308, %310 : vector<8x128xf32>
    %312 = math.tanh %311 : vector<8x128xf32>
    %313 = arith.mulf %312, %10 : vector<8x128xf32>
    %314 = arith.addf %313, %13 : vector<8x128xf32>
    %c96_i32_147 = arith.constant 96 : i32
    %315 = tpu.dynamic_rotate %314 by %c96_i32_147 dim 1 : vector<8x128xf32>, i32 -> vector<8x128xf32>
    %c64_i32_148 = arith.constant 64 : i32
    %316 = tpu.dynamic_rotate %314 by %c64_i32_148 dim 1 : vector<8x128xf32>, i32 -> vector<8x128xf32>
    %c32_i32_149 = arith.constant 32 : i32
    %317 = tpu.dynamic_rotate %314 by %c32_i32_149 dim 1 : vector<8x128xf32>, i32 -> vector<8x128xf32>
    %318 = arith.mulf %315, %281 : vector<8x128xf32>
    %319 = arith.mulf %314, %316 : vector<8x128xf32>
    %320 = arith.addf %318, %319 : vector<8x128xf32>
    %321 = math.tanh %320 : vector<8x128xf32>
    %322 = arith.mulf %317, %321 : vector<8x128xf32>
    %cst_150 = arith.constant 0.000000e+00 : f32
    %323 = vector.broadcast %cst_150 : f32 to vector<8x128xf32>
    %324 = arith.select %7, %322, %323 : vector<8x128xi1>, vector<8x128xf32>
    %325 = tpu.concatenate %324, %302 in 1 : vector<8x128xf32>, vector<8x128xf32> -> vector<8x256xf32>
    %c0_151 = arith.constant 0 : index
    %c0_152 = arith.constant 0 : index
    %326 = vector.load %arg7[%c0_151, %c0_152] : memref<256x128xf32, #tpu.memory_space<vmem>>, vector<256x128xf32>
    %cst_153 = arith.constant dense<0.000000e+00> : vector<8x128xf32>
    %327 = tpu.matmul %325, %326, %cst_153 {dimension_numbers = #tpu.dot_dimension_numbers<[1], [0], [0], [1], [0, 0, 1, 1], [], []>} : vector<8x256xf32>, vector<256x128xf32>, vector<8x128xf32> -> vector<8x128xf32>
    %328 = arith.addf %327, %16 : vector<8x128xf32>
    %329 = math.tanh %328 : vector<8x128xf32>
    %330 = arith.mulf %329, %10 : vector<8x128xf32>
    %331 = arith.addf %330, %13 : vector<8x128xf32>
    %c96_i32_154 = arith.constant 96 : i32
    %332 = tpu.dynamic_rotate %331 by %c96_i32_154 dim 1 : vector<8x128xf32>, i32 -> vector<8x128xf32>
    %c64_i32_155 = arith.constant 64 : i32
    %333 = tpu.dynamic_rotate %331 by %c64_i32_155 dim 1 : vector<8x128xf32>, i32 -> vector<8x128xf32>
    %c32_i32_156 = arith.constant 32 : i32
    %334 = tpu.dynamic_rotate %331 by %c32_i32_156 dim 1 : vector<8x128xf32>, i32 -> vector<8x128xf32>
    %335 = arith.mulf %332, %298 : vector<8x128xf32>
    %336 = arith.mulf %331, %333 : vector<8x128xf32>
    %337 = arith.addf %335, %336 : vector<8x128xf32>
    %338 = math.tanh %337 : vector<8x128xf32>
    %339 = arith.mulf %334, %338 : vector<8x128xf32>
    %cst_157 = arith.constant 0.000000e+00 : f32
    %340 = vector.broadcast %cst_157 : f32 to vector<8x128xf32>
    %341 = arith.select %7, %339, %340 : vector<8x128xi1>, vector<8x128xf32>
    %342 = arith.index_cast %306 : i32 to index
    %c0_158 = arith.constant 0 : index
    %343 = vector.load %arg9[%342, %c0_158] : memref<64x128xf32, #tpu.memory_space<vmem>>, vector<8x128xf32>
    tpu.vector_store %arg9[%342, %c0_158], %341 {strides = array<i32>} : memref<64x128xf32, #tpu.memory_space<vmem>>, vector<8x128xf32>,
    %c8_i32_159 = arith.constant 8 : i32
    %c0_160 = arith.constant 0 : index
    %c0_161 = arith.constant 0 : index
    %c0_162 = arith.constant 0 : index
    %344 = vector.load %arg10[%c0_160, %c0_161, %c0_162] : memref<2x8x128xf32, #tpu.memory_space<vmem>>, vector<1x8x128xf32>
    %345 = vector.shape_cast %344 : vector<1x8x128xf32> to vector<8x128xf32>
    %346 = vector.shape_cast %324 : vector<8x128xf32> to vector<1x8x128xf32>
    tpu.vector_store %arg10[%c0_160, %c0_161, %c0_162], %346 {strides = array<i32>} : memref<2x8x128xf32, #tpu.memory_space<vmem>>, vector<1x8x128xf32>,
    %c1_163 = arith.constant 1 : index
    %c0_164 = arith.constant 0 : index
    %c0_165 = arith.constant 0 : index
    %347 = vector.load %arg10[%c1_163, %c0_164, %c0_165] : memref<2x8x128xf32, #tpu.memory_space<vmem>>, vector<1x8x128xf32>
    %348 = vector.shape_cast %347 : vector<1x8x128xf32> to vector<8x128xf32>
    %349 = vector.shape_cast %341 : vector<8x128xf32> to vector<1x8x128xf32>
    tpu.vector_store %arg10[%c1_163, %c0_164, %c0_165], %349 {strides = array<i32>} : memref<2x8x128xf32, #tpu.memory_space<vmem>>, vector<1x8x128xf32>,
    %c0_166 = arith.constant 0 : index
    %c0_167 = arith.constant 0 : index
    %c0_168 = arith.constant 0 : index
    %350 = vector.load %arg11[%c0_166, %c0_167, %c0_168] : memref<2x8x128xf32, #tpu.memory_space<vmem>>, vector<1x8x128xf32>
    %351 = vector.shape_cast %350 : vector<1x8x128xf32> to vector<8x128xf32>
    %352 = vector.shape_cast %320 : vector<8x128xf32> to vector<1x8x128xf32>
    tpu.vector_store %arg11[%c0_166, %c0_167, %c0_168], %352 {strides = array<i32>} : memref<2x8x128xf32, #tpu.memory_space<vmem>>, vector<1x8x128xf32>,
    %c1_169 = arith.constant 1 : index
    %c0_170 = arith.constant 0 : index
    %c0_171 = arith.constant 0 : index
    %353 = vector.load %arg11[%c1_169, %c0_170, %c0_171] : memref<2x8x128xf32, #tpu.memory_space<vmem>>, vector<1x8x128xf32>
    %354 = vector.shape_cast %353 : vector<1x8x128xf32> to vector<8x128xf32>
    %355 = vector.shape_cast %337 : vector<8x128xf32> to vector<1x8x128xf32>
    tpu.vector_store %arg11[%c1_169, %c0_170, %c0_171], %355 {strides = array<i32>} : memref<2x8x128xf32, #tpu.memory_space<vmem>>, vector<1x8x128xf32>,
    return
  }
  func.func @transform_0(%arg0: i32) -> (i32, i32) {
    %c0_i32 = arith.constant 0 : i32
    %c0_i32_0 = arith.constant 0 : i32
    %c0_i32_1 = arith.constant 0 : i32
    return %c0_i32, %c0_i32_0 : i32, i32
  }
  func.func @transform_1(%arg0: i32) -> (i32, i32, i32) {
    %c0_i32 = arith.constant 0 : i32
    %c0_i32_0 = arith.constant 0 : i32
    %c0_i32_1 = arith.constant 0 : i32
    %c0_i32_2 = arith.constant 0 : i32
    return %c0_i32, %c0_i32_0, %c0_i32_1 : i32, i32, i32
  }
  func.func @transform_2(%arg0: i32) -> (i32, i32, i32) {
    %c0_i32 = arith.constant 0 : i32
    %c0_i32_0 = arith.constant 0 : i32
    %c0_i32_1 = arith.constant 0 : i32
    %c0_i32_2 = arith.constant 0 : i32
    return %c0_i32, %c0_i32_0, %c0_i32_1 : i32, i32, i32
  }
  func.func @transform_3(%arg0: i32) -> (i32, i32) {
    %c0_i32 = arith.constant 0 : i32
    %c0_i32_0 = arith.constant 0 : i32
    %c0_i32_1 = arith.constant 0 : i32
    return %c0_i32, %c0_i32_0 : i32, i32
  }
  func.func @transform_4(%arg0: i32) -> (i32, i32) {
    %c0_i32 = arith.constant 0 : i32
    %c0_i32_0 = arith.constant 0 : i32
    %c0_i32_1 = arith.constant 0 : i32
    return %c0_i32, %c0_i32_0 : i32, i32
  }
  func.func @transform_5(%arg0: i32) -> (i32, i32) {
    %c0_i32 = arith.constant 0 : i32
    %c0_i32_0 = arith.constant 0 : i32
    %c0_i32_1 = arith.constant 0 : i32
    return %c0_i32, %c0_i32_0 : i32, i32
  }
  func.func @transform_6(%arg0: i32) -> (i32, i32) {
    %c0_i32 = arith.constant 0 : i32
    %c0_i32_0 = arith.constant 0 : i32
    %c0_i32_1 = arith.constant 0 : i32
    return %c0_i32, %c0_i32_0 : i32, i32
  }
  func.func @transform_7(%arg0: i32) -> (i32, i32) {
    %c0_i32 = arith.constant 0 : i32
    %c0_i32_0 = arith.constant 0 : i32
    %c0_i32_1 = arith.constant 0 : i32
    return %c0_i32, %c0_i32_0 : i32, i32
  }
  func.func @transform_8(%arg0: i32) -> (i32, i32) {
    %c0_i32 = arith.constant 0 : i32
    %c0_i32_0 = arith.constant 0 : i32
    %c0_i32_1 = arith.constant 0 : i32
    return %c0_i32, %c0_i32_0 : i32, i32
  }
  func.func @transform_9(%arg0: i32) -> (i32, i32, i32) {
    %c0_i32 = arith.constant 0 : i32
    %c0_i32_0 = arith.constant 0 : i32
    %c0_i32_1 = arith.constant 0 : i32
    %c0_i32_2 = arith.constant 0 : i32
    return %c0_i32, %c0_i32_0, %c0_i32_1 : i32, i32, i32
  }
  func.func @transform_10(%arg0: i32) -> (i32, i32, i32) {
    %c0_i32 = arith.constant 0 : i32
    %c0_i32_0 = arith.constant 0 : i32
    %c0_i32_1 = arith.constant 0 : i32
    %c0_i32_2 = arith.constant 0 : i32
    return %c0_i32, %c0_i32_0, %c0_i32_1 : i32, i32, i32
  }
}

</mosaic_0001>

<llo_original>
// kernel: tpu_custom_call.1
$region0: #{tpu_custom_call.1}
  #allocation0 [shape = 'u32[]', space=smem, size = 0x4, offset = 0x4, fixed_abs, tag = 'smem constant byte address 0x4 - core index']
  #allocation1 [shape = 'u32[144,128]{1,0:T(1,128)}', space=vmem, size = 0x12000, scoped, tag = 'internal scratch']
  #allocation2 [shape = 'f32[64,128]{1,0:T(8,128)}', space=vmem, size = 0x8000, scoped, tag = 'scratch operand']
  %s0 = inlined_call_operand.vmem [shape: f32[64,36], index: 0, kind: input, shape index: {}]
  %s1 = inlined_call_operand.vmem [shape: f32[2,8,128], index: 1, kind: input, shape index: {}]
  %s2 = inlined_call_operand.vmem [shape: f32[2,8,128], index: 2, kind: input, shape index: {}]
  %s3 = inlined_call_operand.vmem [shape: f32[36,128], index: 3, kind: input, shape index: {}]
  %s4 = inlined_call_operand.hbm [shape: f32[128,128], index: 4, kind: input, shape index: {}]
  %s5 = inlined_call_operand.vmem [shape: f32[1,128], index: 5, kind: input, shape index: {}]
  %s6 = inlined_call_operand.hbm [shape: f32[256,128], index: 6, kind: input, shape index: {}]
  %s7 = inlined_call_operand.vmem [shape: f32[1,128], index: 7, kind: input, shape index: {}]
  %s8 = inlined_call_operand.hbm [shape: f32[64,128], index: 8, kind: output, shape index: {0}]
  %s9 = inlined_call_operand.hbm [shape: f32[2,8,128], index: 9, kind: output, shape index: {1}]
  %s10 = inlined_call_operand.hbm [shape: f32[2,8,128], index: 10, kind: output, shape index: {2}]
  %11 = xla_tuple %s8, %s9, %s10
  %s12 = sld [smem:[#allocation0]]
  $region66: #{tpu_custom_call.1} parent=0
    _
  %s14 = ssub.s32 1, %s12
  %s15 = scalar_select 0, %s14, %s12
  $region1: #{tpu_custom_call.1} parent=0
    #allocation3 [shape = 'u8[65536]{0}', space=vmem, size = 0x10000, scoped, tag = 'input window, operand 4, single buffered']
    #allocation4 [shape = 's32[1]{0}', space=sflag, size = 0x4, scoped, tag = 'scoped memory for tpu_custom_call.1']
    #allocation5 [shape = 's32[1]{0}', space=sflag, size = 0x4, scoped, tag = 'scoped memory for tpu_custom_call.1']
    #allocation6 [shape = 'u8[131072]{0}', space=vmem, size = 0x20000, scoped, tag = 'input window, operand 6, single buffered']
    #allocation7 [shape = 's32[1]{0}', space=sflag, size = 0x4, scoped, tag = 'scoped memory for tpu_custom_call.1']
    #allocation8 [shape = 'u8[32768]{0}', space=vmem, size = 0x8000, scoped, tag = 'output window, operand 0, single buffered']
    #allocation9 [shape = 'u8[8192]{0}', space=vmem, size = 0x2000, scoped, tag = 'output window, operand 1, single buffered']
    #allocation10 [shape = 's32[1]{0}', space=sflag, size = 0x4, scoped, tag = 'scoped memory for tpu_custom_call.1']
    #allocation11 [shape = 'u8[8192]{0}', space=vmem, size = 0x2000, scoped, tag = 'output window, operand 2, single buffered']
    %16 = vsyncpa [#allocation4], 0
    %17 = vsyncpa [#allocation7], 0
    %18 = vsyncpa [#allocation5], 0
    %19 = vsyncpa [#allocation10], 0
    // Predicated region
    $region2: #{tpu_custom_call.1} parent=1 // pred_check
      _
    $region3: #{tpu_custom_call.1} parent=1 // pred_check_branch
      %21 = sbr.rel (0) target = $region5
    $region4: #{tpu_custom_call.1} parent=1 // pred_region
      _
    $region5: #{tpu_custom_call.1} parent=1 // pred_fallthru
      _
    // Predicated region
    $region6: #{tpu_custom_call.1} parent=1 // pred_check
      _
    $region7: #{tpu_custom_call.1} parent=1 // pred_check_branch
      %23 = sbr.rel (0) target = $region9
    $region8: #{tpu_custom_call.1} parent=1 // pred_region
      _
    $region9: #{tpu_custom_call.1} parent=1 // pred_fallthru
      _
    // Predicated region
    $region10: #{tpu_custom_call.1} parent=1 // pred_check
      _
    $region11: #{tpu_custom_call.1} parent=1 // pred_check_branch
      %25 = sbr.rel (0) target = $region13
    $region12: #{tpu_custom_call.1} parent=1 // pred_region
      _
    $region13: #{tpu_custom_call.1} parent=1 // pred_fallthru
      _
    // Predicated region
    $region14: #{tpu_custom_call.1} parent=1 // pred_check
      _
    $region15: #{tpu_custom_call.1} parent=1 // pred_check_branch
      %27 = sbr.rel (0) target = $region17
    $region16: #{tpu_custom_call.1} parent=1 // pred_region
      _
    $region17: #{tpu_custom_call.1} parent=1 // pred_fallthru
      _
    // Predicated region
    $region18: #{tpu_custom_call.1} parent=1 // pred_check
      _
    $region19: #{tpu_custom_call.1} parent=1 // pred_check_branch
      %29 = sbr.rel (0) target = $region21
    $region20: #{tpu_custom_call.1} parent=1 // pred_region
      %s31 = ssub.s32 2048, 2048
      %32 = vsyncadd [#allocation4], %s31
      %s33 = sshll.u32 [#allocation3], 4
      %s34 = int_to_ptr.vmem [resolvable:$true] %s33
      %39 = dma.hbm_to_vmem [thread:$0]  %s4, 2048, %s34, [#allocation4], 128, 128, 8
    $region21: #{tpu_custom_call.1} parent=1 // pred_fallthru
      _
    // Predicated region
    $region22: #{tpu_custom_call.1} parent=1 // pred_check
      _
    $region23: #{tpu_custom_call.1} parent=1 // pred_check_branch
      %41 = sbr.rel (0) target = $region25
    $region24: #{tpu_custom_call.1} parent=1 // pred_region
      _
    $region25: #{tpu_custom_call.1} parent=1 // pred_fallthru
      _
    // Predicated region
    $region26: #{tpu_custom_call.1} parent=1 // pred_check
      _
    $region27: #{tpu_custom_call.1} parent=1 // pred_check_branch
      %43 = sbr.rel (0) target = $region29
    $region28: #{tpu_custom_call.1} parent=1 // pred_region
      %s45 = ssub.s32 4096, 4096
      %46 = vsyncadd [#allocation7], %s45
      %s47 = sshll.u32 [#allocation6], 4
      %s48 = int_to_ptr.vmem [resolvable:$true] %s47
      %53 = dma.hbm_to_vmem [thread:$0]  %s6, 4096, %s48, [#allocation7], 128, 128, 8
    $region29: #{tpu_custom_call.1} parent=1 // pred_fallthru
      _
    // Predicated region
    $region30: #{tpu_custom_call.1} parent=1 // pred_check
      _
    $region31: #{tpu_custom_call.1} parent=1 // pred_check_branch
      %55 = sbr.rel (0) target = $region33
    $region32: #{tpu_custom_call.1} parent=1 // pred_region
      _
    $region33: #{tpu_custom_call.1} parent=1 // pred_fallthru
      _
    // Predicated region
    $region34: #{tpu_custom_call.1} parent=1 // pred_check
      _
    $region35: #{tpu_custom_call.1} parent=1 // pred_check_branch
      %57 = sbr.rel (0) target = $region37
    $region36: #{tpu_custom_call.1} parent=1 // pred_region
      %58 = dma.done [#allocation4], 2048
    $region37: #{tpu_custom_call.1} parent=1 // pred_fallthru
      _
    // Predicated region
    $region38: #{tpu_custom_call.1} parent=1 // pred_check
      _
    $region39: #{tpu_custom_call.1} parent=1 // pred_check_branch
      %60 = sbr.rel (0) target = $region41
    $region40: #{tpu_custom_call.1} parent=1 // pred_region
      %61 = dma.done [#allocation7], 4096
    $region41: #{tpu_custom_call.1} parent=1 // pred_fallthru
      _
    %v62 = vlaneseq
    %v63 = vand.u32 %v62, 127
    %vm64 = vcmp.ge.s32.totalorder %v63, 64
    %vm65 = vcmp.lt.s32.totalorder %v63, 96
    %vm66 = vmand %vm64, %vm65
    %vm67 = vcmp.lt.s32.totalorder %v63, 32
    %v68 = vsel %vm66, 1.0, 0.5
    %v69 = vsel %vm66, 0.0, 0.5
    %v70 = vld [vmem:[%s7] sm:$0x1]
    %v72 = vlaneseq
    %v73 = vshrl.u32 %v72, 7
    %v74 = vsub.s32 0, %v73
    %v75 = vrot.slane %v70, %v74
    %v77 = vld [vmem:[%s0] sm:$0xff]
    %v78 = vld [vmem:[%s0 + $0x8] sm:$0xff]
    %v79 = vld [vmem:[%s0 + $0x10] sm:$0xff]
    %v80 = vld [vmem:[%s0 + $0x18] sm:$0xff]
    %v81 = vld [vmem:[%s0 + $0x20] sm:$0xff]
    %v82 = vld [vmem:[%s0 + $0x28] sm:$0xff]
    %v83 = vld [vmem:[%s0 + $0x30] sm:$0xff]
    %v84 = vld [vmem:[%s0 + $0x38] sm:$0xff]
    %v85 = vld [vmem:[%s3] sm:$0xff]
    %v86 = vld [vmem:[%s3 + $0x8] sm:$0xff]
    %v87 = vld [vmem:[%s3 + $0x10] sm:$0xff]
    %v88 = vld [vmem:[%s3 + $0x18] sm:$0xff]
    %v89 = vld [vmem:[%s3 + $0x20] sm:$0xf]
    %v90 = vld [vmem:[%s5] sm:$0x1]
    %v92 = vlaneseq
    %v93 = vshrl.u32 %v92, 7
    %v94 = vsub.s32 0, %v93
    %v95 = vrot.slane %v90, %v94
    %vm97 = vcmask 293888
    %v99 = vsel %vm97, %v77, 0
    %v102 = vsel %vm97, %v78, 0
    %v105 = vsel %vm97, %v79, 0
    %v108 = vsel %vm97, %v80, 0
    %v111 = vsel %vm97, %v81, 0
    %v114 = vsel %vm97, %v82, 0
    %v117 = vsel %vm97, %v83, 0
    %v120 = vsel %vm97, %v84, 0
    %vm122 = vcmask 1043456
    %v124 = vsel %vm122, %v89, 0
    %126 = vmatprep.subr.mxu0 0.0
    %127 = vmatpush1.msra.mxu0 0.0
    %128 = vmatprep.subr.mxu0 0.0
    %129 = vmatpush1.msra.mxu0 0.0
    %130 = vmatprep.subr.mxu0 0.0
    %131 = vmatpush1.msra.mxu0 0.0
    %132 = vmatprep.subr.mxu0 0.0
    %133 = vmatpush1.msra.mxu0 0.0
    %134 = vmatprep.subr.mxu0 0.0
    %135 = vmatpush1.msra.mxu0 0.0
    %136 = vmatprep.subr.mxu0 0.0
    %137 = vmatpush1.msra.mxu0 0.0
    %138 = vmatprep.subr.mxu0 0.0
    %139 = vmatpush1.msra.mxu0 0.0
    %140 = vmatprep.subr.mxu0 0.0
    %141 = vmatpush1.msra.mxu0 0.0
    %142 = vmatprep.subr.mxu0 0.0
    %143 = vmatpush1.msra.mxu0 0.0
    %144 = vmatprep.subr.mxu0 0.0
    %145 = vmatpush1.msra.mxu0 0.0
    %146 = vmatprep.subr.mxu0 0.0
    %147 = vmatpush1.msra.mxu0 0.0
    %148 = vmatprep.subr.mxu0 0.0
    %149 = vmatpush1.msra.mxu0 %v124
    %150 = vmatprep.subr.mxu0 0.0
    %151 = vmatpush1.msra.mxu0 %v88
    %152 = vmatprep.subr.mxu0 0.0
    %153 = vmatpush1.msra.mxu0 %v87
    %154 = vmatprep.subr.mxu0 0.0
    %155 = vmatpush1.msra.mxu0 %v86
    %156 = vmatprep.subr.mxu0 0.0
    %157 = vmatpush1.msra.mxu0 %v85
    %158 = vmatprep.subr.mxu0 0.0
    %159 = vmatpush2.msra.mxu0 0.0
    %160 = vmatprep.subr.mxu0 0.0
    %161 = vmatpush2.msra.mxu0 0.0
    %162 = vmatprep.subr.mxu0 0.0
    %163 = vmatpush2.msra.mxu0 0.0
    %164 = vmatprep.subr.mxu0 0.0
    %165 = vmatpush2.msra.mxu0 0.0
    %166 = vmatprep.subr.mxu0 0.0
    %167 = vmatpush2.msra.mxu0 0.0
    %168 = vmatprep.subr.mxu0 0.0
    %169 = vmatpush2.msra.mxu0 0.0
    %170 = vmatprep.subr.mxu0 0.0
    %171 = vmatpush2.msra.mxu0 0.0
    %172 = vmatprep.subr.mxu0 0.0
    %173 = vmatpush2.msra.mxu0 0.0
    %174 = vmatprep.subr.mxu0 0.0
    %175 = vmatpush2.msra.mxu0 0.0
    %176 = vmatprep.subr.mxu0 0.0
    %177 = vmatpush2.msra.mxu0 0.0
    %178 = vmatprep.subr.mxu0 0.0
    %179 = vmatpush2.msra.mxu0 0.0
    %180 = vmatprep.subr.mxu0 0.0
    %181 = vmatpush2.msra.mxu0 0.0
    %182 = vmatprep.subr.mxu0 0.0
    %183 = vmatpush2.msra.mxu0 0.0
    %184 = vmatprep.subr.mxu0 0.0
    %185 = vmatpush2.msra.mxu0 0.0
    %186 = vmatprep.subr.mxu0 0.0
    %187 = vmatpush2.msra.mxu0 0.0
    %188 = vmatprep.subr.mxu0 0.0
    %189 = vmatpush2.msra.mxu0 0.0
    %190 = vmatprep.mubr.f32.mxu0 0.0
    %191 = vmatmul.mubr.f32.gmra.mxu0 %v99
    %v192 = vpop.f32.mrf.mxu0
    %v193 = vadd.f32 %v95, %v192
    %v194 = vpop.f32.mrf.mxu0
    %195 = vmatprep.mubr.f32.mxu0 0.0
    %196 = vmatmul.mubr.f32.gmra.mxu0 %v102
    %v197 = vpop.f32.mrf.mxu0
    %v198 = vadd.f32 %v95, %v197
    %v199 = vpop.f32.mrf.mxu0
    %200 = vmatprep.mubr.f32.mxu0 0.0
    %201 = vmatmul.mubr.f32.gmra.mxu0 %v105
    %v202 = vpop.f32.mrf.mxu0
    %v203 = vadd.f32 %v95, %v202
    %v204 = vpop.f32.mrf.mxu0
    %205 = vmatprep.mubr.f32.mxu0 0.0
    %206 = vmatmul.mubr.f32.gmra.mxu0 %v108
    %v207 = vpop.f32.mrf.mxu0
    %v208 = vadd.f32 %v95, %v207
    %v209 = vpop.f32.mrf.mxu0
    %210 = vmatprep.mubr.f32.mxu0 0.0
    %211 = vmatmul.mubr.f32.gmra.mxu0 %v111
    %v212 = vpop.f32.mrf.mxu0
    %v213 = vadd.f32 %v95, %v212
    %v214 = vpop.f32.mrf.mxu0
    %215 = vmatprep.mubr.f32.mxu0 0.0
    %216 = vmatmul.mubr.f32.gmra.mxu0 %v114
    %v217 = vpop.f32.mrf.mxu0
    %v218 = vadd.f32 %v95, %v217
    %v219 = vpop.f32.mrf.mxu0
    %220 = vmatprep.mubr.f32.mxu0 0.0
    %221 = vmatmul.mubr.f32.gmra.mxu0 %v117
    %v222 = vpop.f32.mrf.mxu0
    %v223 = vadd.f32 %v95, %v222
    %v224 = vpop.f32.mrf.mxu0
    %225 = vmatprep.mubr.f32.mxu0 0.0
    %226 = vmatmul.mubr.f32.gmra.mxu0 %v120
    %v227 = vpop.f32.mrf.mxu0
    %v228 = vadd.f32 %v95, %v227
    %v229 = vpop.f32.mrf.mxu0
    %230 = vdwg.mxu0
    %231 = vst [vmem:[#allocation2] sm:$0xff] %v193
    %232 = vst [vmem:[#allocation2 + $0x8] sm:$0xff] %v198
    %233 = vst [vmem:[#allocation2 + $0x10] sm:$0xff] %v203
    %234 = vst [vmem:[#allocation2 + $0x18] sm:$0xff] %v208
    %235 = vst [vmem:[#allocation2 + $0x20] sm:$0xff] %v213
    %236 = vst [vmem:[#allocation2 + $0x28] sm:$0xff] %v218
    %237 = vst [vmem:[#allocation2 + $0x30] sm:$0xff] %v223
    %238 = vst [vmem:[#allocation2 + $0x38] sm:$0xff] %v228
    %v239 = vld [vmem:[%s1] sm:$0xff]
    %v240 = vld [vmem:[%s2] sm:$0xff]
    %s241 = scalar_lea.vmem %s1, 8
    %v242 = vld [vmem:[%s241] sm:$0xff]
    %s243 = scalar_lea.vmem %s2, 8
    %v244 = vld [vmem:[%s243] sm:$0xff]
    %v245 = vld [vmem:[#allocation2] sm:$0xff]
    %v246 = vld [vmem:[#allocation3] sm:$0xff]
    %v247 = vld [vmem:[#allocation3 + $0x8] sm:$0xff]
    %v248 = vld [vmem:[#allocation3 + $0x10] sm:$0xff]
    %v249 = vld [vmem:[#allocation3 + $0x18] sm:$0xff]
    %v250 = vld [vmem:[#allocation3 + $0x20] sm:$0xff]
    %v251 = vld [vmem:[#allocation3 + $0x28] sm:$0xff]
    %v252 = vld [vmem:[#allocation3 + $0x30] sm:$0xff]
    %v253 = vld [vmem:[#allocation3 + $0x38] sm:$0xff]
    %v254 = vld [vmem:[#allocation3 + $0x40] sm:$0xff]
    %v255 = vld [vmem:[#allocation3 + $0x48] sm:$0xff]
    %v256 = vld [vmem:[#allocation3 + $0x50] sm:$0xff]
    %v257 = vld [vmem:[#allocation3 + $0x58] sm:$0xff]
    %v258 = vld [vmem:[#allocation3 + $0x60] sm:$0xff]
    %v259 = vld [vmem:[#allocation3 + $0x68] sm:$0xff]
    %v260 = vld [vmem:[#allocation3 + $0x70] sm:$0xff]
    %v261 = vld [vmem:[#allocation3 + $0x78] sm:$0xff]
    %262 = vmatprep.subr.mxu0 0.0
    %263 = vmatpush1.msra.mxu0 %v261
    %264 = vmatprep.subr.mxu0 0.0
    %265 = vmatpush1.msra.mxu0 %v260
    %266 = vmatprep.subr.mxu0 0.0
    %267 = vmatpush1.msra.mxu0 %v259
    %268 = vmatprep.subr.mxu0 0.0
    %269 = vmatpush1.msra.mxu0 %v258
    %270 = vmatprep.subr.mxu0 0.0
    %271 = vmatpush1.msra.mxu0 %v257
    %272 = vmatprep.subr.mxu0 0.0
    %273 = vmatpush1.msra.mxu0 %v256
    %274 = vmatprep.subr.mxu0 0.0
    %275 = vmatpush1.msra.mxu0 %v255
    %276 = vmatprep.subr.mxu0 0.0
    %277 = vmatpush1.msra.mxu0 %v254
    %278 = vmatprep.subr.mxu0 0.0
    %279 = vmatpush1.msra.mxu0 %v253
    %280 = vmatprep.subr.mxu0 0.0
    %281 = vmatpush1.msra.mxu0 %v252
    %282 = vmatprep.subr.mxu0 0.0
    %283 = vmatpush1.msra.mxu0 %v251
    %284 = vmatprep.subr.mxu0 0.0
    %285 = vmatpush1.msra.mxu0 %v250
    %286 = vmatprep.subr.mxu0 0.0
    %287 = vmatpush1.msra.mxu0 %v249
    %288 = vmatprep.subr.mxu0 0.0
    %289 = vmatpush1.msra.mxu0 %v248
    %290 = vmatprep.subr.mxu0 0.0
    %291 = vmatpush1.msra.mxu0 %v247
    %292 = vmatprep.subr.mxu0 0.0
    %293 = vmatpush1.msra.mxu0 %v246
    %294 = vmatprep.subr.mxu0 0.0
    %295 = vmatpush2.msra.mxu0 0.0
    %296 = vmatprep.subr.mxu0 0.0
    %297 = vmatpush2.msra.mxu0 0.0
    %298 = vmatprep.subr.mxu0 0.0
    %299 = vmatpush2.msra.mxu0 0.0
    %300 = vmatprep.subr.mxu0 0.0
    %301 = vmatpush2.msra.mxu0 0.0
    %302 = vmatprep.subr.mxu0 0.0
    %303 = vmatpush2.msra.mxu0 0.0
    %304 = vmatprep.subr.mxu0 0.0
    %305 = vmatpush2.msra.mxu0 0.0
    %306 = vmatprep.subr.mxu0 0.0
    %307 = vmatpush2.msra.mxu0 0.0
    %308 = vmatprep.subr.mxu0 0.0
    %309 = vmatpush2.msra.mxu0 0.0
    %310 = vmatprep.subr.mxu0 0.0
    %311 = vmatpush2.msra.mxu0 0.0
    %312 = vmatprep.subr.mxu0 0.0
    %313 = vmatpush2.msra.mxu0 0.0
    %314 = vmatprep.subr.mxu0 0.0
    %315 = vmatpush2.msra.mxu0 0.0
    %316 = vmatprep.subr.mxu0 0.0
    %317 = vmatpush2.msra.mxu0 0.0
    %318 = vmatprep.subr.mxu0 0.0
    %319 = vmatpush2.msra.mxu0 0.0
    %320 = vmatprep.subr.mxu0 0.0
    %321 = vmatpush2.msra.mxu0 0.0
    %322 = vmatprep.subr.mxu0 0.0
    %323 = vmatpush2.msra.mxu0 0.0
    %324 = vmatprep.subr.mxu0 0.0
    %325 = vmatpush2.msra.mxu0 0.0
    %326 = vmatprep.mubr.f32.mxu0 0.0
    %327 = vmatmul.mubr.f32.gmra.mxu0 %v239
    %v328 = vpop.f32.mrf.mxu0
    %v329 = vadd.f32 0.0, %v328
    %v330 = vpop.f32.mrf.mxu0
    %331 = vdwg.mxu0
    %v332 = vadd.f32 %v245, %v329
    %v333 = vtanh.pop %v332
    %v334 = vmul.f32 %v333, %v68
    %v335 = vadd.f32 %v334, %v69
    %336 = vrot.lane.b32.xlu0 %v335, 96
    %v337 = vpop.permute.xlu0 %336
    %338 = vrot.lane.b32.xlu0 %v335, 64
    %v339 = vpop.permute.xlu0 %338
    %340 = vrot.lane.b32.xlu0 %v335, 32
    %v341 = vpop.permute.xlu0 %340
    %v342 = vmul.f32 %v337, %v240
    %v343 = vmul.f32 %v335, %v339
    %v344 = vadd.f32 %v342, %v343
    %v345 = vtanh.pop %v344
    %v346 = vmul.f32 %v341, %v345
    %v347 = vsel %vm67, %v346, 0.0
    %v348 = vld [vmem:[#allocation6] sm:$0xff]
    %v349 = vld [vmem:[#allocation6 + $0x8] sm:$0xff]
    %v350 = vld [vmem:[#allocation6 + $0x10] sm:$0xff]
    %v351 = vld [vmem:[#allocation6 + $0x18] sm:$0xff]
    %v352 = vld [vmem:[#allocation6 + $0x20] sm:$0xff]
    %v353 = vld [vmem:[#allocation6 + $0x28] sm:$0xff]
    %v354 = vld [vmem:[#allocation6 + $0x30] sm:$0xff]
    %v355 = vld [vmem:[#allocation6 + $0x38] sm:$0xff]
    %v356 = vld [vmem:[#allocation6 + $0x40] sm:$0xff]
    %v357 = vld [vmem:[#allocation6 + $0x48] sm:$0xff]
    %v358 = vld [vmem:[#allocation6 + $0x50] sm:$0xff]
    %v359 = vld [vmem:[#allocation6 + $0x58] sm:$0xff]
    %v360 = vld [vmem:[#allocation6 + $0x60] sm:$0xff]
    %v361 = vld [vmem:[#allocation6 + $0x68] sm:$0xff]
    %v362 = vld [vmem:[#allocation6 + $0x70] sm:$0xff]
    %v363 = vld [vmem:[#allocation6 + $0x78] sm:$0xff]
    %v364 = vld [vmem:[#allocation6 + $0x80] sm:$0xff]
    %v365 = vld [vmem:[#allocation6 + $0x88] sm:$0xff]
    %v366 = vld [vmem:[#allocation6 + $0x90] sm:$0xff]
    %v367 = vld [vmem:[#allocation6 + $0x98] sm:$0xff]
    %v368 = vld [vmem:[#allocation6 + $0xa0] sm:$0xff]
    %v369 = vld [vmem:[#allocation6 + $0xa8] sm:$0xff]
    %v370 = vld [vmem:[#allocation6 + $0xb0] sm:$0xff]
    %v371 = vld [vmem:[#allocation6 + $0xb8] sm:$0xff]
    %v372 = vld [vmem:[#allocation6 + $0xc0] sm:$0xff]
    %v373 = vld [vmem:[#allocation6 + $0xc8] sm:$0xff]
    %v374 = vld [vmem:[#allocation6 + $0xd0] sm:$0xff]
    %v375 = vld [vmem:[#allocation6 + $0xd8] sm:$0xff]
    %v376 = vld [vmem:[#allocation6 + $0xe0] sm:$0xff]
    %v377 = vld [vmem:[#allocation6 + $0xe8] sm:$0xff]
    %v378 = vld [vmem:[#allocation6 + $0xf0] sm:$0xff]
    %v379 = vld [vmem:[#allocation6 + $0xf8] sm:$0xff]
    %380 = vmatprep.subr.mxu0 0.0
    %381 = vmatpush1.msra.mxu0 %v363
    %382 = vmatprep.subr.mxu0 0.0
    %383 = vmatpush1.msra.mxu0 %v362
    %384 = vmatprep.subr.mxu0 0.0
    %385 = vmatpush1.msra.mxu0 %v361
    %386 = vmatprep.subr.mxu0 0.0
    %387 = vmatpush1.msra.mxu0 %v360
    %388 = vmatprep.subr.mxu0 0.0
    %389 = vmatpush1.msra.mxu0 %v359
    %390 = vmatprep.subr.mxu0 0.0
    %391 = vmatpush1.msra.mxu0 %v358
    %392 = vmatprep.subr.mxu0 0.0
    %393 = vmatpush1.msra.mxu0 %v357
    %394 = vmatprep.subr.mxu0 0.0
    %395 = vmatpush1.msra.mxu0 %v356
    %396 = vmatprep.subr.mxu0 0.0
    %397 = vmatpush1.msra.mxu0 %v355
    %398 = vmatprep.subr.mxu0 0.0
    %399 = vmatpush1.msra.mxu0 %v354
    %400 = vmatprep.subr.mxu0 0.0
    %401 = vmatpush1.msra.mxu0 %v353
    %402 = vmatprep.subr.mxu0 0.0
    %403 = vmatpush1.msra.mxu0 %v352
    %404 = vmatprep.subr.mxu0 0.0
    %405 = vmatpush1.msra.mxu0 %v351
    %406 = vmatprep.subr.mxu0 0.0
    %407 = vmatpush1.msra.mxu0 %v350
    %408 = vmatprep.subr.mxu0 0.0
    %409 = vmatpush1.msra.mxu0 %v349
    %410 = vmatprep.subr.mxu0 0.0
    %411 = vmatpush1.msra.mxu0 %v348
    %412 = vmatprep.subr.mxu0 0.0
    %413 = vmatpush2.msra.mxu0 %v379
    %414 = vmatprep.subr.mxu0 0.0
    %415 = vmatpush2.msra.mxu0 %v378
    %416 = vmatprep.subr.mxu0 0.0
    %417 = vmatpush2.msra.mxu0 %v377
    %418 = vmatprep.subr.mxu0 0.0
    %419 = vmatpush2.msra.mxu0 %v376
    %420 = vmatprep.subr.mxu0 0.0
    %421 = vmatpush2.msra.mxu0 %v375
    %422 = vmatprep.subr.mxu0 0.0
    %423 = vmatpush2.msra.mxu0 %v374
    %424 = vmatprep.subr.mxu0 0.0
    %425 = vmatpush2.msra.mxu0 %v373
    %426 = vmatprep.subr.mxu0 0.0
    %427 = vmatpush2.msra.mxu0 %v372
    %428 = vmatprep.subr.mxu0 0.0
    %429 = vmatpush2.msra.mxu0 %v371
    %430 = vmatprep.subr.mxu0 0.0
    %431 = vmatpush2.msra.mxu0 %v370
    %432 = vmatprep.subr.mxu0 0.0
    %433 = vmatpush2.msra.mxu0 %v369
    %434 = vmatprep.subr.mxu0 0.0
    %435 = vmatpush2.msra.mxu0 %v368
    %436 = vmatprep.subr.mxu0 0.0
    %437 = vmatpush2.msra.mxu0 %v367
    %438 = vmatprep.subr.mxu0 0.0
    %439 = vmatpush2.msra.mxu0 %v366
    %440 = vmatprep.subr.mxu0 0.0
    %441 = vmatpush2.msra.mxu0 %v365
    %442 = vmatprep.subr.mxu0 0.0
    %443 = vmatpush2.msra.mxu0 %v364
    %444 = vmatprep.mubr.f32.mxu0 %v242
    %445 = vmatmul.mubr.f32.gmra.mxu0 %v347
    %v446 = vpop.f32.mrf.mxu0
    %v447 = vadd.f32 %v75, %v446
    %v448 = vpop.f32.mrf.mxu0
    %449 = vdwg.mxu0
    %v450 = vtanh.pop %v447
    %v451 = vmul.f32 %v450, %v68
    %v452 = vadd.f32 %v451, %v69
    %453 = vrot.lane.b32.xlu0 %v452, 96
    %v454 = vpop.permute.xlu0 %453
    %455 = vrot.lane.b32.xlu0 %v452, 64
    %v456 = vpop.permute.xlu0 %455
    %457 = vrot.lane.b32.xlu0 %v452, 32
    %v458 = vpop.permute.xlu0 %457
    %v459 = vmul.f32 %v454, %v244
    %v460 = vmul.f32 %v452, %v456
    %v461 = vadd.f32 %v459, %v460
    %v462 = vtanh.pop %v461
    %v463 = vmul.f32 %v458, %v462
    %v464 = vsel %vm67, %v463, 0.0
    %465 = vst [vmem:[#allocation8] sm:$0xff] %v464
    %s466 = scalar_lea.vmem [#allocation2], 8
    %v467 = vld [vmem:[%s466] sm:$0xff]
    %v468 = vld [vmem:[#allocation3] sm:$0xff]
    %v469 = vld [vmem:[#allocation3 + $0x8] sm:$0xff]
    %v470 = vld [vmem:[#allocation3 + $0x10] sm:$0xff]
    %v471 = vld [vmem:[#allocation3 + $0x18] sm:$0xff]
    %v472 = vld [vmem:[#allocation3 + $0x20] sm:$0xff]
    %v473 = vld [vmem:[#allocation3 + $0x28] sm:$0xff]
    %v474 = vld [vmem:[#allocation3 + $0x30] sm:$0xff]
    %v475 = vld [vmem:[#allocation3 + $0x38] sm:$0xff]
    %v476 = vld [vmem:[#allocation3 + $0x40] sm:$0xff]
    %v477 = vld [vmem:[#allocation3 + $0x48] sm:$0xff]
    %v478 = vld [vmem:[#allocation3 + $0x50] sm:$0xff]
    %v479 = vld [vmem:[#allocation3 + $0x58] sm:$0xff]
    %v480 = vld [vmem:[#allocation3 + $0x60] sm:$0xff]
    %v481 = vld [vmem:[#allocation3 + $0x68] sm:$0xff]
    %v482 = vld [vmem:[#allocation3 + $0x70] sm:$0xff]
    %v483 = vld [vmem:[#allocation3 + $0x78] sm:$0xff]
    %484 = vmatprep.subr.mxu0 0.0
    %485 = vmatpush1.msra.mxu0 %v483
    %486 = vmatprep.subr.mxu0 0.0
    %487 = vmatpush1.msra.mxu0 %v482
    %488 = vmatprep.subr.mxu0 0.0
    %489 = vmatpush1.msra.mxu0 %v481
    %490 = vmatprep.subr.mxu0 0.0
    %491 = vmatpush1.msra.mxu0 %v480
    %492 = vmatprep.subr.mxu0 0.0
    %493 = vmatpush1.msra.mxu0 %v479
    %494 = vmatprep.subr.mxu0 0.0
    %495 = vmatpush1.msra.mxu0 %v478
    %496 = vmatprep.subr.mxu0 0.0
    %497 = vmatpush1.msra.mxu0 %v477
    %498 = vmatprep.subr.mxu0 0.0
    %499 = vmatpush1.msra.mxu0 %v476
    %500 = vmatprep.subr.mxu0 0.0
    %501 = vmatpush1.msra.mxu0 %v475
    %502 = vmatprep.subr.mxu0 0.0
    %503 = vmatpush1.msra.mxu0 %v474
    %504 = vmatprep.subr.mxu0 0.0
    %505 = vmatpush1.msra.mxu0 %v473
    %506 = vmatprep.subr.mxu0 0.0
    %507 = vmatpush1.msra.mxu0 %v472
    %508 = vmatprep.subr.mxu0 0.0
    %509 = vmatpush1.msra.mxu0 %v471
    %510 = vmatprep.subr.mxu0 0.0
    %511 = vmatpush1.msra.mxu0 %v470
    %512 = vmatprep.subr.mxu0 0.0
    %513 = vmatpush1.msra.mxu0 %v469
    %514 = vmatprep.subr.mxu0 0.0
    %515 = vmatpush1.msra.mxu0 %v468
    %516 = vmatprep.subr.mxu0 0.0
    %517 = vmatpush2.msra.mxu0 0.0
    %518 = vmatprep.subr.mxu0 0.0
    %519 = vmatpush2.msra.mxu0 0.0
    %520 = vmatprep.subr.mxu0 0.0
    %521 = vmatpush2.msra.mxu0 0.0
    %522 = vmatprep.subr.mxu0 0.0
    %523 = vmatpush2.msra.mxu0 0.0
    %524 = vmatprep.subr.mxu0 0.0
    %525 = vmatpush2.msra.mxu0 0.0
    %526 = vmatprep.subr.mxu0 0.0
    %527 = vmatpush2.msra.mxu0 0.0
    %528 = vmatprep.subr.mxu0 0.0
    %529 = vmatpush2.msra.mxu0 0.0
    %530 = vmatprep.subr.mxu0 0.0
    %531 = vmatpush2.msra.mxu0 0.0
    %532 = vmatprep.subr.mxu0 0.0
    %533 = vmatpush2.msra.mxu0 0.0
    %534 = vmatprep.subr.mxu0 0.0
    %535 = vmatpush2.msra.mxu0 0.0
    %536 = vmatprep.subr.mxu0 0.0
    %537 = vmatpush2.msra.mxu0 0.0
    %538 = vmatprep.subr.mxu0 0.0
    %539 = vmatpush2.msra.mxu0 0.0
    %540 = vmatprep.subr.mxu0 0.0
    %541 = vmatpush2.msra.mxu0 0.0
    %542 = vmatprep.subr.mxu0 0.0
    %543 = vmatpush2.msra.mxu0 0.0
    %544 = vmatprep.subr.mxu0 0.0
    %545 = vmatpush2.msra.mxu0 0.0
    %546 = vmatprep.subr.mxu0 0.0
    %547 = vmatpush2.msra.mxu0 0.0
    %548 = vmatprep.mubr.f32.mxu0 0.0
    %549 = vmatmul.mubr.f32.gmra.mxu0 %v347
    %v550 = vpop.f32.mrf.mxu0
    %v551 = vadd.f32 0.0, %v550
    %v552 = vpop.f32.mrf.mxu0
    %553 = vdwg.mxu0
    %v554 = vadd.f32 %v467, %v551
    %v555 = vtanh.pop %v554
    %v556 = vmul.f32 %v555, %v68
    %v557 = vadd.f32 %v556, %v69
    %558 = vrot.lane.b32.xlu0 %v557, 96
    %v559 = vpop.permute.xlu0 %558
    %560 = vrot.lane.b32.xlu0 %v557, 64
    %v561 = vpop.permute.xlu0 %560
    %562 = vrot.lane.b32.xlu0 %v557, 32
    %v563 = vpop.permute.xlu0 %562
    %v564 = vmul.f32 %v559, %v344
    %v565 = vmul.f32 %v557, %v561
    %v566 = vadd.f32 %v564, %v565
    %v567 = vtanh.pop %v566
    %v568 = vmul.f32 %v563, %v567
    %v569 = vsel %vm67, %v568, 0.0
    %v570 = vld [vmem:[#allocation6] sm:$0xff]
    %v571 = vld [vmem:[#allocation6 + $0x8] sm:$0xff]
    %v572 = vld [vmem:[#allocation6 + $0x10] sm:$0xff]
    %v573 = vld [vmem:[#allocation6 + $0x18] sm:$0xff]
    %v574 = vld [vmem:[#allocation6 + $0x20] sm:$0xff]
    %v575 = vld [vmem:[#allocation6 + $0x28] sm:$0xff]
    %v576 = vld [vmem:[#allocation6 + $0x30] sm:$0xff]
    %v577 = vld [vmem:[#allocation6 + $0x38] sm:$0xff]
    %v578 = vld [vmem:[#allocation6 + $0x40] sm:$0xff]
    %v579 = vld [vmem:[#allocation6 + $0x48] sm:$0xff]
    %v580 = vld [vmem:[#allocation6 + $0x50] sm:$0xff]
    %v581 = vld [vmem:[#allocation6 + $0x58] sm:$0xff]
    %v582 = vld [vmem:[#allocation6 + $0x60] sm:$0xff]
    %v583 = vld [vmem:[#allocation6 + $0x68] sm:$0xff]
    %v584 = vld [vmem:[#allocation6 + $0x70] sm:$0xff]
    %v585 = vld [vmem:[#allocation6 + $0x78] sm:$0xff]
    %v586 = vld [vmem:[#allocation6 + $0x80] sm:$0xff]
    %v587 = vld [vmem:[#allocation6 + $0x88] sm:$0xff]
    %v588 = vld [vmem:[#allocation6 + $0x90] sm:$0xff]
    %v589 = vld [vmem:[#allocation6 + $0x98] sm:$0xff]
    %v590 = vld [vmem:[#allocation6 + $0xa0] sm:$0xff]
    %v591 = vld [vmem:[#allocation6 + $0xa8] sm:$0xff]
    %v592 = vld [vmem:[#allocation6 + $0xb0] sm:$0xff]
    %v593 = vld [vmem:[#allocation6 + $0xb8] sm:$0xff]
    %v594 = vld [vmem:[#allocation6 + $0xc0] sm:$0xff]
    %v595 = vld [vmem:[#allocation6 + $0xc8] sm:$0xff]
    %v596 = vld [vmem:[#allocation6 + $0xd0] sm:$0xff]
    %v597 = vld [vmem:[#allocation6 + $0xd8] sm:$0xff]
    %v598 = vld [vmem:[#allocation6 + $0xe0] sm:$0xff]
    %v599 = vld [vmem:[#allocation6 + $0xe8] sm:$0xff]
    %v600 = vld [vmem:[#allocation6 + $0xf0] sm:$0xff]
    %v601 = vld [vmem:[#allocation6 + $0xf8] sm:$0xff]
    %602 = vmatprep.subr.mxu0 0.0
    %603 = vmatpush1.msra.mxu0 %v585
    %604 = vmatprep.subr.mxu0 0.0
    %605 = vmatpush1.msra.mxu0 %v584
    %606 = vmatprep.subr.mxu0 0.0
    %607 = vmatpush1.msra.mxu0 %v583
    %608 = vmatprep.subr.mxu0 0.0
    %609 = vmatpush1.msra.mxu0 %v582
    %610 = vmatprep.subr.mxu0 0.0
    %611 = vmatpush1.msra.mxu0 %v581
    %612 = vmatprep.subr.mxu0 0.0
    %613 = vmatpush1.msra.mxu0 %v580
    %614 = vmatprep.subr.mxu0 0.0
    %615 = vmatpush1.msra.mxu0 %v579
    %616 = vmatprep.subr.mxu0 0.0
    %617 = vmatpush1.msra.mxu0 %v578
    %618 = vmatprep.subr.mxu0 0.0
    %619 = vmatpush1.msra.mxu0 %v577
    %620 = vmatprep.subr.mxu0 0.0
    %621 = vmatpush1.msra.mxu0 %v576
    %622 = vmatprep.subr.mxu0 0.0
    %623 = vmatpush1.msra.mxu0 %v575
    %624 = vmatprep.subr.mxu0 0.0
    %625 = vmatpush1.msra.mxu0 %v574
    %626 = vmatprep.subr.mxu0 0.0
    %627 = vmatpush1.msra.mxu0 %v573
    %628 = vmatprep.subr.mxu0 0.0
    %629 = vmatpush1.msra.mxu0 %v572
    %630 = vmatprep.subr.mxu0 0.0
    %631 = vmatpush1.msra.mxu0 %v571
    %632 = vmatprep.subr.mxu0 0.0
    %633 = vmatpush1.msra.mxu0 %v570
    %634 = vmatprep.subr.mxu0 0.0
    %635 = vmatpush2.msra.mxu0 %v601
    %636 = vmatprep.subr.mxu0 0.0
    %637 = vmatpush2.msra.mxu0 %v600
    %638 = vmatprep.subr.mxu0 0.0
    %639 = vmatpush2.msra.mxu0 %v599
    %640 = vmatprep.subr.mxu0 0.0
    %641 = vmatpush2.msra.mxu0 %v598
    %642 = vmatprep.subr.mxu0 0.0
    %643 = vmatpush2.msra.mxu0 %v597
    %644 = vmatprep.subr.mxu0 0.0
    %645 = vmatpush2.msra.mxu0 %v596
    %646 = vmatprep.subr.mxu0 0.0
    %647 = vmatpush2.msra.mxu0 %v595
    %648 = vmatprep.subr.mxu0 0.0
    %649 = vmatpush2.msra.mxu0 %v594
    %650 = vmatprep.subr.mxu0 0.0
    %651 = vmatpush2.msra.mxu0 %v593
    %652 = vmatprep.subr.mxu0 0.0
    %653 = vmatpush2.msra.mxu0 %v592
    %654 = vmatprep.subr.mxu0 0.0
    %655 = vmatpush2.msra.mxu0 %v591
    %656 = vmatprep.subr.mxu0 0.0
    %657 = vmatpush2.msra.mxu0 %v590
    %658 = vmatprep.subr.mxu0 0.0
    %659 = vmatpush2.msra.mxu0 %v589
    %660 = vmatprep.subr.mxu0 0.0
    %661 = vmatpush2.msra.mxu0 %v588
    %662 = vmatprep.subr.mxu0 0.0
    %663 = vmatpush2.msra.mxu0 %v587
    %664 = vmatprep.subr.mxu0 0.0
    %665 = vmatpush2.msra.mxu0 %v586
    %666 = vmatprep.mubr.f32.mxu0 %v464
    %667 = vmatmul.mubr.f32.gmra.mxu0 %v569
    %v668 = vpop.f32.mrf.mxu0
    %v669 = vadd.f32 %v75, %v668
    %v670 = vpop.f32.mrf.mxu0
    %671 = vdwg.mxu0
    %v672 = vtanh.pop %v669
    %v673 = vmul.f32 %v672, %v68
    %v674 = vadd.f32 %v673, %v69
    %675 = vrot.lane.b32.xlu0 %v674, 96
    %v676 = vpop.permute.xlu0 %675
    %677 = vrot.lane.b32.xlu0 %v674, 64
    %v678 = vpop.permute.xlu0 %677
    %679 = vrot.lane.b32.xlu0 %v674, 32
    %v680 = vpop.permute.xlu0 %679
    %v681 = vmul.f32 %v676, %v461
    %v682 = vmul.f32 %v674, %v678
    %v683 = vadd.f32 %v681, %v682
    %v684 = vtanh.pop %v683
    %v685 = vmul.f32 %v680, %v684
    %v686 = vsel %vm67, %v685, 0.0
    %s687 = scalar_lea.vmem [#allocation8], 8
    %688 = vst [vmem:[%s687] sm:$0xff] %v686
    %s689 = scalar_lea.vmem [#allocation2], 16
    %v690 = vld [vmem:[%s689] sm:$0xff]
    %v691 = vld [vmem:[#allocation3] sm:$0xff]
    %v692 = vld [vmem:[#allocation3 + $0x8] sm:$0xff]
    %v693 = vld [vmem:[#allocation3 + $0x10] sm:$0xff]
    %v694 = vld [vmem:[#allocation3 + $0x18] sm:$0xff]
    %v695 = vld [vmem:[#allocation3 + $0x20] sm:$0xff]
    %v696 = vld [vmem:[#allocation3 + $0x28] sm:$0xff]
    %v697 = vld [vmem:[#allocation3 + $0x30] sm:$0xff]
    %v698 = vld [vmem:[#allocation3 + $0x38] sm:$0xff]
    %v699 = vld [vmem:[#allocation3 + $0x40] sm:$0xff]
    %v700 = vld [vmem:[#allocation3 + $0x48] sm:$0xff]
    %v701 = vld [vmem:[#allocation3 + $0x50] sm:$0xff]
    %v702 = vld [vmem:[#allocation3 + $0x58] sm:$0xff]
    %v703 = vld [vmem:[#allocation3 + $0x60] sm:$0xff]
    %v704 = vld [vmem:[#allocation3 + $0x68] sm:$0xff]
    %v705 = vld [vmem:[#allocation3 + $0x70] sm:$0xff]
    %v706 = vld [vmem:[#allocation3 + $0x78] sm:$0xff]
    %707 = vmatprep.subr.mxu0 0.0
    %708 = vmatpush1.msra.mxu0 %v706
    %709 = vmatprep.subr.mxu0 0.0
    %710 = vmatpush1.msra.mxu0 %v705
    %711 = vmatprep.subr.mxu0 0.0
    %712 = vmatpush1.msra.mxu0 %v704
    %713 = vmatprep.subr.mxu0 0.0
    %714 = vmatpush1.msra.mxu0 %v703
    %715 = vmatprep.subr.mxu0 0.0
    %716 = vmatpush1.msra.mxu0 %v702
    %717 = vmatprep.subr.mxu0 0.0
    %718 = vmatpush1.msra.mxu0 %v701
    %719 = vmatprep.subr.mxu0 0.0
    %720 = vmatpush1.msra.mxu0 %v700
    %721 = vmatprep.subr.mxu0 0.0
    %722 = vmatpush1.msra.mxu0 %v699
    %723 = vmatprep.subr.mxu0 0.0
    %724 = vmatpush1.msra.mxu0 %v698
    %725 = vmatprep.subr.mxu0 0.0
    %726 = vmatpush1.msra.mxu0 %v697
    %727 = vmatprep.subr.mxu0 0.0
    %728 = vmatpush1.msra.mxu0 %v696
    %729 = vmatprep.subr.mxu0 0.0
    %730 = vmatpush1.msra.mxu0 %v695
    %731 = vmatprep.subr.mxu0 0.0
    %732 = vmatpush1.msra.mxu0 %v694
    %733 = vmatprep.subr.mxu0 0.0
    %734 = vmatpush1.msra.mxu0 %v693
    %735 = vmatprep.subr.mxu0 0.0
    %736 = vmatpush1.msra.mxu0 %v692
    %737 = vmatprep.subr.mxu0 0.0
    %738 = vmatpush1.msra.mxu0 %v691
    %739 = vmatprep.subr.mxu0 0.0
    %740 = vmatpush2.msra.mxu0 0.0
    %741 = vmatprep.subr.mxu0 0.0
    %742 = vmatpush2.msra.mxu0 0.0
    %743 = vmatprep.subr.mxu0 0.0
    %744 = vmatpush2.msra.mxu0 0.0
    %745 = vmatprep.subr.mxu0 0.0
    %746 = vmatpush2.msra.mxu0 0.0
    %747 = vmatprep.subr.mxu0 0.0
    %748 = vmatpush2.msra.mxu0 0.0
    %749 = vmatprep.subr.mxu0 0.0
    %750 = vmatpush2.msra.mxu0 0.0
    %751 = vmatprep.subr.mxu0 0.0
    %752 = vmatpush2.msra.mxu0 0.0
    %753 = vmatprep.subr.mxu0 0.0
    %754 = vmatpush2.msra.mxu0 0.0
    %755 = vmatprep.subr.mxu0 0.0
    %756 = vmatpush2.msra.mxu0 0.0
    %757 = vmatprep.subr.mxu0 0.0
    %758 = vmatpush2.msra.mxu0 0.0
    %759 = vmatprep.subr.mxu0 0.0
    %760 = vmatpush2.msra.mxu0 0.0
    %761 = vmatprep.subr.mxu0 0.0
    %762 = vmatpush2.msra.mxu0 0.0
    %763 = vmatprep.subr.mxu0 0.0
    %764 = vmatpush2.msra.mxu0 0.0
    %765 = vmatprep.subr.mxu0 0.0
    %766 = vmatpush2.msra.mxu0 0.0
    %767 = vmatprep.subr.mxu0 0.0
    %768 = vmatpush2.msra.mxu0 0.0
    %769 = vmatprep.subr.mxu0 0.0
    %770 = vmatpush2.msra.mxu0 0.0
    %771 = vmatprep.mubr.f32.mxu0 0.0
    %772 = vmatmul.mubr.f32.gmra.mxu0 %v569
    %v773 = vpop.f32.mrf.mxu0
    %v774 = vadd.f32 0.0, %v773
    %v775 = vpop.f32.mrf.mxu0
    %776 = vdwg.mxu0
    %v777 = vadd.f32 %v690, %v774
    %v778 = vtanh.pop %v777
    %v779 = vmul.f32 %v778, %v68
    %v780 = vadd.f32 %v779, %v69
    %781 = vrot.lane.b32.xlu0 %v780, 96
    %v782 = vpop.permute.xlu0 %781
    %783 = vrot.lane.b32.xlu0 %v780, 64
    %v784 = vpop.permute.xlu0 %783
    %785 = vrot.lane.b32.xlu0 %v780, 32
    %v786 = vpop.permute.xlu0 %785
    %v787 = vmul.f32 %v782, %v566
    %v788 = vmul.f32 %v780, %v784
    %v789 = vadd.f32 %v787, %v788
    %v790 = vtanh.pop %v789
    %v791 = vmul.f32 %v786, %v790
    %v792 = vsel %vm67, %v791, 0.0
    %v793 = vld [vmem:[#allocation6] sm:$0xff]
    %v794 = vld [vmem:[#allocation6 + $0x8] sm:$0xff]
    %v795 = vld [vmem:[#allocation6 + $0x10] sm:$0xff]
    %v796 = vld [vmem:[#allocation6 + $0x18] sm:$0xff]
    %v797 = vld [vmem:[#allocation6 + $0x20] sm:$0xff]
    %v798 = vld [vmem:[#allocation6 + $0x28] sm:$0xff]
    %v799 = vld [vmem:[#allocation6 + $0x30] sm:$0xff]
    %v800 = vld [vmem:[#allocation6 + $0x38] sm:$0xff]
    %v801 = vld [vmem:[#allocation6 + $0x40] sm:$0xff]
    %v802 = vld [vmem:[#allocation6 + $0x48] sm:$0xff]
    %v803 = vld [vmem:[#allocation6 + $0x50] sm:$0xff]
    %v804 = vld [vmem:[#allocation6 + $0x58] sm:$0xff]
    %v805 = vld [vmem:[#allocation6 + $0x60] sm:$0xff]
    %v806 = vld [vmem:[#allocation6 + $0x68] sm:$0xff]
    %v807 = vld [vmem:[#allocation6 + $0x70] sm:$0xff]
    %v808 = vld [vmem:[#allocation6 + $0x78] sm:$0xff]
    %v809 = vld [vmem:[#allocation6 + $0x80] sm:$0xff]
    %v810 = vld [vmem:[#allocation6 + $0x88] sm:$0xff]
    %v811 = vld [vmem:[#allocation6 + $0x90] sm:$0xff]
    %v812 = vld [vmem:[#allocation6 + $0x98] sm:$0xff]
    %v813 = vld [vmem:[#allocation6 + $0xa0] sm:$0xff]
    %v814 = vld [vmem:[#allocation6 + $0xa8] sm:$0xff]
    %v815 = vld [vmem:[#allocation6 + $0xb0] sm:$0xff]
    %v816 = vld [vmem:[#allocation6 + $0xb8] sm:$0xff]
    %v817 = vld [vmem:[#allocation6 + $0xc0] sm:$0xff]
    %v818 = vld [vmem:[#allocation6 + $0xc8] sm:$0xff]
    %v819 = vld [vmem:[#allocation6 + $0xd0] sm:$0xff]
    %v820 = vld [vmem:[#allocation6 + $0xd8] sm:$0xff]
    %v821 = vld [vmem:[#allocation6 + $0xe0] sm:$0xff]
    %v822 = vld [vmem:[#allocation6 + $0xe8] sm:$0xff]
    %v823 = vld [vmem:[#allocation6 + $0xf0] sm:$0xff]
    %v824 = vld [vmem:[#allocation6 + $0xf8] sm:$0xff]
    %825 = vmatprep.subr.mxu0 0.0
    %826 = vmatpush1.msra.mxu0 %v808
    %827 = vmatprep.subr.mxu0 0.0
    %828 = vmatpush1.msra.mxu0 %v807
    %829 = vmatprep.subr.mxu0 0.0
    %830 = vmatpush1.msra.mxu0 %v806
    %831 = vmatprep.subr.mxu0 0.0
    %832 = vmatpush1.msra.mxu0 %v805
    %833 = vmatprep.subr.mxu0 0.0
    %834 = vmatpush1.msra.mxu0 %v804
    %835 = vmatprep.subr.mxu0 0.0
    %836 = vmatpush1.msra.mxu0 %v803
    %837 = vmatprep.subr.mxu0 0.0
    %838 = vmatpush1.msra.mxu0 %v802
    %839 = vmatprep.subr.mxu0 0.0
    %840 = vmatpush1.msra.mxu0 %v801
    %841 = vmatprep.subr.mxu0 0.0
    %842 = vmatpush1.msra.mxu0 %v800
    %843 = vmatprep.subr.mxu0 0.0
    %844 = vmatpush1.msra.mxu0 %v799
    %845 = vmatprep.subr.mxu0 0.0
    %846 = vmatpush1.msra.mxu0 %v798
    %847 = vmatprep.subr.mxu0 0.0
    %848 = vmatpush1.msra.mxu0 %v797
    %849 = vmatprep.subr.mxu0 0.0
    %850 = vmatpush1.msra.mxu0 %v796
    %851 = vmatprep.subr.mxu0 0.0
    %852 = vmatpush1.msra.mxu0 %v795
    %853 = vmatprep.subr.mxu0 0.0
    %854 = vmatpush1.msra.mxu0 %v794
    %855 = vmatprep.subr.mxu0 0.0
    %856 = vmatpush1.msra.mxu0 %v793
    %857 = vmatprep.subr.mxu0 0.0
    %858 = vmatpush2.msra.mxu0 %v824
    %859 = vmatprep.subr.mxu0 0.0
    %860 = vmatpush2.msra.mxu0 %v823
    %861 = vmatprep.subr.mxu0 0.0
    %862 = vmatpush2.msra.mxu0 %v822
    %863 = vmatprep.subr.mxu0 0.0
    %864 = vmatpush2.msra.mxu0 %v821
    %865 = vmatprep.subr.mxu0 0.0
    %866 = vmatpush2.msra.mxu0 %v820
    %867 = vmatprep.subr.mxu0 0.0
    %868 = vmatpush2.msra.mxu0 %v819
    %869 = vmatprep.subr.mxu0 0.0
    %870 = vmatpush2.msra.mxu0 %v818
    %871 = vmatprep.subr.mxu0 0.0
    %872 = vmatpush2.msra.mxu0 %v817
    %873 = vmatprep.subr.mxu0 0.0
    %874 = vmatpush2.msra.mxu0 %v816
    %875 = vmatprep.subr.mxu0 0.0
    %876 = vmatpush2.msra.mxu0 %v815
    %877 = vmatprep.subr.mxu0 0.0
    %878 = vmatpush2.msra.mxu0 %v814
    %879 = vmatprep.subr.mxu0 0.0
    %880 = vmatpush2.msra.mxu0 %v813
    %881 = vmatprep.subr.mxu0 0.0
    %882 = vmatpush2.msra.mxu0 %v812
    %883 = vmatprep.subr.mxu0 0.0
    %884 = vmatpush2.msra.mxu0 %v811
    %885 = vmatprep.subr.mxu0 0.0
    %886 = vmatpush2.msra.mxu0 %v810
    %887 = vmatprep.subr.mxu0 0.0
    %888 = vmatpush2.msra.mxu0 %v809
    %889 = vmatprep.mubr.f32.mxu0 %v686
    %890 = vmatmul.mubr.f32.gmra.mxu0 %v792
    %v891 = vpop.f32.mrf.mxu0
    %v892 = vadd.f32 %v75, %v891
    %v893 = vpop.f32.mrf.mxu0
    %894 = vdwg.mxu0
    %v895 = vtanh.pop %v892
    %v896 = vmul.f32 %v895, %v68
    %v897 = vadd.f32 %v896, %v69
    %898 = vrot.lane.b32.xlu0 %v897, 96
    %v899 = vpop.permute.xlu0 %898
    %900 = vrot.lane.b32.xlu0 %v897, 64
    %v901 = vpop.permute.xlu0 %900
    %902 = vrot.lane.b32.xlu0 %v897, 32
    %v903 = vpop.permute.xlu0 %902
    %v904 = vmul.f32 %v899, %v683
    %v905 = vmul.f32 %v897, %v901
    %v906 = vadd.f32 %v904, %v905
    %v907 = vtanh.pop %v906
    %v908 = vmul.f32 %v903, %v907
    %v909 = vsel %vm67, %v908, 0.0
    %s910 = scalar_lea.vmem [#allocation8], 16
    %911 = vst [vmem:[%s910] sm:$0xff] %v909
    %s912 = scalar_lea.vmem [#allocation2], 24
    %v913 = vld [vmem:[%s912] sm:$0xff]
    %v914 = vld [vmem:[#allocation3] sm:$0xff]
    %v915 = vld [vmem:[#allocation3 + $0x8] sm:$0xff]
    %v916 = vld [vmem:[#allocation3 + $0x10] sm:$0xff]
    %v917 = vld [vmem:[#allocation3 + $0x18] sm:$0xff]
    %v918 = vld [vmem:[#allocation3 + $0x20] sm:$0xff]
    %v919 = vld [vmem:[#allocation3 + $0x28] sm:$0xff]
    %v920 = vld [vmem:[#allocation3 + $0x30] sm:$0xff]
    %v921 = vld [vmem:[#allocation3 + $0x38] sm:$0xff]
    %v922 = vld [vmem:[#allocation3 + $0x40] sm:$0xff]
    %v923 = vld [vmem:[#allocation3 + $0x48] sm:$0xff]
    %v924 = vld [vmem:[#allocation3 + $0x50] sm:$0xff]
    %v925 = vld [vmem:[#allocation3 + $0x58] sm:$0xff]
    %v926 = vld [vmem:[#allocation3 + $0x60] sm:$0xff]
    %v927 = vld [vmem:[#allocation3 + $0x68] sm:$0xff]
    %v928 = vld [vmem:[#allocation3 + $0x70] sm:$0xff]
    %v929 = vld [vmem:[#allocation3 + $0x78] sm:$0xff]
    %930 = vmatprep.subr.mxu0 0.0
    %931 = vmatpush1.msra.mxu0 %v929
    %932 = vmatprep.subr.mxu0 0.0
    %933 = vmatpush1.msra.mxu0 %v928
    %934 = vmatprep.subr.mxu0 0.0
    %935 = vmatpush1.msra.mxu0 %v927
    %936 = vmatprep.subr.mxu0 0.0
    %937 = vmatpush1.msra.mxu0 %v926
    %938 = vmatprep.subr.mxu0 0.0
    %939 = vmatpush1.msra.mxu0 %v925
    %940 = vmatprep.subr.mxu0 0.0
    %941 = vmatpush1.msra.mxu0 %v924
    %942 = vmatprep.subr.mxu0 0.0
    %943 = vmatpush1.msra.mxu0 %v923
    %944 = vmatprep.subr.mxu0 0.0
    %945 = vmatpush1.msra.mxu0 %v922
    %946 = vmatprep.subr.mxu0 0.0
    %947 = vmatpush1.msra.mxu0 %v921
    %948 = vmatprep.subr.mxu0 0.0
    %949 = vmatpush1.msra.mxu0 %v920
    %950 = vmatprep.subr.mxu0 0.0
    %951 = vmatpush1.msra.mxu0 %v919
    %952 = vmatprep.subr.mxu0 0.0
    %953 = vmatpush1.msra.mxu0 %v918
    %954 = vmatprep.subr.mxu0 0.0
    %955 = vmatpush1.msra.mxu0 %v917
    %956 = vmatprep.subr.mxu0 0.0
    %957 = vmatpush1.msra.mxu0 %v916
    %958 = vmatprep.subr.mxu0 0.0
    %959 = vmatpush1.msra.mxu0 %v915
    %960 = vmatprep.subr.mxu0 0.0
    %961 = vmatpush1.msra.mxu0 %v914
    %962 = vmatprep.subr.mxu0 0.0
    %963 = vmatpush2.msra.mxu0 0.0
    %964 = vmatprep.subr.mxu0 0.0
    %965 = vmatpush2.msra.mxu0 0.0
    %966 = vmatprep.subr.mxu0 0.0
    %967 = vmatpush2.msra.mxu0 0.0
    %968 = vmatprep.subr.mxu0 0.0
    %969 = vmatpush2.msra.mxu0 0.0
    %970 = vmatprep.subr.mxu0 0.0
    %971 = vmatpush2.msra.mxu0 0.0
    %972 = vmatprep.subr.mxu0 0.0
    %973 = vmatpush2.msra.mxu0 0.0
    %974 = vmatprep.subr.mxu0 0.0
    %975 = vmatpush2.msra.mxu0 0.0
    %976 = vmatprep.subr.mxu0 0.0
    %977 = vmatpush2.msra.mxu0 0.0
    %978 = vmatprep.subr.mxu0 0.0
    %979 = vmatpush2.msra.mxu0 0.0
    %980 = vmatprep.subr.mxu0 0.0
    %981 = vmatpush2.msra.mxu0 0.0
    %982 = vmatprep.subr.mxu0 0.0
    %983 = vmatpush2.msra.mxu0 0.0
    %984 = vmatprep.subr.mxu0 0.0
    %985 = vmatpush2.msra.mxu0 0.0
    %986 = vmatprep.subr.mxu0 0.0
    %987 = vmatpush2.msra.mxu0 0.0
    %988 = vmatprep.subr.mxu0 0.0
    %989 = vmatpush2.msra.mxu0 0.0
    %990 = vmatprep.subr.mxu0 0.0
    %991 = vmatpush2.msra.mxu0 0.0
    %992 = vmatprep.subr.mxu0 0.0
    %993 = vmatpush2.msra.mxu0 0.0
    %994 = vmatprep.mubr.f32.mxu0 0.0
    %995 = vmatmul.mubr.f32.gmra.mxu0 %v792
    %v996 = vpop.f32.mrf.mxu0
    %v997 = vadd.f32 0.0, %v996
    %v998 = vpop.f32.mrf.mxu0
    %999 = vdwg.mxu0
    %v1000 = vadd.f32 %v913, %v997
    %v1001 = vtanh.pop %v1000
    %v1002 = vmul.f32 %v1001, %v68
    %v1003 = vadd.f32 %v1002, %v69
    %1004 = vrot.lane.b32.xlu0 %v1003, 96
    %v1005 = vpop.permute.xlu0 %1004
    %1006 = vrot.lane.b32.xlu0 %v1003, 64
    %v1007 = vpop.permute.xlu0 %1006
    %1008 = vrot.lane.b32.xlu0 %v1003, 32
    %v1009 = vpop.permute.xlu0 %1008
    %v1010 = vmul.f32 %v1005, %v789
    %v1011 = vmul.f32 %v1003, %v1007
    %v1012 = vadd.f32 %v1010, %v1011
    %v1013 = vtanh.pop %v1012
    %v1014 = vmul.f32 %v1009, %v1013
    %v1015 = vsel %vm67, %v1014, 0.0
    %v1016 = vld [vmem:[#allocation6] sm:$0xff]
    %v1017 = vld [vmem:[#allocation6 + $0x8] sm:$0xff]
    %v1018 = vld [vmem:[#allocation6 + $0x10] sm:$0xff]
    %v1019 = vld [vmem:[#allocation6 + $0x18] sm:$0xff]
    %v1020 = vld [vmem:[#allocation6 + $0x20] sm:$0xff]
    %v1021 = vld [vmem:[#allocation6 + $0x28] sm:$0xff]
    %v1022 = vld [vmem:[#allocation6 + $0x30] sm:$0xff]
    %v1023 = vld [vmem:[#allocation6 + $0x38] sm:$0xff]
    %v1024 = vld [vmem:[#allocation6 + $0x40] sm:$0xff]
    %v1025 = vld [vmem:[#allocation6 + $0x48] sm:$0xff]
    %v1026 = vld [vmem:[#allocation6 + $0x50] sm:$0xff]
    %v1027 = vld [vmem:[#allocation6 + $0x58] sm:$0xff]
    %v1028 = vld [vmem:[#allocation6 + $0x60] sm:$0xff]
    %v1029 = vld [vmem:[#allocation6 + $0x68] sm:$0xff]
    %v1030 = vld [vmem:[#allocation6 + $0x70] sm:$0xff]
    %v1031 = vld [vmem:[#allocation6 + $0x78] sm:$0xff]
    %v1032 = vld [vmem:[#allocation6 + $0x80] sm:$0xff]
    %v1033 = vld [vmem:[#allocation6 + $0x88] sm:$0xff]
    %v1034 = vld [vmem:[#allocation6 + $0x90] sm:$0xff]
    %v1035 = vld [vmem:[#allocation6 + $0x98] sm:$0xff]
    %v1036 = vld [vmem:[#allocation6 + $0xa0] sm:$0xff]
    %v1037 = vld [vmem:[#allocation6 + $0xa8] sm:$0xff]
    %v1038 = vld [vmem:[#allocation6 + $0xb0] sm:$0xff]
    %v1039 = vld [vmem:[#allocation6 + $0xb8] sm:$0xff]
    %v1040 = vld [vmem:[#allocation6 + $0xc0] sm:$0xff]
    %v1041 = vld [vmem:[#allocation6 + $0xc8] sm:$0xff]
    %v1042 = vld [vmem:[#allocation6 + $0xd0] sm:$0xff]
    %v1043 = vld [vmem:[#allocation6 + $0xd8] sm:$0xff]
    %v1044 = vld [vmem:[#allocation6 + $0xe0] sm:$0xff]
    %v1045 = vld [vmem:[#allocation6 + $0xe8] sm:$0xff]
    %v1046 = vld [vmem:[#allocation6 + $0xf0] sm:$0xff]
    %v1047 = vld [vmem:[#allocation6 + $0xf8] sm:$0xff]
    %1048 = vmatprep.subr.mxu0 0.0
    %1049 = vmatpush1.msra.mxu0 %v1031
    %1050 = vmatprep.subr.mxu0 0.0
    %1051 = vmatpush1.msra.mxu0 %v1030
    %1052 = vmatprep.subr.mxu0 0.0
    %1053 = vmatpush1.msra.mxu0 %v1029
    %1054 = vmatprep.subr.mxu0 0.0
    %1055 = vmatpush1.msra.mxu0 %v1028
    %1056 = vmatprep.subr.mxu0 0.0
    %1057 = vmatpush1.msra.mxu0 %v1027
    %1058 = vmatprep.subr.mxu0 0.0
    %1059 = vmatpush1.msra.mxu0 %v1026
    %1060 = vmatprep.subr.mxu0 0.0
    %1061 = vmatpush1.msra.mxu0 %v1025
    %1062 = vmatprep.subr.mxu0 0.0
    %1063 = vmatpush1.msra.mxu0 %v1024
    %1064 = vmatprep.subr.mxu0 0.0
    %1065 = vmatpush1.msra.mxu0 %v1023
    %1066 = vmatprep.subr.mxu0 0.0
    %1067 = vmatpush1.msra.mxu0 %v1022
    %1068 = vmatprep.subr.mxu0 0.0
    %1069 = vmatpush1.msra.mxu0 %v1021
    %1070 = vmatprep.subr.mxu0 0.0
    %1071 = vmatpush1.msra.mxu0 %v1020
    %1072 = vmatprep.subr.mxu0 0.0
    %1073 = vmatpush1.msra.mxu0 %v1019
    %1074 = vmatprep.subr.mxu0 0.0
    %1075 = vmatpush1.msra.mxu0 %v1018
    %1076 = vmatprep.subr.mxu0 0.0
    %1077 = vmatpush1.msra.mxu0 %v1017
    %1078 = vmatprep.subr.mxu0 0.0
    %1079 = vmatpush1.msra.mxu0 %v1016
    %1080 = vmatprep.subr.mxu0 0.0
    %1081 = vmatpush2.msra.mxu0 %v1047
    %1082 = vmatprep.subr.mxu0 0.0
    %1083 = vmatpush2.msra.mxu0 %v1046
    %1084 = vmatprep.subr.mxu0 0.0
    %1085 = vmatpush2.msra.mxu0 %v1045
    %1086 = vmatprep.subr.mxu0 0.0
    %1087 = vmatpush2.msra.mxu0 %v1044
    %1088 = vmatprep.subr.mxu0 0.0
    %1089 = vmatpush2.msra.mxu0 %v1043
    %1090 = vmatprep.subr.mxu0 0.0
    %1091 = vmatpush2.msra.mxu0 %v1042
    %1092 = vmatprep.subr.mxu0 0.0
    %1093 = vmatpush2.msra.mxu0 %v1041
    %1094 = vmatprep.subr.mxu0 0.0
    %1095 = vmatpush2.msra.mxu0 %v1040
    %1096 = vmatprep.subr.mxu0 0.0
    %1097 = vmatpush2.msra.mxu0 %v1039
    %1098 = vmatprep.subr.mxu0 0.0
    %1099 = vmatpush2.msra.mxu0 %v1038
    %1100 = vmatprep.subr.mxu0 0.0
    %1101 = vmatpush2.msra.mxu0 %v1037
    %1102 = vmatprep.subr.mxu0 0.0
    %1103 = vmatpush2.msra.mxu0 %v1036
    %1104 = vmatprep.subr.mxu0 0.0
    %1105 = vmatpush2.msra.mxu0 %v1035
    %1106 = vmatprep.subr.mxu0 0.0
    %1107 = vmatpush2.msra.mxu0 %v1034
    %1108 = vmatprep.subr.mxu0 0.0
    %1109 = vmatpush2.msra.mxu0 %v1033
    %1110 = vmatprep.subr.mxu0 0.0
    %1111 = vmatpush2.msra.mxu0 %v1032
    %1112 = vmatprep.mubr.f32.mxu0 %v909
    %1113 = vmatmul.mubr.f32.gmra.mxu0 %v1015
    %v1114 = vpop.f32.mrf.mxu0
    %v1115 = vadd.f32 %v75, %v1114
    %v1116 = vpop.f32.mrf.mxu0
    %1117 = vdwg.mxu0
    %v1118 = vtanh.pop %v1115
    %v1119 = vmul.f32 %v1118, %v68
    %v1120 = vadd.f32 %v1119, %v69
    %1121 = vrot.lane.b32.xlu0 %v1120, 96
    %v1122 = vpop.permute.xlu0 %1121
    %1123 = vrot.lane.b32.xlu0 %v1120, 64
    %v1124 = vpop.permute.xlu0 %1123
    %1125 = vrot.lane.b32.xlu0 %v1120, 32
    %v1126 = vpop.permute.xlu0 %1125
    %v1127 = vmul.f32 %v1122, %v906
    %v1128 = vmul.f32 %v1120, %v1124
    %v1129 = vadd.f32 %v1127, %v1128
    %v1130 = vtanh.pop %v1129
    %v1131 = vmul.f32 %v1126, %v1130
    %v1132 = vsel %vm67, %v1131, 0.0
    %s1133 = scalar_lea.vmem [#allocation8], 24
    %1134 = vst [vmem:[%s1133] sm:$0xff] %v1132
    %s1135 = scalar_lea.vmem [#allocation2], 32
    %v1136 = vld [vmem:[%s1135] sm:$0xff]
    %v1137 = vld [vmem:[#allocation3] sm:$0xff]
    %v1138 = vld [vmem:[#allocation3 + $0x8] sm:$0xff]
    %v1139 = vld [vmem:[#allocation3 + $0x10] sm:$0xff]
    %v1140 = vld [vmem:[#allocation3 + $0x18] sm:$0xff]
    %v1141 = vld [vmem:[#allocation3 + $0x20] sm:$0xff]
    %v1142 = vld [vmem:[#allocation3 + $0x28] sm:$0xff]
    %v1143 = vld [vmem:[#allocation3 + $0x30] sm:$0xff]
    %v1144 = vld [vmem:[#allocation3 + $0x38] sm:$0xff]
    %v1145 = vld [vmem:[#allocation3 + $0x40] sm:$0xff]
    %v1146 = vld [vmem:[#allocation3 + $0x48] sm:$0xff]
    %v1147 = vld [vmem:[#allocation3 + $0x50] sm:$0xff]
    %v1148 = vld [vmem:[#allocation3 + $0x58] sm:$0xff]
    %v1149 = vld [vmem:[#allocation3 + $0x60] sm:$0xff]
    %v1150 = vld [vmem:[#allocation3 + $0x68] sm:$0xff]
    %v1151 = vld [vmem:[#allocation3 + $0x70] sm:$0xff]
    %v1152 = vld [vmem:[#allocation3 + $0x78] sm:$0xff]
    %1153 = vmatprep.subr.mxu0 0.0
    %1154 = vmatpush1.msra.mxu0 %v1152
    %1155 = vmatprep.subr.mxu0 0.0
    %1156 = vmatpush1.msra.mxu0 %v1151
    %1157 = vmatprep.subr.mxu0 0.0
    %1158 = vmatpush1.msra.mxu0 %v1150
    %1159 = vmatprep.subr.mxu0 0.0
    %1160 = vmatpush1.msra.mxu0 %v1149
    %1161 = vmatprep.subr.mxu0 0.0
    %1162 = vmatpush1.msra.mxu0 %v1148
    %1163 = vmatprep.subr.mxu0 0.0
    %1164 = vmatpush1.msra.mxu0 %v1147
    %1165 = vmatprep.subr.mxu0 0.0
    %1166 = vmatpush1.msra.mxu0 %v1146
    %1167 = vmatprep.subr.mxu0 0.0
    %1168 = vmatpush1.msra.mxu0 %v1145
    %1169 = vmatprep.subr.mxu0 0.0
    %1170 = vmatpush1.msra.mxu0 %v1144
    %1171 = vmatprep.subr.mxu0 0.0
    %1172 = vmatpush1.msra.mxu0 %v1143
    %1173 = vmatprep.subr.mxu0 0.0
    %1174 = vmatpush1.msra.mxu0 %v1142
    %1175 = vmatprep.subr.mxu0 0.0
    %1176 = vmatpush1.msra.mxu0 %v1141
    %1177 = vmatprep.subr.mxu0 0.0
    %1178 = vmatpush1.msra.mxu0 %v1140
    %1179 = vmatprep.subr.mxu0 0.0
    %1180 = vmatpush1.msra.mxu0 %v1139
    %1181 = vmatprep.subr.mxu0 0.0
    %1182 = vmatpush1.msra.mxu0 %v1138
    %1183 = vmatprep.subr.mxu0 0.0
    %1184 = vmatpush1.msra.mxu0 %v1137
    %1185 = vmatprep.subr.mxu0 0.0
    %1186 = vmatpush2.msra.mxu0 0.0
    %1187 = vmatprep.subr.mxu0 0.0
    %1188 = vmatpush2.msra.mxu0 0.0
    %1189 = vmatprep.subr.mxu0 0.0
    %1190 = vmatpush2.msra.mxu0 0.0
    %1191 = vmatprep.subr.mxu0 0.0
    %1192 = vmatpush2.msra.mxu0 0.0
    %1193 = vmatprep.subr.mxu0 0.0
    %1194 = vmatpush2.msra.mxu0 0.0
    %1195 = vmatprep.subr.mxu0 0.0
    %1196 = vmatpush2.msra.mxu0 0.0
    %1197 = vmatprep.subr.mxu0 0.0
    %1198 = vmatpush2.msra.mxu0 0.0
    %1199 = vmatprep.subr.mxu0 0.0
    %1200 = vmatpush2.msra.mxu0 0.0
    %1201 = vmatprep.subr.mxu0 0.0
    %1202 = vmatpush2.msra.mxu0 0.0
    %1203 = vmatprep.subr.mxu0 0.0
    %1204 = vmatpush2.msra.mxu0 0.0
    %1205 = vmatprep.subr.mxu0 0.0
    %1206 = vmatpush2.msra.mxu0 0.0
    %1207 = vmatprep.subr.mxu0 0.0
    %1208 = vmatpush2.msra.mxu0 0.0
    %1209 = vmatprep.subr.mxu0 0.0
    %1210 = vmatpush2.msra.mxu0 0.0
    %1211 = vmatprep.subr.mxu0 0.0
    %1212 = vmatpush2.msra.mxu0 0.0
    %1213 = vmatprep.subr.mxu0 0.0
    %1214 = vmatpush2.msra.mxu0 0.0
    %1215 = vmatprep.subr.mxu0 0.0
    %1216 = vmatpush2.msra.mxu0 0.0
    %1217 = vmatprep.mubr.f32.mxu0 0.0
    %1218 = vmatmul.mubr.f32.gmra.mxu0 %v1015
    %v1219 = vpop.f32.mrf.mxu0
    %v1220 = vadd.f32 0.0, %v1219
    %v1221 = vpop.f32.mrf.mxu0
    %1222 = vdwg.mxu0
    %v1223 = vadd.f32 %v1136, %v1220
    %v1224 = vtanh.pop %v1223
    %v1225 = vmul.f32 %v1224, %v68
    %v1226 = vadd.f32 %v1225, %v69
    %1227 = vrot.lane.b32.xlu0 %v1226, 96
    %v1228 = vpop.permute.xlu0 %1227
    %1229 = vrot.lane.b32.xlu0 %v1226, 64
    %v1230 = vpop.permute.xlu0 %1229
    %1231 = vrot.lane.b32.xlu0 %v1226, 32
    %v1232 = vpop.permute.xlu0 %1231
    %v1233 = vmul.f32 %v1228, %v1012
    %v1234 = vmul.f32 %v1226, %v1230
    %v1235 = vadd.f32 %v1233, %v1234
    %v1236 = vtanh.pop %v1235
    %v1237 = vmul.f32 %v1232, %v1236
    %v1238 = vsel %vm67, %v1237, 0.0
    %v1239 = vld [vmem:[#allocation6] sm:$0xff]
    %v1240 = vld [vmem:[#allocation6 + $0x8] sm:$0xff]
    %v1241 = vld [vmem:[#allocation6 + $0x10] sm:$0xff]
    %v1242 = vld [vmem:[#allocation6 + $0x18] sm:$0xff]
    %v1243 = vld [vmem:[#allocation6 + $0x20] sm:$0xff]
    %v1244 = vld [vmem:[#allocation6 + $0x28] sm:$0xff]
    %v1245 = vld [vmem:[#allocation6 + $0x30] sm:$0xff]
    %v1246 = vld [vmem:[#allocation6 + $0x38] sm:$0xff]
    %v1247 = vld [vmem:[#allocation6 + $0x40] sm:$0xff]
    %v1248 = vld [vmem:[#allocation6 + $0x48] sm:$0xff]
    %v1249 = vld [vmem:[#allocation6 + $0x50] sm:$0xff]
    %v1250 = vld [vmem:[#allocation6 + $0x58] sm:$0xff]
    %v1251 = vld [vmem:[#allocation6 + $0x60] sm:$0xff]
    %v1252 = vld [vmem:[#allocation6 + $0x68] sm:$0xff]
    %v1253 = vld [vmem:[#allocation6 + $0x70] sm:$0xff]
    %v1254 = vld [vmem:[#allocation6 + $0x78] sm:$0xff]
    %v1255 = vld [vmem:[#allocation6 + $0x80] sm:$0xff]
    %v1256 = vld [vmem:[#allocation6 + $0x88] sm:$0xff]
    %v1257 = vld [vmem:[#allocation6 + $0x90] sm:$0xff]
    %v1258 = vld [vmem:[#allocation6 + $0x98] sm:$0xff]
    %v1259 = vld [vmem:[#allocation6 + $0xa0] sm:$0xff]
    %v1260 = vld [vmem:[#allocation6 + $0xa8] sm:$0xff]
    %v1261 = vld [vmem:[#allocation6 + $0xb0] sm:$0xff]
    %v1262 = vld [vmem:[#allocation6 + $0xb8] sm:$0xff]
    %v1263 = vld [vmem:[#allocation6 + $0xc0] sm:$0xff]
    %v1264 = vld [vmem:[#allocation6 + $0xc8] sm:$0xff]
    %v1265 = vld [vmem:[#allocation6 + $0xd0] sm:$0xff]
    %v1266 = vld [vmem:[#allocation6 + $0xd8] sm:$0xff]
    %v1267 = vld [vmem:[#allocation6 + $0xe0] sm:$0xff]
    %v1268 = vld [vmem:[#allocation6 + $0xe8] sm:$0xff]
    %v1269 = vld [vmem:[#allocation6 + $0xf0] sm:$0xff]
    %v1270 = vld [vmem:[#allocation6 + $0xf8] sm:$0xff]
    %1271 = vmatprep.subr.mxu0 0.0
    %1272 = vmatpush1.msra.mxu0 %v1254
    %1273 = vmatprep.subr.mxu0 0.0
    %1274 = vmatpush1.msra.mxu0 %v1253
    %1275 = vmatprep.subr.mxu0 0.0
    %1276 = vmatpush1.msra.mxu0 %v1252
    %1277 = vmatprep.subr.mxu0 0.0
    %1278 = vmatpush1.msra.mxu0 %v1251
    %1279 = vmatprep.subr.mxu0 0.0
    %1280 = vmatpush1.msra.mxu0 %v1250
    %1281 = vmatprep.subr.mxu0 0.0
    %1282 = vmatpush1.msra.mxu0 %v1249
    %1283 = vmatprep.subr.mxu0 0.0
    %1284 = vmatpush1.msra.mxu0 %v1248
    %1285 = vmatprep.subr.mxu0 0.0
    %1286 = vmatpush1.msra.mxu0 %v1247
    %1287 = vmatprep.subr.mxu0 0.0
    %1288 = vmatpush1.msra.mxu0 %v1246
    %1289 = vmatprep.subr.mxu0 0.0
    %1290 = vmatpush1.msra.mxu0 %v1245
    %1291 = vmatprep.subr.mxu0 0.0
    %1292 = vmatpush1.msra.mxu0 %v1244
    %1293 = vmatprep.subr.mxu0 0.0
    %1294 = vmatpush1.msra.mxu0 %v1243
    %1295 = vmatprep.subr.mxu0 0.0
    %1296 = vmatpush1.msra.mxu0 %v1242
    %1297 = vmatprep.subr.mxu0 0.0
    %1298 = vmatpush1.msra.mxu0 %v1241
    %1299 = vmatprep.subr.mxu0 0.0
    %1300 = vmatpush1.msra.mxu0 %v1240
    %1301 = vmatprep.subr.mxu0 0.0
    %1302 = vmatpush1.msra.mxu0 %v1239
    %1303 = vmatprep.subr.mxu0 0.0
    %1304 = vmatpush2.msra.mxu0 %v1270
    %1305 = vmatprep.subr.mxu0 0.0
    %1306 = vmatpush2.msra.mxu0 %v1269
    %1307 = vmatprep.subr.mxu0 0.0
    %1308 = vmatpush2.msra.mxu0 %v1268
    %1309 = vmatprep.subr.mxu0 0.0
    %1310 = vmatpush2.msra.mxu0 %v1267
    %1311 = vmatprep.subr.mxu0 0.0
    %1312 = vmatpush2.msra.mxu0 %v1266
    %1313 = vmatprep.subr.mxu0 0.0
    %1314 = vmatpush2.msra.mxu0 %v1265
    %1315 = vmatprep.subr.mxu0 0.0
    %1316 = vmatpush2.msra.mxu0 %v1264
    %1317 = vmatprep.subr.mxu0 0.0
    %1318 = vmatpush2.msra.mxu0 %v1263
    %1319 = vmatprep.subr.mxu0 0.0
    %1320 = vmatpush2.msra.mxu0 %v1262
    %1321 = vmatprep.subr.mxu0 0.0
    %1322 = vmatpush2.msra.mxu0 %v1261
    %1323 = vmatprep.subr.mxu0 0.0
    %1324 = vmatpush2.msra.mxu0 %v1260
    %1325 = vmatprep.subr.mxu0 0.0
    %1326 = vmatpush2.msra.mxu0 %v1259
    %1327 = vmatprep.subr.mxu0 0.0
    %1328 = vmatpush2.msra.mxu0 %v1258
    %1329 = vmatprep.subr.mxu0 0.0
    %1330 = vmatpush2.msra.mxu0 %v1257
    %1331 = vmatprep.subr.mxu0 0.0
    %1332 = vmatpush2.msra.mxu0 %v1256
    %1333 = vmatprep.subr.mxu0 0.0
    %1334 = vmatpush2.msra.mxu0 %v1255
    %1335 = vmatprep.mubr.f32.mxu0 %v1132
    %1336 = vmatmul.mubr.f32.gmra.mxu0 %v1238
    %v1337 = vpop.f32.mrf.mxu0
    %v1338 = vadd.f32 %v75, %v1337
    %v1339 = vpop.f32.mrf.mxu0
    %1340 = vdwg.mxu0
    %v1341 = vtanh.pop %v1338
    %v1342 = vmul.f32 %v1341, %v68
    %v1343 = vadd.f32 %v1342, %v69
    %1344 = vrot.lane.b32.xlu0 %v1343, 96
    %v1345 = vpop.permute.xlu0 %1344
    %1346 = vrot.lane.b32.xlu0 %v1343, 64
    %v1347 = vpop.permute.xlu0 %1346
    %1348 = vrot.lane.b32.xlu0 %v1343, 32
    %v1349 = vpop.permute.xlu0 %1348
    %v1350 = vmul.f32 %v1345, %v1129
    %v1351 = vmul.f32 %v1343, %v1347
    %v1352 = vadd.f32 %v1350, %v1351
    %v1353 = vtanh.pop %v1352
    %v1354 = vmul.f32 %v1349, %v1353
    %v1355 = vsel %vm67, %v1354, 0.0
    %s1356 = scalar_lea.vmem [#allocation8], 32
    %1357 = vst [vmem:[%s1356] sm:$0xff] %v1355
    %s1358 = scalar_lea.vmem [#allocation2], 40
    %v1359 = vld [vmem:[%s1358] sm:$0xff]
    %v1360 = vld [vmem:[#allocation3] sm:$0xff]
    %v1361 = vld [vmem:[#allocation3 + $0x8] sm:$0xff]
    %v1362 = vld [vmem:[#allocation3 + $0x10] sm:$0xff]
    %v1363 = vld [vmem:[#allocation3 + $0x18] sm:$0xff]
    %v1364 = vld [vmem:[#allocation3 + $0x20] sm:$0xff]
    %v1365 = vld [vmem:[#allocation3 + $0x28] sm:$0xff]
    %v1366 = vld [vmem:[#allocation3 + $0x30] sm:$0xff]
    %v1367 = vld [vmem:[#allocation3 + $0x38] sm:$0xff]
    %v1368 = vld [vmem:[#allocation3 + $0x40] sm:$0xff]
    %v1369 = vld [vmem:[#allocation3 + $0x48] sm:$0xff]
    %v1370 = vld [vmem:[#allocation3 + $0x50] sm:$0xff]
    %v1371 = vld [vmem:[#allocation3 + $0x58] sm:$0xff]
    %v1372 = vld [vmem:[#allocation3 + $0x60] sm:$0xff]
    %v1373 = vld [vmem:[#allocation3 + $0x68] sm:$0xff]
    %v1374 = vld [vmem:[#allocation3 + $0x70] sm:$0xff]
    %v1375 = vld [vmem:[#allocation3 + $0x78] sm:$0xff]
    %1376 = vmatprep.subr.mxu0 0.0
    %1377 = vmatpush1.msra.mxu0 %v1375
    %1378 = vmatprep.subr.mxu0 0.0
    %1379 = vmatpush1.msra.mxu0 %v1374
    %1380 = vmatprep.subr.mxu0 0.0
    %1381 = vmatpush1.msra.mxu0 %v1373
    %1382 = vmatprep.subr.mxu0 0.0
    %1383 = vmatpush1.msra.mxu0 %v1372
    %1384 = vmatprep.subr.mxu0 0.0
    %1385 = vmatpush1.msra.mxu0 %v1371
    %1386 = vmatprep.subr.mxu0 0.0
    %1387 = vmatpush1.msra.mxu0 %v1370
    %1388 = vmatprep.subr.mxu0 0.0
    %1389 = vmatpush1.msra.mxu0 %v1369
    %1390 = vmatprep.subr.mxu0 0.0
    %1391 = vmatpush1.msra.mxu0 %v1368
    %1392 = vmatprep.subr.mxu0 0.0
    %1393 = vmatpush1.msra.mxu0 %v1367
    %1394 = vmatprep.subr.mxu0 0.0
    %1395 = vmatpush1.msra.mxu0 %v1366
    %1396 = vmatprep.subr.mxu0 0.0
    %1397 = vmatpush1.msra.mxu0 %v1365
    %1398 = vmatprep.subr.mxu0 0.0
    %1399 = vmatpush1.msra.mxu0 %v1364
    %1400 = vmatprep.subr.mxu0 0.0
    %1401 = vmatpush1.msra.mxu0 %v1363
    %1402 = vmatprep.subr.mxu0 0.0
    %1403 = vmatpush1.msra.mxu0 %v1362
    %1404 = vmatprep.subr.mxu0 0.0
    %1405 = vmatpush1.msra.mxu0 %v1361
    %1406 = vmatprep.subr.mxu0 0.0
    %1407 = vmatpush1.msra.mxu0 %v1360
    %1408 = vmatprep.subr.mxu0 0.0
    %1409 = vmatpush2.msra.mxu0 0.0
    %1410 = vmatprep.subr.mxu0 0.0
    %1411 = vmatpush2.msra.mxu0 0.0
    %1412 = vmatprep.subr.mxu0 0.0
    %1413 = vmatpush2.msra.mxu0 0.0
    %1414 = vmatprep.subr.mxu0 0.0
    %1415 = vmatpush2.msra.mxu0 0.0
    %1416 = vmatprep.subr.mxu0 0.0
    %1417 = vmatpush2.msra.mxu0 0.0
    %1418 = vmatprep.subr.mxu0 0.0
    %1419 = vmatpush2.msra.mxu0 0.0
    %1420 = vmatprep.subr.mxu0 0.0
    %1421 = vmatpush2.msra.mxu0 0.0
    %1422 = vmatprep.subr.mxu0 0.0
    %1423 = vmatpush2.msra.mxu0 0.0
    %1424 = vmatprep.subr.mxu0 0.0
    %1425 = vmatpush2.msra.mxu0 0.0
    %1426 = vmatprep.subr.mxu0 0.0
    %1427 = vmatpush2.msra.mxu0 0.0
    %1428 = vmatprep.subr.mxu0 0.0
    %1429 = vmatpush2.msra.mxu0 0.0
    %1430 = vmatprep.subr.mxu0 0.0
    %1431 = vmatpush2.msra.mxu0 0.0
    %1432 = vmatprep.subr.mxu0 0.0
    %1433 = vmatpush2.msra.mxu0 0.0
    %1434 = vmatprep.subr.mxu0 0.0
    %1435 = vmatpush2.msra.mxu0 0.0
    %1436 = vmatprep.subr.mxu0 0.0
    %1437 = vmatpush2.msra.mxu0 0.0
    %1438 = vmatprep.subr.mxu0 0.0
    %1439 = vmatpush2.msra.mxu0 0.0
    %1440 = vmatprep.mubr.f32.mxu0 0.0
    %1441 = vmatmul.mubr.f32.gmra.mxu0 %v1238
    %v1442 = vpop.f32.mrf.mxu0
    %v1443 = vadd.f32 0.0, %v1442
    %v1444 = vpop.f32.mrf.mxu0
    %1445 = vdwg.mxu0
    %v1446 = vadd.f32 %v1359, %v1443
    %v1447 = vtanh.pop %v1446
    %v1448 = vmul.f32 %v1447, %v68
    %v1449 = vadd.f32 %v1448, %v69
    %1450 = vrot.lane.b32.xlu0 %v1449, 96
    %v1451 = vpop.permute.xlu0 %1450
    %1452 = vrot.lane.b32.xlu0 %v1449, 64
    %v1453 = vpop.permute.xlu0 %1452
    %1454 = vrot.lane.b32.xlu0 %v1449, 32
    %v1455 = vpop.permute.xlu0 %1454
    %v1456 = vmul.f32 %v1451, %v1235
    %v1457 = vmul.f32 %v1449, %v1453
    %v1458 = vadd.f32 %v1456, %v1457
    %v1459 = vtanh.pop %v1458
    %v1460 = vmul.f32 %v1455, %v1459
    %v1461 = vsel %vm67, %v1460, 0.0
    %v1462 = vld [vmem:[#allocation6] sm:$0xff]
    %v1463 = vld [vmem:[#allocation6 + $0x8] sm:$0xff]
    %v1464 = vld [vmem:[#allocation6 + $0x10] sm:$0xff]
    %v1465 = vld [vmem:[#allocation6 + $0x18] sm:$0xff]
    %v1466 = vld [vmem:[#allocation6 + $0x20] sm:$0xff]
    %v1467 = vld [vmem:[#allocation6 + $0x28] sm:$0xff]
    %v1468 = vld [vmem:[#allocation6 + $0x30] sm:$0xff]
    %v1469 = vld [vmem:[#allocation6 + $0x38] sm:$0xff]
    %v1470 = vld [vmem:[#allocation6 + $0x40] sm:$0xff]
    %v1471 = vld [vmem:[#allocation6 + $0x48] sm:$0xff]
    %v1472 = vld [vmem:[#allocation6 + $0x50] sm:$0xff]
    %v1473 = vld [vmem:[#allocation6 + $0x58] sm:$0xff]
    %v1474 = vld [vmem:[#allocation6 + $0x60] sm:$0xff]
    %v1475 = vld [vmem:[#allocation6 + $0x68] sm:$0xff]
    %v1476 = vld [vmem:[#allocation6 + $0x70] sm:$0xff]
    %v1477 = vld [vmem:[#allocation6 + $0x78] sm:$0xff]
    %v1478 = vld [vmem:[#allocation6 + $0x80] sm:$0xff]
    %v1479 = vld [vmem:[#allocation6 + $0x88] sm:$0xff]
    %v1480 = vld [vmem:[#allocation6 + $0x90] sm:$0xff]
    %v1481 = vld [vmem:[#allocation6 + $0x98] sm:$0xff]
    %v1482 = vld [vmem:[#allocation6 + $0xa0] sm:$0xff]
    %v1483 = vld [vmem:[#allocation6 + $0xa8] sm:$0xff]
    %v1484 = vld [vmem:[#allocation6 + $0xb0] sm:$0xff]
    %v1485 = vld [vmem:[#allocation6 + $0xb8] sm:$0xff]
    %v1486 = vld [vmem:[#allocation6 + $0xc0] sm:$0xff]
    %v1487 = vld [vmem:[#allocation6 + $0xc8] sm:$0xff]
    %v1488 = vld [vmem:[#allocation6 + $0xd0] sm:$0xff]
    %v1489 = vld [vmem:[#allocation6 + $0xd8] sm:$0xff]
    %v1490 = vld [vmem:[#allocation6 + $0xe0] sm:$0xff]
    %v1491 = vld [vmem:[#allocation6 + $0xe8] sm:$0xff]
    %v1492 = vld [vmem:[#allocation6 + $0xf0] sm:$0xff]
    %v1493 = vld [vmem:[#allocation6 + $0xf8] sm:$0xff]
    %1494 = vmatprep.subr.mxu0 0.0
    %1495 = vmatpush1.msra.mxu0 %v1477
    %1496 = vmatprep.subr.mxu0 0.0
    %1497 = vmatpush1.msra.mxu0 %v1476
    %1498 = vmatprep.subr.mxu0 0.0
    %1499 = vmatpush1.msra.mxu0 %v1475
    %1500 = vmatprep.subr.mxu0 0.0
    %1501 = vmatpush1.msra.mxu0 %v1474
    %1502 = vmatprep.subr.mxu0 0.0
    %1503 = vmatpush1.msra.mxu0 %v1473
    %1504 = vmatprep.subr.mxu0 0.0
    %1505 = vmatpush1.msra.mxu0 %v1472
    %1506 = vmatprep.subr.mxu0 0.0
    %1507 = vmatpush1.msra.mxu0 %v1471
    %1508 = vmatprep.subr.mxu0 0.0
    %1509 = vmatpush1.msra.mxu0 %v1470
    %1510 = vmatprep.subr.mxu0 0.0
    %1511 = vmatpush1.msra.mxu0 %v1469
    %1512 = vmatprep.subr.mxu0 0.0
    %1513 = vmatpush1.msra.mxu0 %v1468
    %1514 = vmatprep.subr.mxu0 0.0
    %1515 = vmatpush1.msra.mxu0 %v1467
    %1516 = vmatprep.subr.mxu0 0.0
    %1517 = vmatpush1.msra.mxu0 %v1466
    %1518 = vmatprep.subr.mxu0 0.0
    %1519 = vmatpush1.msra.mxu0 %v1465
    %1520 = vmatprep.subr.mxu0 0.0
    %1521 = vmatpush1.msra.mxu0 %v1464
    %1522 = vmatprep.subr.mxu0 0.0
    %1523 = vmatpush1.msra.mxu0 %v1463
    %1524 = vmatprep.subr.mxu0 0.0
    %1525 = vmatpush1.msra.mxu0 %v1462
    %1526 = vmatprep.subr.mxu0 0.0
    %1527 = vmatpush2.msra.mxu0 %v1493
    %1528 = vmatprep.subr.mxu0 0.0
    %1529 = vmatpush2.msra.mxu0 %v1492
    %1530 = vmatprep.subr.mxu0 0.0
    %1531 = vmatpush2.msra.mxu0 %v1491
    %1532 = vmatprep.subr.mxu0 0.0
    %1533 = vmatpush2.msra.mxu0 %v1490
    %1534 = vmatprep.subr.mxu0 0.0
    %1535 = vmatpush2.msra.mxu0 %v1489
    %1536 = vmatprep.subr.mxu0 0.0
    %1537 = vmatpush2.msra.mxu0 %v1488
    %1538 = vmatprep.subr.mxu0 0.0
    %1539 = vmatpush2.msra.mxu0 %v1487
    %1540 = vmatprep.subr.mxu0 0.0
    %1541 = vmatpush2.msra.mxu0 %v1486
    %1542 = vmatprep.subr.mxu0 0.0
    %1543 = vmatpush2.msra.mxu0 %v1485
    %1544 = vmatprep.subr.mxu0 0.0
    %1545 = vmatpush2.msra.mxu0 %v1484
    %1546 = vmatprep.subr.mxu0 0.0
    %1547 = vmatpush2.msra.mxu0 %v1483
    %1548 = vmatprep.subr.mxu0 0.0
    %1549 = vmatpush2.msra.mxu0 %v1482
    %1550 = vmatprep.subr.mxu0 0.0
    %1551 = vmatpush2.msra.mxu0 %v1481
    %1552 = vmatprep.subr.mxu0 0.0
    %1553 = vmatpush2.msra.mxu0 %v1480
    %1554 = vmatprep.subr.mxu0 0.0
    %1555 = vmatpush2.msra.mxu0 %v1479
    %1556 = vmatprep.subr.mxu0 0.0
    %1557 = vmatpush2.msra.mxu0 %v1478
    %1558 = vmatprep.mubr.f32.mxu0 %v1355
    %1559 = vmatmul.mubr.f32.gmra.mxu0 %v1461
    %v1560 = vpop.f32.mrf.mxu0
    %v1561 = vadd.f32 %v75, %v1560
    %v1562 = vpop.f32.mrf.mxu0
    %1563 = vdwg.mxu0
    %v1564 = vtanh.pop %v1561
    %v1565 = vmul.f32 %v1564, %v68
    %v1566 = vadd.f32 %v1565, %v69
    %1567 = vrot.lane.b32.xlu0 %v1566, 96
    %v1568 = vpop.permute.xlu0 %1567
    %1569 = vrot.lane.b32.xlu0 %v1566, 64
    %v1570 = vpop.permute.xlu0 %1569
    %1571 = vrot.lane.b32.xlu0 %v1566, 32
    %v1572 = vpop.permute.xlu0 %1571
    %v1573 = vmul.f32 %v1568, %v1352
    %v1574 = vmul.f32 %v1566, %v1570
    %v1575 = vadd.f32 %v1573, %v1574
    %v1576 = vtanh.pop %v1575
    %v1577 = vmul.f32 %v1572, %v1576
    %v1578 = vsel %vm67, %v1577, 0.0
    %s1579 = scalar_lea.vmem [#allocation8], 40
    %1580 = vst [vmem:[%s1579] sm:$0xff] %v1578
    %s1581 = scalar_lea.vmem [#allocation2], 48
    %v1582 = vld [vmem:[%s1581] sm:$0xff]
    %v1583 = vld [vmem:[#allocation3] sm:$0xff]
    %v1584 = vld [vmem:[#allocation3 + $0x8] sm:$0xff]
    %v1585 = vld [vmem:[#allocation3 + $0x10] sm:$0xff]
    %v1586 = vld [vmem:[#allocation3 + $0x18] sm:$0xff]
    %v1587 = vld [vmem:[#allocation3 + $0x20] sm:$0xff]
    %v1588 = vld [vmem:[#allocation3 + $0x28] sm:$0xff]
    %v1589 = vld [vmem:[#allocation3 + $0x30] sm:$0xff]
    %v1590 = vld [vmem:[#allocation3 + $0x38] sm:$0xff]
    %v1591 = vld [vmem:[#allocation3 + $0x40] sm:$0xff]
    %v1592 = vld [vmem:[#allocation3 + $0x48] sm:$0xff]
    %v1593 = vld [vmem:[#allocation3 + $0x50] sm:$0xff]
    %v1594 = vld [vmem:[#allocation3 + $0x58] sm:$0xff]
    %v1595 = vld [vmem:[#allocation3 + $0x60] sm:$0xff]
    %v1596 = vld [vmem:[#allocation3 + $0x68] sm:$0xff]
    %v1597 = vld [vmem:[#allocation3 + $0x70] sm:$0xff]
    %v1598 = vld [vmem:[#allocation3 + $0x78] sm:$0xff]
    %1599 = vmatprep.subr.mxu0 0.0
    %1600 = vmatpush1.msra.mxu0 %v1598
    %1601 = vmatprep.subr.mxu0 0.0
    %1602 = vmatpush1.msra.mxu0 %v1597
    %1603 = vmatprep.subr.mxu0 0.0
    %1604 = vmatpush1.msra.mxu0 %v1596
    %1605 = vmatprep.subr.mxu0 0.0
    %1606 = vmatpush1.msra.mxu0 %v1595
    %1607 = vmatprep.subr.mxu0 0.0
    %1608 = vmatpush1.msra.mxu0 %v1594
    %1609 = vmatprep.subr.mxu0 0.0
    %1610 = vmatpush1.msra.mxu0 %v1593
    %1611 = vmatprep.subr.mxu0 0.0
    %1612 = vmatpush1.msra.mxu0 %v1592
    %1613 = vmatprep.subr.mxu0 0.0
    %1614 = vmatpush1.msra.mxu0 %v1591
    %1615 = vmatprep.subr.mxu0 0.0
    %1616 = vmatpush1.msra.mxu0 %v1590
    %1617 = vmatprep.subr.mxu0 0.0
    %1618 = vmatpush1.msra.mxu0 %v1589
    %1619 = vmatprep.subr.mxu0 0.0
    %1620 = vmatpush1.msra.mxu0 %v1588
    %1621 = vmatprep.subr.mxu0 0.0
    %1622 = vmatpush1.msra.mxu0 %v1587
    %1623 = vmatprep.subr.mxu0 0.0
    %1624 = vmatpush1.msra.mxu0 %v1586
    %1625 = vmatprep.subr.mxu0 0.0
    %1626 = vmatpush1.msra.mxu0 %v1585
    %1627 = vmatprep.subr.mxu0 0.0
    %1628 = vmatpush1.msra.mxu0 %v1584
    %1629 = vmatprep.subr.mxu0 0.0
    %1630 = vmatpush1.msra.mxu0 %v1583
    %1631 = vmatprep.subr.mxu0 0.0
    %1632 = vmatpush2.msra.mxu0 0.0
    %1633 = vmatprep.subr.mxu0 0.0
    %1634 = vmatpush2.msra.mxu0 0.0
    %1635 = vmatprep.subr.mxu0 0.0
    %1636 = vmatpush2.msra.mxu0 0.0
    %1637 = vmatprep.subr.mxu0 0.0
    %1638 = vmatpush2.msra.mxu0 0.0
    %1639 = vmatprep.subr.mxu0 0.0
    %1640 = vmatpush2.msra.mxu0 0.0
    %1641 = vmatprep.subr.mxu0 0.0
    %1642 = vmatpush2.msra.mxu0 0.0
    %1643 = vmatprep.subr.mxu0 0.0
    %1644 = vmatpush2.msra.mxu0 0.0
    %1645 = vmatprep.subr.mxu0 0.0
    %1646 = vmatpush2.msra.mxu0 0.0
    %1647 = vmatprep.subr.mxu0 0.0
    %1648 = vmatpush2.msra.mxu0 0.0
    %1649 = vmatprep.subr.mxu0 0.0
    %1650 = vmatpush2.msra.mxu0 0.0
    %1651 = vmatprep.subr.mxu0 0.0
    %1652 = vmatpush2.msra.mxu0 0.0
    %1653 = vmatprep.subr.mxu0 0.0
    %1654 = vmatpush2.msra.mxu0 0.0
    %1655 = vmatprep.subr.mxu0 0.0
    %1656 = vmatpush2.msra.mxu0 0.0
    %1657 = vmatprep.subr.mxu0 0.0
    %1658 = vmatpush2.msra.mxu0 0.0
    %1659 = vmatprep.subr.mxu0 0.0
    %1660 = vmatpush2.msra.mxu0 0.0
    %1661 = vmatprep.subr.mxu0 0.0
    %1662 = vmatpush2.msra.mxu0 0.0
    %1663 = vmatprep.mubr.f32.mxu0 0.0
    %1664 = vmatmul.mubr.f32.gmra.mxu0 %v1461
    %v1665 = vpop.f32.mrf.mxu0
    %v1666 = vadd.f32 0.0, %v1665
    %v1667 = vpop.f32.mrf.mxu0
    %1668 = vdwg.mxu0
    %v1669 = vadd.f32 %v1582, %v1666
    %v1670 = vtanh.pop %v1669
    %v1671 = vmul.f32 %v1670, %v68
    %v1672 = vadd.f32 %v1671, %v69
    %1673 = vrot.lane.b32.xlu0 %v1672, 96
    %v1674 = vpop.permute.xlu0 %1673
    %1675 = vrot.lane.b32.xlu0 %v1672, 64
    %v1676 = vpop.permute.xlu0 %1675
    %1677 = vrot.lane.b32.xlu0 %v1672, 32
    %v1678 = vpop.permute.xlu0 %1677
    %v1679 = vmul.f32 %v1674, %v1458
    %v1680 = vmul.f32 %v1672, %v1676
    %v1681 = vadd.f32 %v1679, %v1680
    %v1682 = vtanh.pop %v1681
    %v1683 = vmul.f32 %v1678, %v1682
    %v1684 = vsel %vm67, %v1683, 0.0
    %v1685 = vld [vmem:[#allocation6] sm:$0xff]
    %v1686 = vld [vmem:[#allocation6 + $0x8] sm:$0xff]
    %v1687 = vld [vmem:[#allocation6 + $0x10] sm:$0xff]
    %v1688 = vld [vmem:[#allocation6 + $0x18] sm:$0xff]
    %v1689 = vld [vmem:[#allocation6 + $0x20] sm:$0xff]
    %v1690 = vld [vmem:[#allocation6 + $0x28] sm:$0xff]
    %v1691 = vld [vmem:[#allocation6 + $0x30] sm:$0xff]
    %v1692 = vld [vmem:[#allocation6 + $0x38] sm:$0xff]
    %v1693 = vld [vmem:[#allocation6 + $0x40] sm:$0xff]
    %v1694 = vld [vmem:[#allocation6 + $0x48] sm:$0xff]
    %v1695 = vld [vmem:[#allocation6 + $0x50] sm:$0xff]
    %v1696 = vld [vmem:[#allocation6 + $0x58] sm:$0xff]
    %v1697 = vld [vmem:[#allocation6 + $0x60] sm:$0xff]
    %v1698 = vld [vmem:[#allocation6 + $0x68] sm:$0xff]
    %v1699 = vld [vmem:[#allocation6 + $0x70] sm:$0xff]
    %v1700 = vld [vmem:[#allocation6 + $0x78] sm:$0xff]
    %v1701 = vld [vmem:[#allocation6 + $0x80] sm:$0xff]
    %v1702 = vld [vmem:[#allocation6 + $0x88] sm:$0xff]
    %v1703 = vld [vmem:[#allocation6 + $0x90] sm:$0xff]
    %v1704 = vld [vmem:[#allocation6 + $0x98] sm:$0xff]
    %v1705 = vld [vmem:[#allocation6 + $0xa0] sm:$0xff]
    %v1706 = vld [vmem:[#allocation6 + $0xa8] sm:$0xff]
    %v1707 = vld [vmem:[#allocation6 + $0xb0] sm:$0xff]
    %v1708 = vld [vmem:[#allocation6 + $0xb8] sm:$0xff]
    %v1709 = vld [vmem:[#allocation6 + $0xc0] sm:$0xff]
    %v1710 = vld [vmem:[#allocation6 + $0xc8] sm:$0xff]
    %v1711 = vld [vmem:[#allocation6 + $0xd0] sm:$0xff]
    %v1712 = vld [vmem:[#allocation6 + $0xd8] sm:$0xff]
    %v1713 = vld [vmem:[#allocation6 + $0xe0] sm:$0xff]
    %v1714 = vld [vmem:[#allocation6 + $0xe8] sm:$0xff]
    %v1715 = vld [vmem:[#allocation6 + $0xf0] sm:$0xff]
    %v1716 = vld [vmem:[#allocation6 + $0xf8] sm:$0xff]
    %1717 = vmatprep.subr.mxu0 0.0
    %1718 = vmatpush1.msra.mxu0 %v1700
    %1719 = vmatprep.subr.mxu0 0.0
    %1720 = vmatpush1.msra.mxu0 %v1699
    %1721 = vmatprep.subr.mxu0 0.0
    %1722 = vmatpush1.msra.mxu0 %v1698
    %1723 = vmatprep.subr.mxu0 0.0
    %1724 = vmatpush1.msra.mxu0 %v1697
    %1725 = vmatprep.subr.mxu0 0.0
    %1726 = vmatpush1.msra.mxu0 %v1696
    %1727 = vmatprep.subr.mxu0 0.0
    %1728 = vmatpush1.msra.mxu0 %v1695
    %1729 = vmatprep.subr.mxu0 0.0
    %1730 = vmatpush1.msra.mxu0 %v1694
    %1731 = vmatprep.subr.mxu0 0.0
    %1732 = vmatpush1.msra.mxu0 %v1693
    %1733 = vmatprep.subr.mxu0 0.0
    %1734 = vmatpush1.msra.mxu0 %v1692
    %1735 = vmatprep.subr.mxu0 0.0
    %1736 = vmatpush1.msra.mxu0 %v1691
    %1737 = vmatprep.subr.mxu0 0.0
    %1738 = vmatpush1.msra.mxu0 %v1690
    %1739 = vmatprep.subr.mxu0 0.0
    %1740 = vmatpush1.msra.mxu0 %v1689
    %1741 = vmatprep.subr.mxu0 0.0
    %1742 = vmatpush1.msra.mxu0 %v1688
    %1743 = vmatprep.subr.mxu0 0.0
    %1744 = vmatpush1.msra.mxu0 %v1687
    %1745 = vmatprep.subr.mxu0 0.0
    %1746 = vmatpush1.msra.mxu0 %v1686
    %1747 = vmatprep.subr.mxu0 0.0
    %1748 = vmatpush1.msra.mxu0 %v1685
    %1749 = vmatprep.subr.mxu0 0.0
    %1750 = vmatpush2.msra.mxu0 %v1716
    %1751 = vmatprep.subr.mxu0 0.0
    %1752 = vmatpush2.msra.mxu0 %v1715
    %1753 = vmatprep.subr.mxu0 0.0
    %1754 = vmatpush2.msra.mxu0 %v1714
    %1755 = vmatprep.subr.mxu0 0.0
    %1756 = vmatpush2.msra.mxu0 %v1713
    %1757 = vmatprep.subr.mxu0 0.0
    %1758 = vmatpush2.msra.mxu0 %v1712
    %1759 = vmatprep.subr.mxu0 0.0
    %1760 = vmatpush2.msra.mxu0 %v1711
    %1761 = vmatprep.subr.mxu0 0.0
    %1762 = vmatpush2.msra.mxu0 %v1710
    %1763 = vmatprep.subr.mxu0 0.0
    %1764 = vmatpush2.msra.mxu0 %v1709
    %1765 = vmatprep.subr.mxu0 0.0
    %1766 = vmatpush2.msra.mxu0 %v1708
    %1767 = vmatprep.subr.mxu0 0.0
    %1768 = vmatpush2.msra.mxu0 %v1707
    %1769 = vmatprep.subr.mxu0 0.0
    %1770 = vmatpush2.msra.mxu0 %v1706
    %1771 = vmatprep.subr.mxu0 0.0
    %1772 = vmatpush2.msra.mxu0 %v1705
    %1773 = vmatprep.subr.mxu0 0.0
    %1774 = vmatpush2.msra.mxu0 %v1704
    %1775 = vmatprep.subr.mxu0 0.0
    %1776 = vmatpush2.msra.mxu0 %v1703
    %1777 = vmatprep.subr.mxu0 0.0
    %1778 = vmatpush2.msra.mxu0 %v1702
    %1779 = vmatprep.subr.mxu0 0.0
    %1780 = vmatpush2.msra.mxu0 %v1701
    %1781 = vmatprep.mubr.f32.mxu0 %v1578
    %1782 = vmatmul.mubr.f32.gmra.mxu0 %v1684
    %v1783 = vpop.f32.mrf.mxu0
    %v1784 = vadd.f32 %v75, %v1783
    %v1785 = vpop.f32.mrf.mxu0
    %1786 = vdwg.mxu0
    %v1787 = vtanh.pop %v1784
    %v1788 = vmul.f32 %v1787, %v68
    %v1789 = vadd.f32 %v1788, %v69
    %1790 = vrot.lane.b32.xlu0 %v1789, 96
    %v1791 = vpop.permute.xlu0 %1790
    %1792 = vrot.lane.b32.xlu0 %v1789, 64
    %v1793 = vpop.permute.xlu0 %1792
    %1794 = vrot.lane.b32.xlu0 %v1789, 32
    %v1795 = vpop.permute.xlu0 %1794
    %v1796 = vmul.f32 %v1791, %v1575
    %v1797 = vmul.f32 %v1789, %v1793
    %v1798 = vadd.f32 %v1796, %v1797
    %v1799 = vtanh.pop %v1798
    %v1800 = vmul.f32 %v1795, %v1799
    %v1801 = vsel %vm67, %v1800, 0.0
    %s1802 = scalar_lea.vmem [#allocation8], 48
    %1803 = vst [vmem:[%s1802] sm:$0xff] %v1801
    %s1804 = scalar_lea.vmem [#allocation2], 56
    %v1805 = vld [vmem:[%s1804] sm:$0xff]
    %v1806 = vld [vmem:[#allocation3] sm:$0xff]
    %v1807 = vld [vmem:[#allocation3 + $0x8] sm:$0xff]
    %v1808 = vld [vmem:[#allocation3 + $0x10] sm:$0xff]
    %v1809 = vld [vmem:[#allocation3 + $0x18] sm:$0xff]
    %v1810 = vld [vmem:[#allocation3 + $0x20] sm:$0xff]
    %v1811 = vld [vmem:[#allocation3 + $0x28] sm:$0xff]
    %v1812 = vld [vmem:[#allocation3 + $0x30] sm:$0xff]
    %v1813 = vld [vmem:[#allocation3 + $0x38] sm:$0xff]
    %v1814 = vld [vmem:[#allocation3 + $0x40] sm:$0xff]
    %v1815 = vld [vmem:[#allocation3 + $0x48] sm:$0xff]
    %v1816 = vld [vmem:[#allocation3 + $0x50] sm:$0xff]
    %v1817 = vld [vmem:[#allocation3 + $0x58] sm:$0xff]
    %v1818 = vld [vmem:[#allocation3 + $0x60] sm:$0xff]
    %v1819 = vld [vmem:[#allocation3 + $0x68] sm:$0xff]
    %v1820 = vld [vmem:[#allocation3 + $0x70] sm:$0xff]
    %v1821 = vld [vmem:[#allocation3 + $0x78] sm:$0xff]
    %1822 = vmatprep.subr.mxu0 0.0
    %1823 = vmatpush1.msra.mxu0 %v1821
    %1824 = vmatprep.subr.mxu0 0.0
    %1825 = vmatpush1.msra.mxu0 %v1820
    %1826 = vmatprep.subr.mxu0 0.0
    %1827 = vmatpush1.msra.mxu0 %v1819
    %1828 = vmatprep.subr.mxu0 0.0
    %1829 = vmatpush1.msra.mxu0 %v1818
    %1830 = vmatprep.subr.mxu0 0.0
    %1831 = vmatpush1.msra.mxu0 %v1817
    %1832 = vmatprep.subr.mxu0 0.0
    %1833 = vmatpush1.msra.mxu0 %v1816
    %1834 = vmatprep.subr.mxu0 0.0
    %1835 = vmatpush1.msra.mxu0 %v1815
    %1836 = vmatprep.subr.mxu0 0.0
    %1837 = vmatpush1.msra.mxu0 %v1814
    %1838 = vmatprep.subr.mxu0 0.0
    %1839 = vmatpush1.msra.mxu0 %v1813
    %1840 = vmatprep.subr.mxu0 0.0
    %1841 = vmatpush1.msra.mxu0 %v1812
    %1842 = vmatprep.subr.mxu0 0.0
    %1843 = vmatpush1.msra.mxu0 %v1811
    %1844 = vmatprep.subr.mxu0 0.0
    %1845 = vmatpush1.msra.mxu0 %v1810
    %1846 = vmatprep.subr.mxu0 0.0
    %1847 = vmatpush1.msra.mxu0 %v1809
    %1848 = vmatprep.subr.mxu0 0.0
    %1849 = vmatpush1.msra.mxu0 %v1808
    %1850 = vmatprep.subr.mxu0 0.0
    %1851 = vmatpush1.msra.mxu0 %v1807
    %1852 = vmatprep.subr.mxu0 0.0
    %1853 = vmatpush1.msra.mxu0 %v1806
    %1854 = vmatprep.subr.mxu0 0.0
    %1855 = vmatpush2.msra.mxu0 0.0
    %1856 = vmatprep.subr.mxu0 0.0
    %1857 = vmatpush2.msra.mxu0 0.0
    %1858 = vmatprep.subr.mxu0 0.0
    %1859 = vmatpush2.msra.mxu0 0.0
    %1860 = vmatprep.subr.mxu0 0.0
    %1861 = vmatpush2.msra.mxu0 0.0
    %1862 = vmatprep.subr.mxu0 0.0
    %1863 = vmatpush2.msra.mxu0 0.0
    %1864 = vmatprep.subr.mxu0 0.0
    %1865 = vmatpush2.msra.mxu0 0.0
    %1866 = vmatprep.subr.mxu0 0.0
    %1867 = vmatpush2.msra.mxu0 0.0
    %1868 = vmatprep.subr.mxu0 0.0
    %1869 = vmatpush2.msra.mxu0 0.0
    %1870 = vmatprep.subr.mxu0 0.0
    %1871 = vmatpush2.msra.mxu0 0.0
    %1872 = vmatprep.subr.mxu0 0.0
    %1873 = vmatpush2.msra.mxu0 0.0
    %1874 = vmatprep.subr.mxu0 0.0
    %1875 = vmatpush2.msra.mxu0 0.0
    %1876 = vmatprep.subr.mxu0 0.0
    %1877 = vmatpush2.msra.mxu0 0.0
    %1878 = vmatprep.subr.mxu0 0.0
    %1879 = vmatpush2.msra.mxu0 0.0
    %1880 = vmatprep.subr.mxu0 0.0
    %1881 = vmatpush2.msra.mxu0 0.0
    %1882 = vmatprep.subr.mxu0 0.0
    %1883 = vmatpush2.msra.mxu0 0.0
    %1884 = vmatprep.subr.mxu0 0.0
    %1885 = vmatpush2.msra.mxu0 0.0
    %1886 = vmatprep.mubr.f32.mxu0 0.0
    %1887 = vmatmul.mubr.f32.gmra.mxu0 %v1684
    %v1888 = vpop.f32.mrf.mxu0
    %v1889 = vadd.f32 0.0, %v1888
    %v1890 = vpop.f32.mrf.mxu0
    %1891 = vdwg.mxu0
    %v1892 = vadd.f32 %v1805, %v1889
    %v1893 = vtanh.pop %v1892
    %v1894 = vmul.f32 %v1893, %v68
    %v1895 = vadd.f32 %v1894, %v69
    %1896 = vrot.lane.b32.xlu0 %v1895, 96
    %v1897 = vpop.permute.xlu0 %1896
    %1898 = vrot.lane.b32.xlu0 %v1895, 64
    %v1899 = vpop.permute.xlu0 %1898
    %1900 = vrot.lane.b32.xlu0 %v1895, 32
    %v1901 = vpop.permute.xlu0 %1900
    %v1902 = vmul.f32 %v1897, %v1681
    %v1903 = vmul.f32 %v1895, %v1899
    %v1904 = vadd.f32 %v1902, %v1903
    %v1905 = vtanh.pop %v1904
    %v1906 = vmul.f32 %v1901, %v1905
    %v1907 = vsel %vm67, %v1906, 0.0
    %v1908 = vld [vmem:[#allocation6] sm:$0xff]
    %v1909 = vld [vmem:[#allocation6 + $0x8] sm:$0xff]
    %v1910 = vld [vmem:[#allocation6 + $0x10] sm:$0xff]
    %v1911 = vld [vmem:[#allocation6 + $0x18] sm:$0xff]
    %v1912 = vld [vmem:[#allocation6 + $0x20] sm:$0xff]
    %v1913 = vld [vmem:[#allocation6 + $0x28] sm:$0xff]
    %v1914 = vld [vmem:[#allocation6 + $0x30] sm:$0xff]
    %v1915 = vld [vmem:[#allocation6 + $0x38] sm:$0xff]
    %v1916 = vld [vmem:[#allocation6 + $0x40] sm:$0xff]
    %v1917 = vld [vmem:[#allocation6 + $0x48] sm:$0xff]
    %v1918 = vld [vmem:[#allocation6 + $0x50] sm:$0xff]
    %v1919 = vld [vmem:[#allocation6 + $0x58] sm:$0xff]
    %v1920 = vld [vmem:[#allocation6 + $0x60] sm:$0xff]
    %v1921 = vld [vmem:[#allocation6 + $0x68] sm:$0xff]
    %v1922 = vld [vmem:[#allocation6 + $0x70] sm:$0xff]
    %v1923 = vld [vmem:[#allocation6 + $0x78] sm:$0xff]
    %v1924 = vld [vmem:[#allocation6 + $0x80] sm:$0xff]
    %v1925 = vld [vmem:[#allocation6 + $0x88] sm:$0xff]
    %v1926 = vld [vmem:[#allocation6 + $0x90] sm:$0xff]
    %v1927 = vld [vmem:[#allocation6 + $0x98] sm:$0xff]
    %v1928 = vld [vmem:[#allocation6 + $0xa0] sm:$0xff]
    %v1929 = vld [vmem:[#allocation6 + $0xa8] sm:$0xff]
    %v1930 = vld [vmem:[#allocation6 + $0xb0] sm:$0xff]
    %v1931 = vld [vmem:[#allocation6 + $0xb8] sm:$0xff]
    %v1932 = vld [vmem:[#allocation6 + $0xc0] sm:$0xff]
    %v1933 = vld [vmem:[#allocation6 + $0xc8] sm:$0xff]
    %v1934 = vld [vmem:[#allocation6 + $0xd0] sm:$0xff]
    %v1935 = vld [vmem:[#allocation6 + $0xd8] sm:$0xff]
    %v1936 = vld [vmem:[#allocation6 + $0xe0] sm:$0xff]
    %v1937 = vld [vmem:[#allocation6 + $0xe8] sm:$0xff]
    %v1938 = vld [vmem:[#allocation6 + $0xf0] sm:$0xff]
    %v1939 = vld [vmem:[#allocation6 + $0xf8] sm:$0xff]
    %1940 = vmatprep.subr.mxu0 0.0
    %1941 = vmatpush1.msra.mxu0 %v1923
    %1942 = vmatprep.subr.mxu0 0.0
    %1943 = vmatpush1.msra.mxu0 %v1922
    %1944 = vmatprep.subr.mxu0 0.0
    %1945 = vmatpush1.msra.mxu0 %v1921
    %1946 = vmatprep.subr.mxu0 0.0
    %1947 = vmatpush1.msra.mxu0 %v1920
    %1948 = vmatprep.subr.mxu0 0.0
    %1949 = vmatpush1.msra.mxu0 %v1919
    %1950 = vmatprep.subr.mxu0 0.0
    %1951 = vmatpush1.msra.mxu0 %v1918
    %1952 = vmatprep.subr.mxu0 0.0
    %1953 = vmatpush1.msra.mxu0 %v1917
    %1954 = vmatprep.subr.mxu0 0.0
    %1955 = vmatpush1.msra.mxu0 %v1916
    %1956 = vmatprep.subr.mxu0 0.0
    %1957 = vmatpush1.msra.mxu0 %v1915
    %1958 = vmatprep.subr.mxu0 0.0
    %1959 = vmatpush1.msra.mxu0 %v1914
    %1960 = vmatprep.subr.mxu0 0.0
    %1961 = vmatpush1.msra.mxu0 %v1913
    %1962 = vmatprep.subr.mxu0 0.0
    %1963 = vmatpush1.msra.mxu0 %v1912
    %1964 = vmatprep.subr.mxu0 0.0
    %1965 = vmatpush1.msra.mxu0 %v1911
    %1966 = vmatprep.subr.mxu0 0.0
    %1967 = vmatpush1.msra.mxu0 %v1910
    %1968 = vmatprep.subr.mxu0 0.0
    %1969 = vmatpush1.msra.mxu0 %v1909
    %1970 = vmatprep.subr.mxu0 0.0
    %1971 = vmatpush1.msra.mxu0 %v1908
    %1972 = vmatprep.subr.mxu0 0.0
    %1973 = vmatpush2.msra.mxu0 %v1939
    %1974 = vmatprep.subr.mxu0 0.0
    %1975 = vmatpush2.msra.mxu0 %v1938
    %1976 = vmatprep.subr.mxu0 0.0
    %1977 = vmatpush2.msra.mxu0 %v1937
    %1978 = vmatprep.subr.mxu0 0.0
    %1979 = vmatpush2.msra.mxu0 %v1936
    %1980 = vmatprep.subr.mxu0 0.0
    %1981 = vmatpush2.msra.mxu0 %v1935
    %1982 = vmatprep.subr.mxu0 0.0
    %1983 = vmatpush2.msra.mxu0 %v1934
    %1984 = vmatprep.subr.mxu0 0.0
    %1985 = vmatpush2.msra.mxu0 %v1933
    %1986 = vmatprep.subr.mxu0 0.0
    %1987 = vmatpush2.msra.mxu0 %v1932
    %1988 = vmatprep.subr.mxu0 0.0
    %1989 = vmatpush2.msra.mxu0 %v1931
    %1990 = vmatprep.subr.mxu0 0.0
    %1991 = vmatpush2.msra.mxu0 %v1930
    %1992 = vmatprep.subr.mxu0 0.0
    %1993 = vmatpush2.msra.mxu0 %v1929
    %1994 = vmatprep.subr.mxu0 0.0
    %1995 = vmatpush2.msra.mxu0 %v1928
    %1996 = vmatprep.subr.mxu0 0.0
    %1997 = vmatpush2.msra.mxu0 %v1927
    %1998 = vmatprep.subr.mxu0 0.0
    %1999 = vmatpush2.msra.mxu0 %v1926
    %2000 = vmatprep.subr.mxu0 0.0
    %2001 = vmatpush2.msra.mxu0 %v1925
    %2002 = vmatprep.subr.mxu0 0.0
    %2003 = vmatpush2.msra.mxu0 %v1924
    %2004 = vmatprep.mubr.f32.mxu0 %v1801
    %2005 = vmatmul.mubr.f32.gmra.mxu0 %v1907
    %v2006 = vpop.f32.mrf.mxu0
    %v2007 = vadd.f32 %v75, %v2006
    %v2008 = vpop.f32.mrf.mxu0
    %2009 = vdwg.mxu0
    %v2010 = vtanh.pop %v2007
    %v2011 = vmul.f32 %v2010, %v68
    %v2012 = vadd.f32 %v2011, %v69
    %2013 = vrot.lane.b32.xlu0 %v2012, 96
    %v2014 = vpop.permute.xlu0 %2013
    %2015 = vrot.lane.b32.xlu0 %v2012, 64
    %v2016 = vpop.permute.xlu0 %2015
    %2017 = vrot.lane.b32.xlu0 %v2012, 32
    %v2018 = vpop.permute.xlu0 %2017
    %v2019 = vmul.f32 %v2014, %v1798
    %v2020 = vmul.f32 %v2012, %v2016
    %v2021 = vadd.f32 %v2019, %v2020
    %v2022 = vtanh.pop %v2021
    %v2023 = vmul.f32 %v2018, %v2022
    %v2024 = vsel %vm67, %v2023, 0.0
    %s2025 = scalar_lea.vmem [#allocation8], 56
    %2026 = vst [vmem:[%s2025] sm:$0xff] %v2024
    %2027 = vst [vmem:[#allocation9] sm:$0xff] %v1907
    %s2028 = scalar_lea.vmem [#allocation9], 8
    %2029 = vst [vmem:[%s2028] sm:$0xff] %v2024
    %2030 = vst [vmem:[#allocation11] sm:$0xff] %v1904
    %s2031 = scalar_lea.vmem [#allocation11], 8
    %2032 = vst [vmem:[%s2031] sm:$0xff] %v2021
    // Predicated region
    $region42: #{tpu_custom_call.1} parent=1 // pred_check
      _
    $region43: #{tpu_custom_call.1} parent=1 // pred_check_branch
      %2034 = sbr.rel (0) target = $region45
    $region44: #{tpu_custom_call.1} parent=1 // pred_region
      %s2036 = ssub.s32 1024, 1024
      %2037 = vsyncadd [#allocation5], %s2036
      %s2038 = sshll.u32 [#allocation8], 4
      %s2039 = int_to_ptr.vmem [resolvable:$true] %s2038
      %2044 = dma.vmem_to_hbm [thread:$0]  %s2039, 1024, %s8, [#allocation5], 128, 128, 8
    $region45: #{tpu_custom_call.1} parent=1 // pred_fallthru
      _
    // Predicated region
    $region46: #{tpu_custom_call.1} parent=1 // pred_check
      _
    $region47: #{tpu_custom_call.1} parent=1 // pred_check_branch
      %2046 = sbr.rel (0) target = $region49
    $region48: #{tpu_custom_call.1} parent=1 // pred_region
      %s2048 = ssub.s32 256, 256
      %2049 = vsyncadd [#allocation10], %s2048
      %s2050 = sshll.u32 [#allocation9], 4
      %s2051 = int_to_ptr.vmem [resolvable:$true] %s2050
      %2056 = dma.vmem_to_hbm [thread:$0]  %s2051, 256, %s9, [#allocation10], 128, 128, 8
    $region49: #{tpu_custom_call.1} parent=1 // pred_fallthru
      _
    // Predicated region
    $region50: #{tpu_custom_call.1} parent=1 // pred_check
      _
    $region51: #{tpu_custom_call.1} parent=1 // pred_check_branch
      %2058 = sbr.rel (0) target = $region53
    $region52: #{tpu_custom_call.1} parent=1 // pred_region
      %s2060 = ssub.s32 256, 256
      %2061 = vsyncadd [#allocation10], %s2060
      %s2062 = sshll.u32 [#allocation11], 4
      %s2063 = int_to_ptr.vmem [resolvable:$true] %s2062
      %2068 = dma.vmem_to_hbm [thread:$0]  %s2063, 256, %s10, [#allocation10], 128, 128, 8
    $region53: #{tpu_custom_call.1} parent=1 // pred_fallthru
      _
    // Predicated region
    $region54: #{tpu_custom_call.1} parent=1 // pred_check
      _
    $region55: #{tpu_custom_call.1} parent=1 // pred_check_branch
      %2070 = sbr.rel (0) target = $region57
    $region56: #{tpu_custom_call.1} parent=1 // pred_region
      %2071 = dma.done [#allocation5], 1024
    $region57: #{tpu_custom_call.1} parent=1 // pred_fallthru
      _
    // Predicated region
    $region58: #{tpu_custom_call.1} parent=1 // pred_check
      _
    $region59: #{tpu_custom_call.1} parent=1 // pred_check_branch
      %2073 = sbr.rel (0) target = $region61
    $region60: #{tpu_custom_call.1} parent=1 // pred_region
      %2074 = dma.done [#allocation10], 256
    $region61: #{tpu_custom_call.1} parent=1 // pred_fallthru
      _
    // Predicated region
    $region62: #{tpu_custom_call.1} parent=1 // pred_check
      _
    $region63: #{tpu_custom_call.1} parent=1 // pred_check_branch
      %2076 = sbr.rel (0) target = $region65
    $region64: #{tpu_custom_call.1} parent=1 // pred_region
      %2077 = dma.done [#allocation10], 256
    $region65: #{tpu_custom_call.1} parent=1 // pred_fallthru
      _
    %2078 = vsyncpa [#allocation4], 1
    %2079 = vsyncpa [#allocation7], 1
    %2080 = vsyncpa [#allocation5], 1
    %2081 = vsyncpa [#allocation10], 1

</llo_original>
